<compile_context>
chip_gen: v5e
topology: v5e:2x2
jax: 0.10.0
libtpu: 0.0.40
codegen_flags: <defaults>
</compile_context>

<pallas_src>
import math
from functools import partial

import jax
import jax.numpy as jnp
from jax.experimental import pallas as pl
from jax.experimental.pallas import tpu as pltpu  # noqa: F401  (TPU backend assumed)

# ----------------------- small synthetic BERT config -----------------------
VOCAB = 100
TYPE_VOCAB = 2
MAX_POS = 32
HIDDEN = 32
N_HEADS = 4
HEAD_DIM = HIDDEN // N_HEADS
INTERMEDIATE = 64
N_LAYERS = 2
LN_EPS = 1e-12

BATCH = 2
SEQ = 8


# ------------------------------ fused kernel -------------------------------
def _gelu(x):
    # TODO(synk): HF BERT uses erf-based GELU; tanh approximation used here (diff < 1e-3).
    return 0.5 * x * (1.0 + jnp.tanh(0.7978845608028654 * (x + 0.044715 * x * x * x)))


def _ln(x, g, b):
    mu = jnp.mean(x, axis=-1, keepdims=True)
    xc = x - mu
    var = jnp.mean(xc * xc, axis=-1, keepdims=True)
    return xc * jax.lax.rsqrt(var + LN_EPS) * g + b


def bert_fused_kernel(
    emb_ref, mask_ref,
    emb_ln_g_ref, emb_ln_b_ref,
    qkv_w_ref, qkv_b_ref,
    o_w_ref, o_b_ref,
    ln1_g_ref, ln1_b_ref,
    fc1_w_ref, fc1_b_ref,
    fc2_w_ref, fc2_b_ref,
    ln2_g_ref, ln2_b_ref,
    pool_w_ref, pool_b_ref,
    seq_ref, pooled_ref,
    *, batch, seq, hidden, n_heads, head_dim, n_layers,
):
    # embeddings -> LayerNorm   (emb is the pre-summed word+pos+type embedding)
    x = _ln(emb_ref[...], emb_ln_g_ref[...], emb_ln_b_ref[...])        # (B*S, H)
    mask = mask_ref[...]                                               # (B, S) additive bias

    # encoder layers (static Python loop; weights stay resident in VMEM)
    for l in range(n_layers):
        # fused QKV projection: one (B*S, H) @ (H, 3H) matmul.
        # The 1/sqrt(head_dim) scale is pre-folded into the Q columns/bias.
        qkv = jnp.dot(x, qkv_w_ref[l], preferred_element_type=jnp.float32) + qkv_b_ref[l]

        o_w_l = o_w_ref[l]                                             # (H, H)
        attn_rows = []
        for b in range(batch):
            bias_b = mask[b:b + 1, :]                                  # (1, S)
            out_b = None
            for h in range(n_heads):
                r0 = b * seq
                c0 = h * head_dim
                q = qkv[r0:r0 + seq, c0:c0 + head_dim]                 # (S, Dh), pre-scaled
                k = qkv[r0:r0 + seq, hidden + c0:hidden + c0 + head_dim]
                v = qkv[r0:r0 + seq, 2 * hidden + c0:2 * hidden + c0 + head_dim]

                # scores = q @ k^T  -> (S, S)
                s = jax.lax.dot_general(q, k, (((1,), (1,)), ((), ())),
                                        preferred_element_type=jnp.float32)
                s = s + bias_b
                s = s - jnp.max(s, axis=-1, keepdims=True)
                p = jnp.exp(s)
                p = p * pl.reciprocal(jnp.sum(p, axis=-1, keepdims=True), approx=True)

                ctx = jnp.dot(p, v, preferred_element_type=jnp.float32)        # (S, Dh)
                # head merge folded into the output projection:
                # attn_out = sum_h ctx_h @ o_w[h*Dh:(h+1)*Dh, :]
                contrib = jnp.dot(ctx, o_w_l[c0:c0 + head_dim, :],
                                  preferred_element_type=jnp.float32)          # (S, H)
                out_b = contrib if out_b is None else out_b + contrib
            attn_rows.append(out_b)

        attn_out = jnp.concatenate(attn_rows, axis=0) + o_b_ref[l]     # (B*S, H)
        h1 = _ln(attn_out + x, ln1_g_ref[l], ln1_b_ref[l])             # residual + LN

        ffn = _gelu(jnp.dot(h1, fc1_w_ref[l],
                            preferred_element_type=jnp.float32) + fc1_b_ref[l])
        ffn = jnp.dot(ffn, fc2_w_ref[l],
                      preferred_element_type=jnp.float32) + fc2_b_ref[l]
        x = _ln(ffn + h1, ln2_g_ref[l], ln2_b_ref[l])                  # residual + LN

    seq_ref[...] = x

    # pooler: tanh(cls @ W + b) on the [CLS] (first) token of each sequence
    cls = jnp.concatenate([x[b * seq:b * seq + 1, :] for b in range(batch)], axis=0)
    pooled_ref[...] = jnp.tanh(
        jnp.dot(cls, pool_w_ref[...], preferred_element_type=jnp.float32) + pool_b_ref[...])


# ------------------------------- model glue --------------------------------
def init_params(key):
    def dense_p(k, fan_in, fan_out):
        return (0.02 * jax.random.normal(k, (fan_in, fan_out), jnp.float32),
                jnp.zeros((fan_out,), jnp.float32))

    keys = jax.random.split(key, 4 + N_LAYERS)
    params = {
        "word_emb": 0.02 * jax.random.normal(keys[0], (VOCAB, HIDDEN), jnp.float32),
        "pos_emb": 0.02 * jax.random.normal(keys[1], (MAX_POS, HIDDEN), jnp.float32),
        "type_emb": 0.02 * jax.random.normal(keys[2], (TYPE_VOCAB, HIDDEN), jnp.float32),
        "emb_ln_g": jnp.ones((HIDDEN,), jnp.float32),
        "emb_ln_b": jnp.zeros((HIDDEN,), jnp.float32),
    }
    params["pooler_w"], params["pooler_b"] = dense_p(keys[3], HIDDEN, HIDDEN)

    layers = []
    for l in range(N_LAYERS):
        lk = jax.random.split(keys[4 + l], 6)
        layer = {}
        layer["q_w"], layer["q_b"] = dense_p(lk[0], HIDDEN, HIDDEN)
        layer["k_w"], layer["k_b"] = dense_p(lk[1], HIDDEN, HIDDEN)
        layer["v_w"], layer["v_b"] = dense_p(lk[2], HIDDEN, HIDDEN)
        layer["o_w"], layer["o_b"] = dense_p(lk[3], HIDDEN, HIDDEN)
        layer["ln1_g"] = jnp.ones((HIDDEN,), jnp.float32)
        layer["ln1_b"] = jnp.zeros((HIDDEN,), jnp.float32)
        layer["fc1_w"], layer["fc1_b"] = dense_p(lk[4], HIDDEN, INTERMEDIATE)
        layer["fc2_w"], layer["fc2_b"] = dense_p(lk[5], INTERMEDIATE, HIDDEN)
        layer["ln2_g"] = jnp.ones((HIDDEN,), jnp.float32)
        layer["ln2_b"] = jnp.zeros((HIDDEN,), jnp.float32)
        layers.append(layer)
    params["layers"] = layers
    return params


def pack_params(params):
    """Stack per-layer weights into [N_LAYERS, ...] arrays; fuse QKV; fold Q scale."""
    scale = 1.0 / math.sqrt(HEAD_DIM)
    layers = params["layers"]

    def stack(fn):
        return jnp.stack([fn(l) for l in layers], axis=0)

    qkv_w = stack(lambda l: jnp.concatenate([l["q_w"] * scale, l["k_w"], l["v_w"]], axis=1))
    qkv_b = stack(lambda l: jnp.concatenate([l["q_b"] * scale, l["k_b"], l["v_b"]])[None, :])
    o_w = stack(lambda l: l["o_w"])
    o_b = stack(lambda l: l["o_b"][None, :])
    ln1_g = stack(lambda l: l["ln1_g"][None, :])
    ln1_b = stack(lambda l: l["ln1_b"][None, :])
    fc1_w = stack(lambda l: l["fc1_w"])
    fc1_b = stack(lambda l: l["fc1_b"][None, :])
    fc2_w = stack(lambda l: l["fc2_w"])
    fc2_b = stack(lambda l: l["fc2_b"][None, :])
    ln2_g = stack(lambda l: l["ln2_g"][None, :])
    ln2_b = stack(lambda l: l["ln2_b"][None, :])

    return (params["emb_ln_g"][None, :], params["emb_ln_b"][None, :],
            qkv_w, qkv_b, o_w, o_b, ln1_g, ln1_b,
            fc1_w, fc1_b, fc2_w, fc2_b, ln2_g, ln2_b,
            params["pooler_w"], params["pooler_b"][None, :])


@jax.jit
def bert_forward(params, input_ids, attention_mask):
    """Returns (sequence_output [B,S,H], pooled_output [B,H]) like BertModel."""
    B, S = input_ids.shape

    # embedding gathers are tiny XLA glue; everything downstream runs in ONE kernel
    emb = jnp.take(params["word_emb"], input_ids, axis=0)
    emb = emb + params["pos_emb"][:S][None, :, :]
    emb = emb + params["type_emb"][0][None, None, :]      # token_type_ids == 0
    emb = emb.reshape(B * S, HIDDEN)

    # extended additive attention mask: 0 where attended, -10000 where masked
    ext_mask = (1.0 - attention_mask.astype(jnp.float32)) * -10000.0   # (B, S)

    packed = pack_params(params)
    kernel = partial(bert_fused_kernel, batch=B, seq=S, hidden=HIDDEN,
                     n_heads=N_HEADS, head_dim=HEAD_DIM, n_layers=N_LAYERS)

    seq_out, pooled = pl.pallas_call(
        kernel,
        out_shape=(jax.ShapeDtypeStruct((B * S, HIDDEN), jnp.float32),
                   jax.ShapeDtypeStruct((B, HIDDEN), jnp.float32)),
    )(emb, ext_mask, *packed)
    return seq_out.reshape(B, S, HIDDEN), pooled


# ----------------------- pure-JAX reference (checking) ----------------------
def _ln_ref(x, g, b):
    mu = jnp.mean(x, axis=-1, keepdims=True)
    var = jnp.mean((x - mu) ** 2, axis=-1, keepdims=True)
    return (x - mu) / jnp.sqrt(var + LN_EPS) * g + b


def _gelu_ref(x):
    return 0.5 * x * (1.0 + jnp.tanh(0.7978845608028654 * (x + 0.044715 * x ** 3)))


def bert_forward_ref(params, input_ids, attention_mask):
    B, S = input_ids.shape
    emb = jnp.take(params["word_emb"], input_ids, axis=0)
    emb = emb + params["pos_emb"][:S][None, :, :]
    emb = emb + params["type_emb"][0][None, None, :]
    x = _ln_ref(emb, params["emb_ln_g"], params["emb_ln_b"])
    bias = (1.0 - attention_mask.astype(jnp.float32)) * -10000.0
    for p in params["layers"]:
        q = x @ p["q_w"] + p["q_b"]
        k = x @ p["k_w"] + p["k_b"]
        v = x @ p["v_w"] + p["v_b"]

        def heads(t):
            return t.reshape(B, S, N_HEADS, HEAD_DIM).transpose(0, 2, 1, 3)

        s = jnp.einsum("bhqd,bhkd->bhqk", heads(q), heads(k)) / math.sqrt(HEAD_DIM)
        s = s + bias[:, None, None, :]
        pr = jax.nn.softmax(s, axis=-1)
        ctx = jnp.einsum("bhqk,bhkd->bhqd", pr, heads(v))
        ctx = ctx.transpose(0, 2, 1, 3).reshape(B, S, HIDDEN)
        attn_out = ctx @ p["o_w"] + p["o_b"]
        h1 = _ln_ref(attn_out + x, p["ln1_g"], p["ln1_b"])
        ffn = _gelu_ref(h1 @ p["fc1_w"] + p["fc1_b"])
        ffn = ffn @ p["fc2_w"] + p["fc2_b"]
        x = _ln_ref(ffn + h1, p["ln2_g"], p["ln2_b"])
    pooled = jnp.tanh(x[:, 0, :] @ params["pooler_w"] + params["pooler_b"])
    return x, pooled


if __name__ == "__main__":
    key = jax.random.PRNGKey(0)
    pkey, ikey = jax.random.split(key)
    params = init_params(pkey)

    input_ids = jax.random.randint(ikey, (BATCH, SEQ), 0, VOCAB, dtype=jnp.int32)
    # second example has two padding positions to exercise masking
    attention_mask = jnp.array([[1, 1, 1, 1, 1, 1, 1, 1],
                                [1, 1, 1, 1, 1, 1, 0, 0]], dtype=jnp.int32)

    seq_out, pooled = bert_forward(params, input_ids, attention_mask)
    jax.block_until_ready(seq_out)
    jax.block_until_ready(pooled)

    assert seq_out.shape == (BATCH, SEQ, HIDDEN)
    assert pooled.shape == (BATCH, HIDDEN)
    assert bool(jnp.all(jnp.isfinite(seq_out))) and bool(jnp.all(jnp.isfinite(pooled)))

    # sanity-check against a pure-JAX reference (loose tol covers approx reciprocal)
    ref_seq, ref_pooled = bert_forward_ref(params, input_ids, attention_mask)
    assert float(jnp.max(jnp.abs(seq_out - ref_seq))) < 5e-2
    assert float(jnp.max(jnp.abs(pooled - ref_pooled))) < 5e-2

    print("KERNEL_OK")
</pallas_src>

<mosaic_0001>
module attributes {stable_mosaic.version = 11 : i64} {
  func.func @bert_fused_kernel(%arg0: memref<16x32xf32, #tpu.memory_space<vmem>>, %arg1: memref<2x8xf32, #tpu.memory_space<vmem>>, %arg2: memref<1x32xf32, #tpu.memory_space<vmem>>, %arg3: memref<1x32xf32, #tpu.memory_space<vmem>>, %arg4: memref<2x32x96xf32, #tpu.memory_space<vmem>>, %arg5: memref<2x1x96xf32, #tpu.memory_space<vmem>>, %arg6: memref<2x32x32xf32, #tpu.memory_space<vmem>>, %arg7: memref<2x1x32xf32, #tpu.memory_space<vmem>>, %arg8: memref<2x1x32xf32, #tpu.memory_space<vmem>>, %arg9: memref<2x1x32xf32, #tpu.memory_space<vmem>>, %arg10: memref<2x32x64xf32, #tpu.memory_space<vmem>>, %arg11: memref<2x1x64xf32, #tpu.memory_space<vmem>>, %arg12: memref<2x64x32xf32, #tpu.memory_space<vmem>>, %arg13: memref<2x1x32xf32, #tpu.memory_space<vmem>>, %arg14: memref<2x1x32xf32, #tpu.memory_space<vmem>>, %arg15: memref<2x1x32xf32, #tpu.memory_space<vmem>>, %arg16: memref<32x32xf32, #tpu.memory_space<vmem>>, %arg17: memref<1x32xf32, #tpu.memory_space<vmem>>, %arg18: memref<16x32xf32, #tpu.memory_space<vmem>>, %arg19: memref<2x32xf32, #tpu.memory_space<vmem>>) attributes {dimension_semantics = [], scalar_prefetch = 0 : i64, scratch_operands = 0 : i64, tpu.core_type = #tpu.core_type<tc>} {
    %c0 = arith.constant 0 : index
    %c0_0 = arith.constant 0 : index
    %0 = vector.load %arg0[%c0, %c0_0] : memref<16x32xf32, #tpu.memory_space<vmem>>, vector<16x32xf32>
    %c0_1 = arith.constant 0 : index
    %c0_2 = arith.constant 0 : index
    %1 = vector.load %arg2[%c0_1, %c0_2] : memref<1x32xf32, #tpu.memory_space<vmem>>, vector<1x32xf32>
    %c0_3 = arith.constant 0 : index
    %c0_4 = arith.constant 0 : index
    %2 = vector.load %arg3[%c0_3, %c0_4] : memref<1x32xf32, #tpu.memory_space<vmem>>, vector<1x32xf32>
    %cst = arith.constant dense<0.000000e+00> : vector<16xf32>
    %3 = vector.multi_reduction <add>, %0, %cst [1] : vector<16x32xf32> to vector<16xf32>
    %4 = vector.shape_cast %3 : vector<16xf32> to vector<16x1xf32>
    %cst_5 = arith.constant 3.200000e+01 : f32
    %5 = vector.broadcast %cst_5 : f32 to vector<16x1xf32>
    %6 = arith.divf %4, %5 : vector<16x1xf32>
    %7 = vector.broadcast %6 : vector<16x1xf32> to vector<16x32xf32>
    %8 = arith.subf %0, %7 : vector<16x32xf32>
    %9 = arith.mulf %8, %8 : vector<16x32xf32>
    %cst_6 = arith.constant dense<0.000000e+00> : vector<16xf32>
    %10 = vector.multi_reduction <add>, %9, %cst_6 [1] : vector<16x32xf32> to vector<16xf32>
    %11 = vector.shape_cast %10 : vector<16xf32> to vector<16x1xf32>
    %cst_7 = arith.constant 3.200000e+01 : f32
    %12 = vector.broadcast %cst_7 : f32 to vector<16x1xf32>
    %13 = arith.divf %11, %12 : vector<16x1xf32>
    %cst_8 = arith.constant 9.99999996E-13 : f32
    %14 = vector.broadcast %cst_8 : f32 to vector<16x1xf32>
    %15 = arith.addf %13, %14 : vector<16x1xf32>
    %16 = math.rsqrt %15 : vector<16x1xf32>
    %17 = vector.broadcast %16 : vector<16x1xf32> to vector<16x32xf32>
    %18 = arith.mulf %8, %17 : vector<16x32xf32>
    %19 = vector.broadcast %1 : vector<1x32xf32> to vector<16x32xf32>
    %20 = arith.mulf %18, %19 : vector<16x32xf32>
    %21 = vector.broadcast %2 : vector<1x32xf32> to vector<16x32xf32>
    %22 = arith.addf %20, %21 : vector<16x32xf32>
    %c0_9 = arith.constant 0 : index
    %c0_10 = arith.constant 0 : index
    %23 = vector.load %arg1[%c0_9, %c0_10] : memref<2x8xf32, #tpu.memory_space<vmem>>, vector<2x8xf32>
    %c0_11 = arith.constant 0 : index
    %c0_12 = arith.constant 0 : index
    %c0_13 = arith.constant 0 : index
    %24 = vector.load %arg4[%c0_11, %c0_12, %c0_13] : memref<2x32x96xf32, #tpu.memory_space<vmem>>, vector<1x32x96xf32>
    %25 = vector.shape_cast %24 : vector<1x32x96xf32> to vector<32x96xf32>
    %cst_14 = arith.constant dense<0.000000e+00> : vector<16x96xf32>
    %26 = tpu.matmul %22, %25, %cst_14 {dimension_numbers = #tpu.dot_dimension_numbers<[1], [0], [0], [1], [0, 0, 1, 1], [], []>} : vector<16x32xf32>, vector<32x96xf32>, vector<16x96xf32> -> vector<16x96xf32>
    %c0_15 = arith.constant 0 : index
    %c0_16 = arith.constant 0 : index
    %c0_17 = arith.constant 0 : index
    %27 = vector.load %arg5[%c0_15, %c0_16, %c0_17] : memref<2x1x96xf32, #tpu.memory_space<vmem>>, vector<1x1x96xf32>
    %28 = vector.shape_cast %27 : vector<1x1x96xf32> to vector<1x96xf32>
    %29 = vector.broadcast %28 : vector<1x96xf32> to vector<16x96xf32>
    %30 = arith.addf %26, %29 : vector<16x96xf32>
    %c0_18 = arith.constant 0 : index
    %c0_19 = arith.constant 0 : index
    %c0_20 = arith.constant 0 : index
    %31 = vector.load %arg6[%c0_18, %c0_19, %c0_20] : memref<2x32x32xf32, #tpu.memory_space<vmem>>, vector<1x32x32xf32>
    %32 = vector.shape_cast %31 : vector<1x32x32xf32> to vector<32x32xf32>
    %33 = vector.extract_strided_slice %23 {offsets = [0, 0], sizes = [1, 8], strides = [1, 1]} : vector<2x8xf32> to vector<1x8xf32>
    %34 = vector.extract_strided_slice %30 {offsets = [0, 0], sizes = [8, 8], strides = [1, 1]} : vector<16x96xf32> to vector<8x8xf32>
    %35 = vector.extract_strided_slice %30 {offsets = [0, 32], sizes = [8, 8], strides = [1, 1]} : vector<16x96xf32> to vector<8x8xf32>
    %36 = vector.extract_strided_slice %30 {offsets = [0, 64], sizes = [8, 8], strides = [1, 1]} : vector<16x96xf32> to vector<8x8xf32>
    %cst_21 = arith.constant dense<0.000000e+00> : vector<8x8xf32>
    %37 = tpu.matmul %34, %35, %cst_21 {dimension_numbers = #tpu.dot_dimension_numbers<[1], [1], [0], [0], [0, 0, 1, 0], [], []>} : vector<8x8xf32>, vector<8x8xf32>, vector<8x8xf32> -> vector<8x8xf32>
    %38 = vector.broadcast %33 : vector<1x8xf32> to vector<8x8xf32>
    %39 = arith.addf %37, %38 : vector<8x8xf32>
    %cst_22 = arith.constant dense<0xFF800000> : vector<8xf32>
    %40 = vector.multi_reduction <maximumf>, %39, %cst_22 [1] : vector<8x8xf32> to vector<8xf32>
    %41 = vector.shape_cast %40 : vector<8xf32> to vector<8x1xf32>
    %42 = vector.broadcast %41 : vector<8x1xf32> to vector<8x8xf32>
    %43 = arith.subf %39, %42 : vector<8x8xf32>
    %44 = math.exp %43 : vector<8x8xf32>
    %cst_23 = arith.constant dense<0.000000e+00> : vector<8xf32>
    %45 = vector.multi_reduction <add>, %44, %cst_23 [1] : vector<8x8xf32> to vector<8xf32>
    %46 = vector.shape_cast %45 : vector<8xf32> to vector<8x1xf32>
    %47 = tpu.reciprocal %46 {approx = true} : vector<8x1xf32> -> vector<8x1xf32>
    %48 = vector.broadcast %47 : vector<8x1xf32> to vector<8x8xf32>
    %49 = arith.mulf %44, %48 : vector<8x8xf32>
    %cst_24 = arith.constant dense<0.000000e+00> : vector<8x8xf32>
    %50 = tpu.matmul %49, %36, %cst_24 {dimension_numbers = #tpu.dot_dimension_numbers<[1], [0], [0], [1], [0, 0, 1, 1], [], []>} : vector<8x8xf32>, vector<8x8xf32>, vector<8x8xf32> -> vector<8x8xf32>
    %51 = vector.extract_strided_slice %32 {offsets = [0, 0], sizes = [8, 32], strides = [1, 1]} : vector<32x32xf32> to vector<8x32xf32>
    %cst_25 = arith.constant dense<0.000000e+00> : vector<8x32xf32>
    %52 = tpu.matmul %50, %51, %cst_25 {dimension_numbers = #tpu.dot_dimension_numbers<[1], [0], [0], [1], [0, 0, 1, 1], [], []>} : vector<8x8xf32>, vector<8x32xf32>, vector<8x32xf32> -> vector<8x32xf32>
    %53 = vector.extract_strided_slice %30 {offsets = [0, 8], sizes = [8, 8], strides = [1, 1]} : vector<16x96xf32> to vector<8x8xf32>
    %54 = vector.extract_strided_slice %30 {offsets = [0, 40], sizes = [8, 8], strides = [1, 1]} : vector<16x96xf32> to vector<8x8xf32>
    %55 = vector.extract_strided_slice %30 {offsets = [0, 72], sizes = [8, 8], strides = [1, 1]} : vector<16x96xf32> to vector<8x8xf32>
    %cst_26 = arith.constant dense<0.000000e+00> : vector<8x8xf32>
    %56 = tpu.matmul %53, %54, %cst_26 {dimension_numbers = #tpu.dot_dimension_numbers<[1], [1], [0], [0], [0, 0, 1, 0], [], []>} : vector<8x8xf32>, vector<8x8xf32>, vector<8x8xf32> -> vector<8x8xf32>
    %57 = vector.broadcast %33 : vector<1x8xf32> to vector<8x8xf32>
    %58 = arith.addf %56, %57 : vector<8x8xf32>
    %cst_27 = arith.constant dense<0xFF800000> : vector<8xf32>
    %59 = vector.multi_reduction <maximumf>, %58, %cst_27 [1] : vector<8x8xf32> to vector<8xf32>
    %60 = vector.shape_cast %59 : vector<8xf32> to vector<8x1xf32>
    %61 = vector.broadcast %60 : vector<8x1xf32> to vector<8x8xf32>
    %62 = arith.subf %58, %61 : vector<8x8xf32>
    %63 = math.exp %62 : vector<8x8xf32>
    %cst_28 = arith.constant dense<0.000000e+00> : vector<8xf32>
    %64 = vector.multi_reduction <add>, %63, %cst_28 [1] : vector<8x8xf32> to vector<8xf32>
    %65 = vector.shape_cast %64 : vector<8xf32> to vector<8x1xf32>
    %66 = tpu.reciprocal %65 {approx = true} : vector<8x1xf32> -> vector<8x1xf32>
    %67 = vector.broadcast %66 : vector<8x1xf32> to vector<8x8xf32>
    %68 = arith.mulf %63, %67 : vector<8x8xf32>
    %cst_29 = arith.constant dense<0.000000e+00> : vector<8x8xf32>
    %69 = tpu.matmul %68, %55, %cst_29 {dimension_numbers = #tpu.dot_dimension_numbers<[1], [0], [0], [1], [0, 0, 1, 1], [], []>} : vector<8x8xf32>, vector<8x8xf32>, vector<8x8xf32> -> vector<8x8xf32>
    %70 = vector.extract_strided_slice %32 {offsets = [8, 0], sizes = [8, 32], strides = [1, 1]} : vector<32x32xf32> to vector<8x32xf32>
    %cst_30 = arith.constant dense<0.000000e+00> : vector<8x32xf32>
    %71 = tpu.matmul %69, %70, %cst_30 {dimension_numbers = #tpu.dot_dimension_numbers<[1], [0], [0], [1], [0, 0, 1, 1], [], []>} : vector<8x8xf32>, vector<8x32xf32>, vector<8x32xf32> -> vector<8x32xf32>
    %72 = arith.addf %52, %71 : vector<8x32xf32>
    %73 = vector.extract_strided_slice %30 {offsets = [0, 16], sizes = [8, 8], strides = [1, 1]} : vector<16x96xf32> to vector<8x8xf32>
    %74 = vector.extract_strided_slice %30 {offsets = [0, 48], sizes = [8, 8], strides = [1, 1]} : vector<16x96xf32> to vector<8x8xf32>
    %75 = vector.extract_strided_slice %30 {offsets = [0, 80], sizes = [8, 8], strides = [1, 1]} : vector<16x96xf32> to vector<8x8xf32>
    %cst_31 = arith.constant dense<0.000000e+00> : vector<8x8xf32>
    %76 = tpu.matmul %73, %74, %cst_31 {dimension_numbers = #tpu.dot_dimension_numbers<[1], [1], [0], [0], [0, 0, 1, 0], [], []>} : vector<8x8xf32>, vector<8x8xf32>, vector<8x8xf32> -> vector<8x8xf32>
    %77 = vector.broadcast %33 : vector<1x8xf32> to vector<8x8xf32>
    %78 = arith.addf %76, %77 : vector<8x8xf32>
    %cst_32 = arith.constant dense<0xFF800000> : vector<8xf32>
    %79 = vector.multi_reduction <maximumf>, %78, %cst_32 [1] : vector<8x8xf32> to vector<8xf32>
    %80 = vector.shape_cast %79 : vector<8xf32> to vector<8x1xf32>
    %81 = vector.broadcast %80 : vector<8x1xf32> to vector<8x8xf32>
    %82 = arith.subf %78, %81 : vector<8x8xf32>
    %83 = math.exp %82 : vector<8x8xf32>
    %cst_33 = arith.constant dense<0.000000e+00> : vector<8xf32>
    %84 = vector.multi_reduction <add>, %83, %cst_33 [1] : vector<8x8xf32> to vector<8xf32>
    %85 = vector.shape_cast %84 : vector<8xf32> to vector<8x1xf32>
    %86 = tpu.reciprocal %85 {approx = true} : vector<8x1xf32> -> vector<8x1xf32>
    %87 = vector.broadcast %86 : vector<8x1xf32> to vector<8x8xf32>
    %88 = arith.mulf %83, %87 : vector<8x8xf32>
    %cst_34 = arith.constant dense<0.000000e+00> : vector<8x8xf32>
    %89 = tpu.matmul %88, %75, %cst_34 {dimension_numbers = #tpu.dot_dimension_numbers<[1], [0], [0], [1], [0, 0, 1, 1], [], []>} : vector<8x8xf32>, vector<8x8xf32>, vector<8x8xf32> -> vector<8x8xf32>
    %90 = vector.extract_strided_slice %32 {offsets = [16, 0], sizes = [8, 32], strides = [1, 1]} : vector<32x32xf32> to vector<8x32xf32>
    %cst_35 = arith.constant dense<0.000000e+00> : vector<8x32xf32>
    %91 = tpu.matmul %89, %90, %cst_35 {dimension_numbers = #tpu.dot_dimension_numbers<[1], [0], [0], [1], [0, 0, 1, 1], [], []>} : vector<8x8xf32>, vector<8x32xf32>, vector<8x32xf32> -> vector<8x32xf32>
    %92 = arith.addf %72, %91 : vector<8x32xf32>
    %93 = vector.extract_strided_slice %30 {offsets = [0, 24], sizes = [8, 8], strides = [1, 1]} : vector<16x96xf32> to vector<8x8xf32>
    %94 = vector.extract_strided_slice %30 {offsets = [0, 56], sizes = [8, 8], strides = [1, 1]} : vector<16x96xf32> to vector<8x8xf32>
    %95 = vector.extract_strided_slice %30 {offsets = [0, 88], sizes = [8, 8], strides = [1, 1]} : vector<16x96xf32> to vector<8x8xf32>
    %cst_36 = arith.constant dense<0.000000e+00> : vector<8x8xf32>
    %96 = tpu.matmul %93, %94, %cst_36 {dimension_numbers = #tpu.dot_dimension_numbers<[1], [1], [0], [0], [0, 0, 1, 0], [], []>} : vector<8x8xf32>, vector<8x8xf32>, vector<8x8xf32> -> vector<8x8xf32>
    %97 = vector.broadcast %33 : vector<1x8xf32> to vector<8x8xf32>
    %98 = arith.addf %96, %97 : vector<8x8xf32>
    %cst_37 = arith.constant dense<0xFF800000> : vector<8xf32>
    %99 = vector.multi_reduction <maximumf>, %98, %cst_37 [1] : vector<8x8xf32> to vector<8xf32>
    %100 = vector.shape_cast %99 : vector<8xf32> to vector<8x1xf32>
    %101 = vector.broadcast %100 : vector<8x1xf32> to vector<8x8xf32>
    %102 = arith.subf %98, %101 : vector<8x8xf32>
    %103 = math.exp %102 : vector<8x8xf32>
    %cst_38 = arith.constant dense<0.000000e+00> : vector<8xf32>
    %104 = vector.multi_reduction <add>, %103, %cst_38 [1] : vector<8x8xf32> to vector<8xf32>
    %105 = vector.shape_cast %104 : vector<8xf32> to vector<8x1xf32>
    %106 = tpu.reciprocal %105 {approx = true} : vector<8x1xf32> -> vector<8x1xf32>
    %107 = vector.broadcast %106 : vector<8x1xf32> to vector<8x8xf32>
    %108 = arith.mulf %103, %107 : vector<8x8xf32>
    %cst_39 = arith.constant dense<0.000000e+00> : vector<8x8xf32>
    %109 = tpu.matmul %108, %95, %cst_39 {dimension_numbers = #tpu.dot_dimension_numbers<[1], [0], [0], [1], [0, 0, 1, 1], [], []>} : vector<8x8xf32>, vector<8x8xf32>, vector<8x8xf32> -> vector<8x8xf32>
    %110 = vector.extract_strided_slice %32 {offsets = [24, 0], sizes = [8, 32], strides = [1, 1]} : vector<32x32xf32> to vector<8x32xf32>
    %cst_40 = arith.constant dense<0.000000e+00> : vector<8x32xf32>
    %111 = tpu.matmul %109, %110, %cst_40 {dimension_numbers = #tpu.dot_dimension_numbers<[1], [0], [0], [1], [0, 0, 1, 1], [], []>} : vector<8x8xf32>, vector<8x32xf32>, vector<8x32xf32> -> vector<8x32xf32>
    %112 = arith.addf %92, %111 : vector<8x32xf32>
    %113 = vector.extract_strided_slice %23 {offsets = [1, 0], sizes = [1, 8], strides = [1, 1]} : vector<2x8xf32> to vector<1x8xf32>
    %114 = vector.extract_strided_slice %30 {offsets = [8, 0], sizes = [8, 8], strides = [1, 1]} : vector<16x96xf32> to vector<8x8xf32>
    %115 = vector.extract_strided_slice %30 {offsets = [8, 32], sizes = [8, 8], strides = [1, 1]} : vector<16x96xf32> to vector<8x8xf32>
    %116 = vector.extract_strided_slice %30 {offsets = [8, 64], sizes = [8, 8], strides = [1, 1]} : vector<16x96xf32> to vector<8x8xf32>
    %cst_41 = arith.constant dense<0.000000e+00> : vector<8x8xf32>
    %117 = tpu.matmul %114, %115, %cst_41 {dimension_numbers = #tpu.dot_dimension_numbers<[1], [1], [0], [0], [0, 0, 1, 0], [], []>} : vector<8x8xf32>, vector<8x8xf32>, vector<8x8xf32> -> vector<8x8xf32>
    %118 = vector.broadcast %113 : vector<1x8xf32> to vector<8x8xf32>
    %119 = arith.addf %117, %118 : vector<8x8xf32>
    %cst_42 = arith.constant dense<0xFF800000> : vector<8xf32>
    %120 = vector.multi_reduction <maximumf>, %119, %cst_42 [1] : vector<8x8xf32> to vector<8xf32>
    %121 = vector.shape_cast %120 : vector<8xf32> to vector<8x1xf32>
    %122 = vector.broadcast %121 : vector<8x1xf32> to vector<8x8xf32>
    %123 = arith.subf %119, %122 : vector<8x8xf32>
    %124 = math.exp %123 : vector<8x8xf32>
    %cst_43 = arith.constant dense<0.000000e+00> : vector<8xf32>
    %125 = vector.multi_reduction <add>, %124, %cst_43 [1] : vector<8x8xf32> to vector<8xf32>
    %126 = vector.shape_cast %125 : vector<8xf32> to vector<8x1xf32>
    %127 = tpu.reciprocal %126 {approx = true} : vector<8x1xf32> -> vector<8x1xf32>
    %128 = vector.broadcast %127 : vector<8x1xf32> to vector<8x8xf32>
    %129 = arith.mulf %124, %128 : vector<8x8xf32>
    %cst_44 = arith.constant dense<0.000000e+00> : vector<8x8xf32>
    %130 = tpu.matmul %129, %116, %cst_44 {dimension_numbers = #tpu.dot_dimension_numbers<[1], [0], [0], [1], [0, 0, 1, 1], [], []>} : vector<8x8xf32>, vector<8x8xf32>, vector<8x8xf32> -> vector<8x8xf32>
    %131 = vector.extract_strided_slice %32 {offsets = [0, 0], sizes = [8, 32], strides = [1, 1]} : vector<32x32xf32> to vector<8x32xf32>
    %cst_45 = arith.constant dense<0.000000e+00> : vector<8x32xf32>
    %132 = tpu.matmul %130, %131, %cst_45 {dimension_numbers = #tpu.dot_dimension_numbers<[1], [0], [0], [1], [0, 0, 1, 1], [], []>} : vector<8x8xf32>, vector<8x32xf32>, vector<8x32xf32> -> vector<8x32xf32>
    %133 = vector.extract_strided_slice %30 {offsets = [8, 8], sizes = [8, 8], strides = [1, 1]} : vector<16x96xf32> to vector<8x8xf32>
    %134 = vector.extract_strided_slice %30 {offsets = [8, 40], sizes = [8, 8], strides = [1, 1]} : vector<16x96xf32> to vector<8x8xf32>
    %135 = vector.extract_strided_slice %30 {offsets = [8, 72], sizes = [8, 8], strides = [1, 1]} : vector<16x96xf32> to vector<8x8xf32>
    %cst_46 = arith.constant dense<0.000000e+00> : vector<8x8xf32>
    %136 = tpu.matmul %133, %134, %cst_46 {dimension_numbers = #tpu.dot_dimension_numbers<[1], [1], [0], [0], [0, 0, 1, 0], [], []>} : vector<8x8xf32>, vector<8x8xf32>, vector<8x8xf32> -> vector<8x8xf32>
    %137 = vector.broadcast %113 : vector<1x8xf32> to vector<8x8xf32>
    %138 = arith.addf %136, %137 : vector<8x8xf32>
    %cst_47 = arith.constant dense<0xFF800000> : vector<8xf32>
    %139 = vector.multi_reduction <maximumf>, %138, %cst_47 [1] : vector<8x8xf32> to vector<8xf32>
    %140 = vector.shape_cast %139 : vector<8xf32> to vector<8x1xf32>
    %141 = vector.broadcast %140 : vector<8x1xf32> to vector<8x8xf32>
    %142 = arith.subf %138, %141 : vector<8x8xf32>
    %143 = math.exp %142 : vector<8x8xf32>
    %cst_48 = arith.constant dense<0.000000e+00> : vector<8xf32>
    %144 = vector.multi_reduction <add>, %143, %cst_48 [1] : vector<8x8xf32> to vector<8xf32>
    %145 = vector.shape_cast %144 : vector<8xf32> to vector<8x1xf32>
    %146 = tpu.reciprocal %145 {approx = true} : vector<8x1xf32> -> vector<8x1xf32>
    %147 = vector.broadcast %146 : vector<8x1xf32> to vector<8x8xf32>
    %148 = arith.mulf %143, %147 : vector<8x8xf32>
    %cst_49 = arith.constant dense<0.000000e+00> : vector<8x8xf32>
    %149 = tpu.matmul %148, %135, %cst_49 {dimension_numbers = #tpu.dot_dimension_numbers<[1], [0], [0], [1], [0, 0, 1, 1], [], []>} : vector<8x8xf32>, vector<8x8xf32>, vector<8x8xf32> -> vector<8x8xf32>
    %150 = vector.extract_strided_slice %32 {offsets = [8, 0], sizes = [8, 32], strides = [1, 1]} : vector<32x32xf32> to vector<8x32xf32>
    %cst_50 = arith.constant dense<0.000000e+00> : vector<8x32xf32>
    %151 = tpu.matmul %149, %150, %cst_50 {dimension_numbers = #tpu.dot_dimension_numbers<[1], [0], [0], [1], [0, 0, 1, 1], [], []>} : vector<8x8xf32>, vector<8x32xf32>, vector<8x32xf32> -> vector<8x32xf32>
    %152 = arith.addf %132, %151 : vector<8x32xf32>
    %153 = vector.extract_strided_slice %30 {offsets = [8, 16], sizes = [8, 8], strides = [1, 1]} : vector<16x96xf32> to vector<8x8xf32>
    %154 = vector.extract_strided_slice %30 {offsets = [8, 48], sizes = [8, 8], strides = [1, 1]} : vector<16x96xf32> to vector<8x8xf32>
    %155 = vector.extract_strided_slice %30 {offsets = [8, 80], sizes = [8, 8], strides = [1, 1]} : vector<16x96xf32> to vector<8x8xf32>
    %cst_51 = arith.constant dense<0.000000e+00> : vector<8x8xf32>
    %156 = tpu.matmul %153, %154, %cst_51 {dimension_numbers = #tpu.dot_dimension_numbers<[1], [1], [0], [0], [0, 0, 1, 0], [], []>} : vector<8x8xf32>, vector<8x8xf32>, vector<8x8xf32> -> vector<8x8xf32>
    %157 = vector.broadcast %113 : vector<1x8xf32> to vector<8x8xf32>
    %158 = arith.addf %156, %157 : vector<8x8xf32>
    %cst_52 = arith.constant dense<0xFF800000> : vector<8xf32>
    %159 = vector.multi_reduction <maximumf>, %158, %cst_52 [1] : vector<8x8xf32> to vector<8xf32>
    %160 = vector.shape_cast %159 : vector<8xf32> to vector<8x1xf32>
    %161 = vector.broadcast %160 : vector<8x1xf32> to vector<8x8xf32>
    %162 = arith.subf %158, %161 : vector<8x8xf32>
    %163 = math.exp %162 : vector<8x8xf32>
    %cst_53 = arith.constant dense<0.000000e+00> : vector<8xf32>
    %164 = vector.multi_reduction <add>, %163, %cst_53 [1] : vector<8x8xf32> to vector<8xf32>
    %165 = vector.shape_cast %164 : vector<8xf32> to vector<8x1xf32>
    %166 = tpu.reciprocal %165 {approx = true} : vector<8x1xf32> -> vector<8x1xf32>
    %167 = vector.broadcast %166 : vector<8x1xf32> to vector<8x8xf32>
    %168 = arith.mulf %163, %167 : vector<8x8xf32>
    %cst_54 = arith.constant dense<0.000000e+00> : vector<8x8xf32>
    %169 = tpu.matmul %168, %155, %cst_54 {dimension_numbers = #tpu.dot_dimension_numbers<[1], [0], [0], [1], [0, 0, 1, 1], [], []>} : vector<8x8xf32>, vector<8x8xf32>, vector<8x8xf32> -> vector<8x8xf32>
    %170 = vector.extract_strided_slice %32 {offsets = [16, 0], sizes = [8, 32], strides = [1, 1]} : vector<32x32xf32> to vector<8x32xf32>
    %cst_55 = arith.constant dense<0.000000e+00> : vector<8x32xf32>
    %171 = tpu.matmul %169, %170, %cst_55 {dimension_numbers = #tpu.dot_dimension_numbers<[1], [0], [0], [1], [0, 0, 1, 1], [], []>} : vector<8x8xf32>, vector<8x32xf32>, vector<8x32xf32> -> vector<8x32xf32>
    %172 = arith.addf %152, %171 : vector<8x32xf32>
    %173 = vector.extract_strided_slice %30 {offsets = [8, 24], sizes = [8, 8], strides = [1, 1]} : vector<16x96xf32> to vector<8x8xf32>
    %174 = vector.extract_strided_slice %30 {offsets = [8, 56], sizes = [8, 8], strides = [1, 1]} : vector<16x96xf32> to vector<8x8xf32>
    %175 = vector.extract_strided_slice %30 {offsets = [8, 88], sizes = [8, 8], strides = [1, 1]} : vector<16x96xf32> to vector<8x8xf32>
    %cst_56 = arith.constant dense<0.000000e+00> : vector<8x8xf32>
    %176 = tpu.matmul %173, %174, %cst_56 {dimension_numbers = #tpu.dot_dimension_numbers<[1], [1], [0], [0], [0, 0, 1, 0], [], []>} : vector<8x8xf32>, vector<8x8xf32>, vector<8x8xf32> -> vector<8x8xf32>
    %177 = vector.broadcast %113 : vector<1x8xf32> to vector<8x8xf32>
    %178 = arith.addf %176, %177 : vector<8x8xf32>
    %cst_57 = arith.constant dense<0xFF800000> : vector<8xf32>
    %179 = vector.multi_reduction <maximumf>, %178, %cst_57 [1] : vector<8x8xf32> to vector<8xf32>
    %180 = vector.shape_cast %179 : vector<8xf32> to vector<8x1xf32>
    %181 = vector.broadcast %180 : vector<8x1xf32> to vector<8x8xf32>
    %182 = arith.subf %178, %181 : vector<8x8xf32>
    %183 = math.exp %182 : vector<8x8xf32>
    %cst_58 = arith.constant dense<0.000000e+00> : vector<8xf32>
    %184 = vector.multi_reduction <add>, %183, %cst_58 [1] : vector<8x8xf32> to vector<8xf32>
    %185 = vector.shape_cast %184 : vector<8xf32> to vector<8x1xf32>
    %186 = tpu.reciprocal %185 {approx = true} : vector<8x1xf32> -> vector<8x1xf32>
    %187 = vector.broadcast %186 : vector<8x1xf32> to vector<8x8xf32>
    %188 = arith.mulf %183, %187 : vector<8x8xf32>
    %cst_59 = arith.constant dense<0.000000e+00> : vector<8x8xf32>
    %189 = tpu.matmul %188, %175, %cst_59 {dimension_numbers = #tpu.dot_dimension_numbers<[1], [0], [0], [1], [0, 0, 1, 1], [], []>} : vector<8x8xf32>, vector<8x8xf32>, vector<8x8xf32> -> vector<8x8xf32>
    %190 = vector.extract_strided_slice %32 {offsets = [24, 0], sizes = [8, 32], strides = [1, 1]} : vector<32x32xf32> to vector<8x32xf32>
    %cst_60 = arith.constant dense<0.000000e+00> : vector<8x32xf32>
    %191 = tpu.matmul %189, %190, %cst_60 {dimension_numbers = #tpu.dot_dimension_numbers<[1], [0], [0], [1], [0, 0, 1, 1], [], []>} : vector<8x8xf32>, vector<8x32xf32>, vector<8x32xf32> -> vector<8x32xf32>
    %192 = arith.addf %172, %191 : vector<8x32xf32>
    %193 = tpu.concatenate %112, %192 in 0 : vector<8x32xf32>, vector<8x32xf32> -> vector<16x32xf32>
    %c0_61 = arith.constant 0 : index
    %c0_62 = arith.constant 0 : index
    %c0_63 = arith.constant 0 : index
    %194 = vector.load %arg7[%c0_61, %c0_62, %c0_63] : memref<2x1x32xf32, #tpu.memory_space<vmem>>, vector<1x1x32xf32>
    %195 = vector.shape_cast %194 : vector<1x1x32xf32> to vector<1x32xf32>
    %196 = vector.broadcast %195 : vector<1x32xf32> to vector<16x32xf32>
    %197 = arith.addf %193, %196 : vector<16x32xf32>
    %198 = arith.addf %197, %22 : vector<16x32xf32>
    %c0_64 = arith.constant 0 : index
    %c0_65 = arith.constant 0 : index
    %c0_66 = arith.constant 0 : index
    %199 = vector.load %arg8[%c0_64, %c0_65, %c0_66] : memref<2x1x32xf32, #tpu.memory_space<vmem>>, vector<1x1x32xf32>
    %200 = vector.shape_cast %199 : vector<1x1x32xf32> to vector<1x32xf32>
    %c0_67 = arith.constant 0 : index
    %c0_68 = arith.constant 0 : index
    %c0_69 = arith.constant 0 : index
    %201 = vector.load %arg9[%c0_67, %c0_68, %c0_69] : memref<2x1x32xf32, #tpu.memory_space<vmem>>, vector<1x1x32xf32>
    %202 = vector.shape_cast %201 : vector<1x1x32xf32> to vector<1x32xf32>
    %cst_70 = arith.constant dense<0.000000e+00> : vector<16xf32>
    %203 = vector.multi_reduction <add>, %198, %cst_70 [1] : vector<16x32xf32> to vector<16xf32>
    %204 = vector.shape_cast %203 : vector<16xf32> to vector<16x1xf32>
    %cst_71 = arith.constant 3.200000e+01 : f32
    %205 = vector.broadcast %cst_71 : f32 to vector<16x1xf32>
    %206 = arith.divf %204, %205 : vector<16x1xf32>
    %207 = vector.broadcast %206 : vector<16x1xf32> to vector<16x32xf32>
    %208 = arith.subf %198, %207 : vector<16x32xf32>
    %209 = arith.mulf %208, %208 : vector<16x32xf32>
    %cst_72 = arith.constant dense<0.000000e+00> : vector<16xf32>
    %210 = vector.multi_reduction <add>, %209, %cst_72 [1] : vector<16x32xf32> to vector<16xf32>
    %211 = vector.shape_cast %210 : vector<16xf32> to vector<16x1xf32>
    %cst_73 = arith.constant 3.200000e+01 : f32
    %212 = vector.broadcast %cst_73 : f32 to vector<16x1xf32>
    %213 = arith.divf %211, %212 : vector<16x1xf32>
    %cst_74 = arith.constant 9.99999996E-13 : f32
    %214 = vector.broadcast %cst_74 : f32 to vector<16x1xf32>
    %215 = arith.addf %213, %214 : vector<16x1xf32>
    %216 = math.rsqrt %215 : vector<16x1xf32>
    %217 = vector.broadcast %216 : vector<16x1xf32> to vector<16x32xf32>
    %218 = arith.mulf %208, %217 : vector<16x32xf32>
    %219 = vector.broadcast %200 : vector<1x32xf32> to vector<16x32xf32>
    %220 = arith.mulf %218, %219 : vector<16x32xf32>
    %221 = vector.broadcast %202 : vector<1x32xf32> to vector<16x32xf32>
    %222 = arith.addf %220, %221 : vector<16x32xf32>
    %c0_75 = arith.constant 0 : index
    %c0_76 = arith.constant 0 : index
    %c0_77 = arith.constant 0 : index
    %223 = vector.load %arg10[%c0_75, %c0_76, %c0_77] : memref<2x32x64xf32, #tpu.memory_space<vmem>>, vector<1x32x64xf32>
    %224 = vector.shape_cast %223 : vector<1x32x64xf32> to vector<32x64xf32>
    %cst_78 = arith.constant dense<0.000000e+00> : vector<16x64xf32>
    %225 = tpu.matmul %222, %224, %cst_78 {dimension_numbers = #tpu.dot_dimension_numbers<[1], [0], [0], [1], [0, 0, 1, 1], [], []>} : vector<16x32xf32>, vector<32x64xf32>, vector<16x64xf32> -> vector<16x64xf32>
    %c0_79 = arith.constant 0 : index
    %c0_80 = arith.constant 0 : index
    %c0_81 = arith.constant 0 : index
    %226 = vector.load %arg11[%c0_79, %c0_80, %c0_81] : memref<2x1x64xf32, #tpu.memory_space<vmem>>, vector<1x1x64xf32>
    %227 = vector.shape_cast %226 : vector<1x1x64xf32> to vector<1x64xf32>
    %228 = vector.broadcast %227 : vector<1x64xf32> to vector<16x64xf32>
    %229 = arith.addf %225, %228 : vector<16x64xf32>
    %cst_82 = arith.constant 5.000000e-01 : f32
    %230 = vector.broadcast %cst_82 : f32 to vector<16x64xf32>
    %231 = arith.mulf %230, %229 : vector<16x64xf32>
    %cst_83 = arith.constant 4.471500e-02 : f32
    %232 = vector.broadcast %cst_83 : f32 to vector<16x64xf32>
    %233 = arith.mulf %232, %229 : vector<16x64xf32>
    %234 = arith.mulf %233, %229 : vector<16x64xf32>
    %235 = arith.mulf %234, %229 : vector<16x64xf32>
    %236 = arith.addf %229, %235 : vector<16x64xf32>
    %cst_84 = arith.constant 0.797884583 : f32
    %237 = vector.broadcast %cst_84 : f32 to vector<16x64xf32>
    %238 = arith.mulf %237, %236 : vector<16x64xf32>
    %239 = math.tanh %238 : vector<16x64xf32>
    %cst_85 = arith.constant 1.000000e+00 : f32
    %240 = vector.broadcast %cst_85 : f32 to vector<16x64xf32>
    %241 = arith.addf %240, %239 : vector<16x64xf32>
    %242 = arith.mulf %231, %241 : vector<16x64xf32>
    %c0_86 = arith.constant 0 : index
    %c0_87 = arith.constant 0 : index
    %c0_88 = arith.constant 0 : index
    %243 = vector.load %arg12[%c0_86, %c0_87, %c0_88] : memref<2x64x32xf32, #tpu.memory_space<vmem>>, vector<1x64x32xf32>
    %244 = vector.shape_cast %243 : vector<1x64x32xf32> to vector<64x32xf32>
    %cst_89 = arith.constant dense<0.000000e+00> : vector<16x32xf32>
    %245 = tpu.matmul %242, %244, %cst_89 {dimension_numbers = #tpu.dot_dimension_numbers<[1], [0], [0], [1], [0, 0, 1, 1], [], []>} : vector<16x64xf32>, vector<64x32xf32>, vector<16x32xf32> -> vector<16x32xf32>
    %c0_90 = arith.constant 0 : index
    %c0_91 = arith.constant 0 : index
    %c0_92 = arith.constant 0 : index
    %246 = vector.load %arg13[%c0_90, %c0_91, %c0_92] : memref<2x1x32xf32, #tpu.memory_space<vmem>>, vector<1x1x32xf32>
    %247 = vector.shape_cast %246 : vector<1x1x32xf32> to vector<1x32xf32>
    %248 = vector.broadcast %247 : vector<1x32xf32> to vector<16x32xf32>
    %249 = arith.addf %245, %248 : vector<16x32xf32>
    %250 = arith.addf %249, %222 : vector<16x32xf32>
    %c0_93 = arith.constant 0 : index
    %c0_94 = arith.constant 0 : index
    %c0_95 = arith.constant 0 : index
    %251 = vector.load %arg14[%c0_93, %c0_94, %c0_95] : memref<2x1x32xf32, #tpu.memory_space<vmem>>, vector<1x1x32xf32>
    %252 = vector.shape_cast %251 : vector<1x1x32xf32> to vector<1x32xf32>
    %c0_96 = arith.constant 0 : index
    %c0_97 = arith.constant 0 : index
    %c0_98 = arith.constant 0 : index
    %253 = vector.load %arg15[%c0_96, %c0_97, %c0_98] : memref<2x1x32xf32, #tpu.memory_space<vmem>>, vector<1x1x32xf32>
    %254 = vector.shape_cast %253 : vector<1x1x32xf32> to vector<1x32xf32>
    %cst_99 = arith.constant dense<0.000000e+00> : vector<16xf32>
    %255 = vector.multi_reduction <add>, %250, %cst_99 [1] : vector<16x32xf32> to vector<16xf32>
    %256 = vector.shape_cast %255 : vector<16xf32> to vector<16x1xf32>
    %cst_100 = arith.constant 3.200000e+01 : f32
    %257 = vector.broadcast %cst_100 : f32 to vector<16x1xf32>
    %258 = arith.divf %256, %257 : vector<16x1xf32>
    %259 = vector.broadcast %258 : vector<16x1xf32> to vector<16x32xf32>
    %260 = arith.subf %250, %259 : vector<16x32xf32>
    %261 = arith.mulf %260, %260 : vector<16x32xf32>
    %cst_101 = arith.constant dense<0.000000e+00> : vector<16xf32>
    %262 = vector.multi_reduction <add>, %261, %cst_101 [1] : vector<16x32xf32> to vector<16xf32>
    %263 = vector.shape_cast %262 : vector<16xf32> to vector<16x1xf32>
    %cst_102 = arith.constant 3.200000e+01 : f32
    %264 = vector.broadcast %cst_102 : f32 to vector<16x1xf32>
    %265 = arith.divf %263, %264 : vector<16x1xf32>
    %cst_103 = arith.constant 9.99999996E-13 : f32
    %266 = vector.broadcast %cst_103 : f32 to vector<16x1xf32>
    %267 = arith.addf %265, %266 : vector<16x1xf32>
    %268 = math.rsqrt %267 : vector<16x1xf32>
    %269 = vector.broadcast %268 : vector<16x1xf32> to vector<16x32xf32>
    %270 = arith.mulf %260, %269 : vector<16x32xf32>
    %271 = vector.broadcast %252 : vector<1x32xf32> to vector<16x32xf32>
    %272 = arith.mulf %270, %271 : vector<16x32xf32>
    %273 = vector.broadcast %254 : vector<1x32xf32> to vector<16x32xf32>
    %274 = arith.addf %272, %273 : vector<16x32xf32>
    %c1 = arith.constant 1 : index
    %c0_104 = arith.constant 0 : index
    %c0_105 = arith.constant 0 : index
    %275 = vector.load %arg4[%c1, %c0_104, %c0_105] : memref<2x32x96xf32, #tpu.memory_space<vmem>>, vector<1x32x96xf32>
    %276 = vector.shape_cast %275 : vector<1x32x96xf32> to vector<32x96xf32>
    %cst_106 = arith.constant dense<0.000000e+00> : vector<16x96xf32>
    %277 = tpu.matmul %274, %276, %cst_106 {dimension_numbers = #tpu.dot_dimension_numbers<[1], [0], [0], [1], [0, 0, 1, 1], [], []>} : vector<16x32xf32>, vector<32x96xf32>, vector<16x96xf32> -> vector<16x96xf32>
    %c1_107 = arith.constant 1 : index
    %c0_108 = arith.constant 0 : index
    %c0_109 = arith.constant 0 : index
    %278 = vector.load %arg5[%c1_107, %c0_108, %c0_109] : memref<2x1x96xf32, #tpu.memory_space<vmem>>, vector<1x1x96xf32>
    %279 = vector.shape_cast %278 : vector<1x1x96xf32> to vector<1x96xf32>
    %280 = vector.broadcast %279 : vector<1x96xf32> to vector<16x96xf32>
    %281 = arith.addf %277, %280 : vector<16x96xf32>
    %c1_110 = arith.constant 1 : index
    %c0_111 = arith.constant 0 : index
    %c0_112 = arith.constant 0 : index
    %282 = vector.load %arg6[%c1_110, %c0_111, %c0_112] : memref<2x32x32xf32, #tpu.memory_space<vmem>>, vector<1x32x32xf32>
    %283 = vector.shape_cast %282 : vector<1x32x32xf32> to vector<32x32xf32>
    %284 = vector.extract_strided_slice %23 {offsets = [0, 0], sizes = [1, 8], strides = [1, 1]} : vector<2x8xf32> to vector<1x8xf32>
    %285 = vector.extract_strided_slice %281 {offsets = [0, 0], sizes = [8, 8], strides = [1, 1]} : vector<16x96xf32> to vector<8x8xf32>
    %286 = vector.extract_strided_slice %281 {offsets = [0, 32], sizes = [8, 8], strides = [1, 1]} : vector<16x96xf32> to vector<8x8xf32>
    %287 = vector.extract_strided_slice %281 {offsets = [0, 64], sizes = [8, 8], strides = [1, 1]} : vector<16x96xf32> to vector<8x8xf32>
    %cst_113 = arith.constant dense<0.000000e+00> : vector<8x8xf32>
    %288 = tpu.matmul %285, %286, %cst_113 {dimension_numbers = #tpu.dot_dimension_numbers<[1], [1], [0], [0], [0, 0, 1, 0], [], []>} : vector<8x8xf32>, vector<8x8xf32>, vector<8x8xf32> -> vector<8x8xf32>
    %289 = vector.broadcast %284 : vector<1x8xf32> to vector<8x8xf32>
    %290 = arith.addf %288, %289 : vector<8x8xf32>
    %cst_114 = arith.constant dense<0xFF800000> : vector<8xf32>
    %291 = vector.multi_reduction <maximumf>, %290, %cst_114 [1] : vector<8x8xf32> to vector<8xf32>
    %292 = vector.shape_cast %291 : vector<8xf32> to vector<8x1xf32>
    %293 = vector.broadcast %292 : vector<8x1xf32> to vector<8x8xf32>
    %294 = arith.subf %290, %293 : vector<8x8xf32>
    %295 = math.exp %294 : vector<8x8xf32>
    %cst_115 = arith.constant dense<0.000000e+00> : vector<8xf32>
    %296 = vector.multi_reduction <add>, %295, %cst_115 [1] : vector<8x8xf32> to vector<8xf32>
    %297 = vector.shape_cast %296 : vector<8xf32> to vector<8x1xf32>
    %298 = tpu.reciprocal %297 {approx = true} : vector<8x1xf32> -> vector<8x1xf32>
    %299 = vector.broadcast %298 : vector<8x1xf32> to vector<8x8xf32>
    %300 = arith.mulf %295, %299 : vector<8x8xf32>
    %cst_116 = arith.constant dense<0.000000e+00> : vector<8x8xf32>
    %301 = tpu.matmul %300, %287, %cst_116 {dimension_numbers = #tpu.dot_dimension_numbers<[1], [0], [0], [1], [0, 0, 1, 1], [], []>} : vector<8x8xf32>, vector<8x8xf32>, vector<8x8xf32> -> vector<8x8xf32>
    %302 = vector.extract_strided_slice %283 {offsets = [0, 0], sizes = [8, 32], strides = [1, 1]} : vector<32x32xf32> to vector<8x32xf32>
    %cst_117 = arith.constant dense<0.000000e+00> : vector<8x32xf32>
    %303 = tpu.matmul %301, %302, %cst_117 {dimension_numbers = #tpu.dot_dimension_numbers<[1], [0], [0], [1], [0, 0, 1, 1], [], []>} : vector<8x8xf32>, vector<8x32xf32>, vector<8x32xf32> -> vector<8x32xf32>
    %304 = vector.extract_strided_slice %281 {offsets = [0, 8], sizes = [8, 8], strides = [1, 1]} : vector<16x96xf32> to vector<8x8xf32>
    %305 = vector.extract_strided_slice %281 {offsets = [0, 40], sizes = [8, 8], strides = [1, 1]} : vector<16x96xf32> to vector<8x8xf32>
    %306 = vector.extract_strided_slice %281 {offsets = [0, 72], sizes = [8, 8], strides = [1, 1]} : vector<16x96xf32> to vector<8x8xf32>
    %cst_118 = arith.constant dense<0.000000e+00> : vector<8x8xf32>
    %307 = tpu.matmul %304, %305, %cst_118 {dimension_numbers = #tpu.dot_dimension_numbers<[1], [1], [0], [0], [0, 0, 1, 0], [], []>} : vector<8x8xf32>, vector<8x8xf32>, vector<8x8xf32> -> vector<8x8xf32>
    %308 = vector.broadcast %284 : vector<1x8xf32> to vector<8x8xf32>
    %309 = arith.addf %307, %308 : vector<8x8xf32>
    %cst_119 = arith.constant dense<0xFF800000> : vector<8xf32>
    %310 = vector.multi_reduction <maximumf>, %309, %cst_119 [1] : vector<8x8xf32> to vector<8xf32>
    %311 = vector.shape_cast %310 : vector<8xf32> to vector<8x1xf32>
    %312 = vector.broadcast %311 : vector<8x1xf32> to vector<8x8xf32>
    %313 = arith.subf %309, %312 : vector<8x8xf32>
    %314 = math.exp %313 : vector<8x8xf32>
    %cst_120 = arith.constant dense<0.000000e+00> : vector<8xf32>
    %315 = vector.multi_reduction <add>, %314, %cst_120 [1] : vector<8x8xf32> to vector<8xf32>
    %316 = vector.shape_cast %315 : vector<8xf32> to vector<8x1xf32>
    %317 = tpu.reciprocal %316 {approx = true} : vector<8x1xf32> -> vector<8x1xf32>
    %318 = vector.broadcast %317 : vector<8x1xf32> to vector<8x8xf32>
    %319 = arith.mulf %314, %318 : vector<8x8xf32>
    %cst_121 = arith.constant dense<0.000000e+00> : vector<8x8xf32>
    %320 = tpu.matmul %319, %306, %cst_121 {dimension_numbers = #tpu.dot_dimension_numbers<[1], [0], [0], [1], [0, 0, 1, 1], [], []>} : vector<8x8xf32>, vector<8x8xf32>, vector<8x8xf32> -> vector<8x8xf32>
    %321 = vector.extract_strided_slice %283 {offsets = [8, 0], sizes = [8, 32], strides = [1, 1]} : vector<32x32xf32> to vector<8x32xf32>
    %cst_122 = arith.constant dense<0.000000e+00> : vector<8x32xf32>
    %322 = tpu.matmul %320, %321, %cst_122 {dimension_numbers = #tpu.dot_dimension_numbers<[1], [0], [0], [1], [0, 0, 1, 1], [], []>} : vector<8x8xf32>, vector<8x32xf32>, vector<8x32xf32> -> vector<8x32xf32>
    %323 = arith.addf %303, %322 : vector<8x32xf32>
    %324 = vector.extract_strided_slice %281 {offsets = [0, 16], sizes = [8, 8], strides = [1, 1]} : vector<16x96xf32> to vector<8x8xf32>
    %325 = vector.extract_strided_slice %281 {offsets = [0, 48], sizes = [8, 8], strides = [1, 1]} : vector<16x96xf32> to vector<8x8xf32>
    %326 = vector.extract_strided_slice %281 {offsets = [0, 80], sizes = [8, 8], strides = [1, 1]} : vector<16x96xf32> to vector<8x8xf32>
    %cst_123 = arith.constant dense<0.000000e+00> : vector<8x8xf32>
    %327 = tpu.matmul %324, %325, %cst_123 {dimension_numbers = #tpu.dot_dimension_numbers<[1], [1], [0], [0], [0, 0, 1, 0], [], []>} : vector<8x8xf32>, vector<8x8xf32>, vector<8x8xf32> -> vector<8x8xf32>
    %328 = vector.broadcast %284 : vector<1x8xf32> to vector<8x8xf32>
    %329 = arith.addf %327, %328 : vector<8x8xf32>
    %cst_124 = arith.constant dense<0xFF800000> : vector<8xf32>
    %330 = vector.multi_reduction <maximumf>, %329, %cst_124 [1] : vector<8x8xf32> to vector<8xf32>
    %331 = vector.shape_cast %330 : vector<8xf32> to vector<8x1xf32>
    %332 = vector.broadcast %331 : vector<8x1xf32> to vector<8x8xf32>
    %333 = arith.subf %329, %332 : vector<8x8xf32>
    %334 = math.exp %333 : vector<8x8xf32>
    %cst_125 = arith.constant dense<0.000000e+00> : vector<8xf32>
    %335 = vector.multi_reduction <add>, %334, %cst_125 [1] : vector<8x8xf32> to vector<8xf32>
    %336 = vector.shape_cast %335 : vector<8xf32> to vector<8x1xf32>
    %337 = tpu.reciprocal %336 {approx = true} : vector<8x1xf32> -> vector<8x1xf32>
    %338 = vector.broadcast %337 : vector<8x1xf32> to vector<8x8xf32>
    %339 = arith.mulf %334, %338 : vector<8x8xf32>
    %cst_126 = arith.constant dense<0.000000e+00> : vector<8x8xf32>
    %340 = tpu.matmul %339, %326, %cst_126 {dimension_numbers = #tpu.dot_dimension_numbers<[1], [0], [0], [1], [0, 0, 1, 1], [], []>} : vector<8x8xf32>, vector<8x8xf32>, vector<8x8xf32> -> vector<8x8xf32>
    %341 = vector.extract_strided_slice %283 {offsets = [16, 0], sizes = [8, 32], strides = [1, 1]} : vector<32x32xf32> to vector<8x32xf32>
    %cst_127 = arith.constant dense<0.000000e+00> : vector<8x32xf32>
    %342 = tpu.matmul %340, %341, %cst_127 {dimension_numbers = #tpu.dot_dimension_numbers<[1], [0], [0], [1], [0, 0, 1, 1], [], []>} : vector<8x8xf32>, vector<8x32xf32>, vector<8x32xf32> -> vector<8x32xf32>
    %343 = arith.addf %323, %342 : vector<8x32xf32>
    %344 = vector.extract_strided_slice %281 {offsets = [0, 24], sizes = [8, 8], strides = [1, 1]} : vector<16x96xf32> to vector<8x8xf32>
    %345 = vector.extract_strided_slice %281 {offsets = [0, 56], sizes = [8, 8], strides = [1, 1]} : vector<16x96xf32> to vector<8x8xf32>
    %346 = vector.extract_strided_slice %281 {offsets = [0, 88], sizes = [8, 8], strides = [1, 1]} : vector<16x96xf32> to vector<8x8xf32>
    %cst_128 = arith.constant dense<0.000000e+00> : vector<8x8xf32>
    %347 = tpu.matmul %344, %345, %cst_128 {dimension_numbers = #tpu.dot_dimension_numbers<[1], [1], [0], [0], [0, 0, 1, 0], [], []>} : vector<8x8xf32>, vector<8x8xf32>, vector<8x8xf32> -> vector<8x8xf32>
    %348 = vector.broadcast %284 : vector<1x8xf32> to vector<8x8xf32>
    %349 = arith.addf %347, %348 : vector<8x8xf32>
    %cst_129 = arith.constant dense<0xFF800000> : vector<8xf32>
    %350 = vector.multi_reduction <maximumf>, %349, %cst_129 [1] : vector<8x8xf32> to vector<8xf32>
    %351 = vector.shape_cast %350 : vector<8xf32> to vector<8x1xf32>
    %352 = vector.broadcast %351 : vector<8x1xf32> to vector<8x8xf32>
    %353 = arith.subf %349, %352 : vector<8x8xf32>
    %354 = math.exp %353 : vector<8x8xf32>
    %cst_130 = arith.constant dense<0.000000e+00> : vector<8xf32>
    %355 = vector.multi_reduction <add>, %354, %cst_130 [1] : vector<8x8xf32> to vector<8xf32>
    %356 = vector.shape_cast %355 : vector<8xf32> to vector<8x1xf32>
    %357 = tpu.reciprocal %356 {approx = true} : vector<8x1xf32> -> vector<8x1xf32>
    %358 = vector.broadcast %357 : vector<8x1xf32> to vector<8x8xf32>
    %359 = arith.mulf %354, %358 : vector<8x8xf32>
    %cst_131 = arith.constant dense<0.000000e+00> : vector<8x8xf32>
    %360 = tpu.matmul %359, %346, %cst_131 {dimension_numbers = #tpu.dot_dimension_numbers<[1], [0], [0], [1], [0, 0, 1, 1], [], []>} : vector<8x8xf32>, vector<8x8xf32>, vector<8x8xf32> -> vector<8x8xf32>
    %361 = vector.extract_strided_slice %283 {offsets = [24, 0], sizes = [8, 32], strides = [1, 1]} : vector<32x32xf32> to vector<8x32xf32>
    %cst_132 = arith.constant dense<0.000000e+00> : vector<8x32xf32>
    %362 = tpu.matmul %360, %361, %cst_132 {dimension_numbers = #tpu.dot_dimension_numbers<[1], [0], [0], [1], [0, 0, 1, 1], [], []>} : vector<8x8xf32>, vector<8x32xf32>, vector<8x32xf32> -> vector<8x32xf32>
    %363 = arith.addf %343, %362 : vector<8x32xf32>
    %364 = vector.extract_strided_slice %23 {offsets = [1, 0], sizes = [1, 8], strides = [1, 1]} : vector<2x8xf32> to vector<1x8xf32>
    %365 = vector.extract_strided_slice %281 {offsets = [8, 0], sizes = [8, 8], strides = [1, 1]} : vector<16x96xf32> to vector<8x8xf32>
    %366 = vector.extract_strided_slice %281 {offsets = [8, 32], sizes = [8, 8], strides = [1, 1]} : vector<16x96xf32> to vector<8x8xf32>
    %367 = vector.extract_strided_slice %281 {offsets = [8, 64], sizes = [8, 8], strides = [1, 1]} : vector<16x96xf32> to vector<8x8xf32>
    %cst_133 = arith.constant dense<0.000000e+00> : vector<8x8xf32>
    %368 = tpu.matmul %365, %366, %cst_133 {dimension_numbers = #tpu.dot_dimension_numbers<[1], [1], [0], [0], [0, 0, 1, 0], [], []>} : vector<8x8xf32>, vector<8x8xf32>, vector<8x8xf32> -> vector<8x8xf32>
    %369 = vector.broadcast %364 : vector<1x8xf32> to vector<8x8xf32>
    %370 = arith.addf %368, %369 : vector<8x8xf32>
    %cst_134 = arith.constant dense<0xFF800000> : vector<8xf32>
    %371 = vector.multi_reduction <maximumf>, %370, %cst_134 [1] : vector<8x8xf32> to vector<8xf32>
    %372 = vector.shape_cast %371 : vector<8xf32> to vector<8x1xf32>
    %373 = vector.broadcast %372 : vector<8x1xf32> to vector<8x8xf32>
    %374 = arith.subf %370, %373 : vector<8x8xf32>
    %375 = math.exp %374 : vector<8x8xf32>
    %cst_135 = arith.constant dense<0.000000e+00> : vector<8xf32>
    %376 = vector.multi_reduction <add>, %375, %cst_135 [1] : vector<8x8xf32> to vector<8xf32>
    %377 = vector.shape_cast %376 : vector<8xf32> to vector<8x1xf32>
    %378 = tpu.reciprocal %377 {approx = true} : vector<8x1xf32> -> vector<8x1xf32>
    %379 = vector.broadcast %378 : vector<8x1xf32> to vector<8x8xf32>
    %380 = arith.mulf %375, %379 : vector<8x8xf32>
    %cst_136 = arith.constant dense<0.000000e+00> : vector<8x8xf32>
    %381 = tpu.matmul %380, %367, %cst_136 {dimension_numbers = #tpu.dot_dimension_numbers<[1], [0], [0], [1], [0, 0, 1, 1], [], []>} : vector<8x8xf32>, vector<8x8xf32>, vector<8x8xf32> -> vector<8x8xf32>
    %382 = vector.extract_strided_slice %283 {offsets = [0, 0], sizes = [8, 32], strides = [1, 1]} : vector<32x32xf32> to vector<8x32xf32>
    %cst_137 = arith.constant dense<0.000000e+00> : vector<8x32xf32>
    %383 = tpu.matmul %381, %382, %cst_137 {dimension_numbers = #tpu.dot_dimension_numbers<[1], [0], [0], [1], [0, 0, 1, 1], [], []>} : vector<8x8xf32>, vector<8x32xf32>, vector<8x32xf32> -> vector<8x32xf32>
    %384 = vector.extract_strided_slice %281 {offsets = [8, 8], sizes = [8, 8], strides = [1, 1]} : vector<16x96xf32> to vector<8x8xf32>
    %385 = vector.extract_strided_slice %281 {offsets = [8, 40], sizes = [8, 8], strides = [1, 1]} : vector<16x96xf32> to vector<8x8xf32>
    %386 = vector.extract_strided_slice %281 {offsets = [8, 72], sizes = [8, 8], strides = [1, 1]} : vector<16x96xf32> to vector<8x8xf32>
    %cst_138 = arith.constant dense<0.000000e+00> : vector<8x8xf32>
    %387 = tpu.matmul %384, %385, %cst_138 {dimension_numbers = #tpu.dot_dimension_numbers<[1], [1], [0], [0], [0, 0, 1, 0], [], []>} : vector<8x8xf32>, vector<8x8xf32>, vector<8x8xf32> -> vector<8x8xf32>
    %388 = vector.broadcast %364 : vector<1x8xf32> to vector<8x8xf32>
    %389 = arith.addf %387, %388 : vector<8x8xf32>
    %cst_139 = arith.constant dense<0xFF800000> : vector<8xf32>
    %390 = vector.multi_reduction <maximumf>, %389, %cst_139 [1] : vector<8x8xf32> to vector<8xf32>
    %391 = vector.shape_cast %390 : vector<8xf32> to vector<8x1xf32>
    %392 = vector.broadcast %391 : vector<8x1xf32> to vector<8x8xf32>
    %393 = arith.subf %389, %392 : vector<8x8xf32>
    %394 = math.exp %393 : vector<8x8xf32>
    %cst_140 = arith.constant dense<0.000000e+00> : vector<8xf32>
    %395 = vector.multi_reduction <add>, %394, %cst_140 [1] : vector<8x8xf32> to vector<8xf32>
    %396 = vector.shape_cast %395 : vector<8xf32> to vector<8x1xf32>
    %397 = tpu.reciprocal %396 {approx = true} : vector<8x1xf32> -> vector<8x1xf32>
    %398 = vector.broadcast %397 : vector<8x1xf32> to vector<8x8xf32>
    %399 = arith.mulf %394, %398 : vector<8x8xf32>
    %cst_141 = arith.constant dense<0.000000e+00> : vector<8x8xf32>
    %400 = tpu.matmul %399, %386, %cst_141 {dimension_numbers = #tpu.dot_dimension_numbers<[1], [0], [0], [1], [0, 0, 1, 1], [], []>} : vector<8x8xf32>, vector<8x8xf32>, vector<8x8xf32> -> vector<8x8xf32>
    %401 = vector.extract_strided_slice %283 {offsets = [8, 0], sizes = [8, 32], strides = [1, 1]} : vector<32x32xf32> to vector<8x32xf32>
    %cst_142 = arith.constant dense<0.000000e+00> : vector<8x32xf32>
    %402 = tpu.matmul %400, %401, %cst_142 {dimension_numbers = #tpu.dot_dimension_numbers<[1], [0], [0], [1], [0, 0, 1, 1], [], []>} : vector<8x8xf32>, vector<8x32xf32>, vector<8x32xf32> -> vector<8x32xf32>
    %403 = arith.addf %383, %402 : vector<8x32xf32>
    %404 = vector.extract_strided_slice %281 {offsets = [8, 16], sizes = [8, 8], strides = [1, 1]} : vector<16x96xf32> to vector<8x8xf32>
    %405 = vector.extract_strided_slice %281 {offsets = [8, 48], sizes = [8, 8], strides = [1, 1]} : vector<16x96xf32> to vector<8x8xf32>
    %406 = vector.extract_strided_slice %281 {offsets = [8, 80], sizes = [8, 8], strides = [1, 1]} : vector<16x96xf32> to vector<8x8xf32>
    %cst_143 = arith.constant dense<0.000000e+00> : vector<8x8xf32>
    %407 = tpu.matmul %404, %405, %cst_143 {dimension_numbers = #tpu.dot_dimension_numbers<[1], [1], [0], [0], [0, 0, 1, 0], [], []>} : vector<8x8xf32>, vector<8x8xf32>, vector<8x8xf32> -> vector<8x8xf32>
    %408 = vector.broadcast %364 : vector<1x8xf32> to vector<8x8xf32>
    %409 = arith.addf %407, %408 : vector<8x8xf32>
    %cst_144 = arith.constant dense<0xFF800000> : vector<8xf32>
    %410 = vector.multi_reduction <maximumf>, %409, %cst_144 [1] : vector<8x8xf32> to vector<8xf32>
    %411 = vector.shape_cast %410 : vector<8xf32> to vector<8x1xf32>
    %412 = vector.broadcast %411 : vector<8x1xf32> to vector<8x8xf32>
    %413 = arith.subf %409, %412 : vector<8x8xf32>
    %414 = math.exp %413 : vector<8x8xf32>
    %cst_145 = arith.constant dense<0.000000e+00> : vector<8xf32>
    %415 = vector.multi_reduction <add>, %414, %cst_145 [1] : vector<8x8xf32> to vector<8xf32>
    %416 = vector.shape_cast %415 : vector<8xf32> to vector<8x1xf32>
    %417 = tpu.reciprocal %416 {approx = true} : vector<8x1xf32> -> vector<8x1xf32>
    %418 = vector.broadcast %417 : vector<8x1xf32> to vector<8x8xf32>
    %419 = arith.mulf %414, %418 : vector<8x8xf32>
    %cst_146 = arith.constant dense<0.000000e+00> : vector<8x8xf32>
    %420 = tpu.matmul %419, %406, %cst_146 {dimension_numbers = #tpu.dot_dimension_numbers<[1], [0], [0], [1], [0, 0, 1, 1], [], []>} : vector<8x8xf32>, vector<8x8xf32>, vector<8x8xf32> -> vector<8x8xf32>
    %421 = vector.extract_strided_slice %283 {offsets = [16, 0], sizes = [8, 32], strides = [1, 1]} : vector<32x32xf32> to vector<8x32xf32>
    %cst_147 = arith.constant dense<0.000000e+00> : vector<8x32xf32>
    %422 = tpu.matmul %420, %421, %cst_147 {dimension_numbers = #tpu.dot_dimension_numbers<[1], [0], [0], [1], [0, 0, 1, 1], [], []>} : vector<8x8xf32>, vector<8x32xf32>, vector<8x32xf32> -> vector<8x32xf32>
    %423 = arith.addf %403, %422 : vector<8x32xf32>
    %424 = vector.extract_strided_slice %281 {offsets = [8, 24], sizes = [8, 8], strides = [1, 1]} : vector<16x96xf32> to vector<8x8xf32>
    %425 = vector.extract_strided_slice %281 {offsets = [8, 56], sizes = [8, 8], strides = [1, 1]} : vector<16x96xf32> to vector<8x8xf32>
    %426 = vector.extract_strided_slice %281 {offsets = [8, 88], sizes = [8, 8], strides = [1, 1]} : vector<16x96xf32> to vector<8x8xf32>
    %cst_148 = arith.constant dense<0.000000e+00> : vector<8x8xf32>
    %427 = tpu.matmul %424, %425, %cst_148 {dimension_numbers = #tpu.dot_dimension_numbers<[1], [1], [0], [0], [0, 0, 1, 0], [], []>} : vector<8x8xf32>, vector<8x8xf32>, vector<8x8xf32> -> vector<8x8xf32>
    %428 = vector.broadcast %364 : vector<1x8xf32> to vector<8x8xf32>
    %429 = arith.addf %427, %428 : vector<8x8xf32>
    %cst_149 = arith.constant dense<0xFF800000> : vector<8xf32>
    %430 = vector.multi_reduction <maximumf>, %429, %cst_149 [1] : vector<8x8xf32> to vector<8xf32>
    %431 = vector.shape_cast %430 : vector<8xf32> to vector<8x1xf32>
    %432 = vector.broadcast %431 : vector<8x1xf32> to vector<8x8xf32>
    %433 = arith.subf %429, %432 : vector<8x8xf32>
    %434 = math.exp %433 : vector<8x8xf32>
    %cst_150 = arith.constant dense<0.000000e+00> : vector<8xf32>
    %435 = vector.multi_reduction <add>, %434, %cst_150 [1] : vector<8x8xf32> to vector<8xf32>
    %436 = vector.shape_cast %435 : vector<8xf32> to vector<8x1xf32>
    %437 = tpu.reciprocal %436 {approx = true} : vector<8x1xf32> -> vector<8x1xf32>
    %438 = vector.broadcast %437 : vector<8x1xf32> to vector<8x8xf32>
    %439 = arith.mulf %434, %438 : vector<8x8xf32>
    %cst_151 = arith.constant dense<0.000000e+00> : vector<8x8xf32>
    %440 = tpu.matmul %439, %426, %cst_151 {dimension_numbers = #tpu.dot_dimension_numbers<[1], [0], [0], [1], [0, 0, 1, 1], [], []>} : vector<8x8xf32>, vector<8x8xf32>, vector<8x8xf32> -> vector<8x8xf32>
    %441 = vector.extract_strided_slice %283 {offsets = [24, 0], sizes = [8, 32], strides = [1, 1]} : vector<32x32xf32> to vector<8x32xf32>
    %cst_152 = arith.constant dense<0.000000e+00> : vector<8x32xf32>
    %442 = tpu.matmul %440, %441, %cst_152 {dimension_numbers = #tpu.dot_dimension_numbers<[1], [0], [0], [1], [0, 0, 1, 1], [], []>} : vector<8x8xf32>, vector<8x32xf32>, vector<8x32xf32> -> vector<8x32xf32>
    %443 = arith.addf %423, %442 : vector<8x32xf32>
    %444 = tpu.concatenate %363, %443 in 0 : vector<8x32xf32>, vector<8x32xf32> -> vector<16x32xf32>
    %c1_153 = arith.constant 1 : index
    %c0_154 = arith.constant 0 : index
    %c0_155 = arith.constant 0 : index
    %445 = vector.load %arg7[%c1_153, %c0_154, %c0_155] : memref<2x1x32xf32, #tpu.memory_space<vmem>>, vector<1x1x32xf32>
    %446 = vector.shape_cast %445 : vector<1x1x32xf32> to vector<1x32xf32>
    %447 = vector.broadcast %446 : vector<1x32xf32> to vector<16x32xf32>
    %448 = arith.addf %444, %447 : vector<16x32xf32>
    %449 = arith.addf %448, %274 : vector<16x32xf32>
    %c1_156 = arith.constant 1 : index
    %c0_157 = arith.constant 0 : index
    %c0_158 = arith.constant 0 : index
    %450 = vector.load %arg8[%c1_156, %c0_157, %c0_158] : memref<2x1x32xf32, #tpu.memory_space<vmem>>, vector<1x1x32xf32>
    %451 = vector.shape_cast %450 : vector<1x1x32xf32> to vector<1x32xf32>
    %c1_159 = arith.constant 1 : index
    %c0_160 = arith.constant 0 : index
    %c0_161 = arith.constant 0 : index
    %452 = vector.load %arg9[%c1_159, %c0_160, %c0_161] : memref<2x1x32xf32, #tpu.memory_space<vmem>>, vector<1x1x32xf32>
    %453 = vector.shape_cast %452 : vector<1x1x32xf32> to vector<1x32xf32>
    %cst_162 = arith.constant dense<0.000000e+00> : vector<16xf32>
    %454 = vector.multi_reduction <add>, %449, %cst_162 [1] : vector<16x32xf32> to vector<16xf32>
    %455 = vector.shape_cast %454 : vector<16xf32> to vector<16x1xf32>
    %cst_163 = arith.constant 3.200000e+01 : f32
    %456 = vector.broadcast %cst_163 : f32 to vector<16x1xf32>
    %457 = arith.divf %455, %456 : vector<16x1xf32>
    %458 = vector.broadcast %457 : vector<16x1xf32> to vector<16x32xf32>
    %459 = arith.subf %449, %458 : vector<16x32xf32>
    %460 = arith.mulf %459, %459 : vector<16x32xf32>
    %cst_164 = arith.constant dense<0.000000e+00> : vector<16xf32>
    %461 = vector.multi_reduction <add>, %460, %cst_164 [1] : vector<16x32xf32> to vector<16xf32>
    %462 = vector.shape_cast %461 : vector<16xf32> to vector<16x1xf32>
    %cst_165 = arith.constant 3.200000e+01 : f32
    %463 = vector.broadcast %cst_165 : f32 to vector<16x1xf32>
    %464 = arith.divf %462, %463 : vector<16x1xf32>
    %cst_166 = arith.constant 9.99999996E-13 : f32
    %465 = vector.broadcast %cst_166 : f32 to vector<16x1xf32>
    %466 = arith.addf %464, %465 : vector<16x1xf32>
    %467 = math.rsqrt %466 : vector<16x1xf32>
    %468 = vector.broadcast %467 : vector<16x1xf32> to vector<16x32xf32>
    %469 = arith.mulf %459, %468 : vector<16x32xf32>
    %470 = vector.broadcast %451 : vector<1x32xf32> to vector<16x32xf32>
    %471 = arith.mulf %469, %470 : vector<16x32xf32>
    %472 = vector.broadcast %453 : vector<1x32xf32> to vector<16x32xf32>
    %473 = arith.addf %471, %472 : vector<16x32xf32>
    %c1_167 = arith.constant 1 : index
    %c0_168 = arith.constant 0 : index
    %c0_169 = arith.constant 0 : index
    %474 = vector.load %arg10[%c1_167, %c0_168, %c0_169] : memref<2x32x64xf32, #tpu.memory_space<vmem>>, vector<1x32x64xf32>
    %475 = vector.shape_cast %474 : vector<1x32x64xf32> to vector<32x64xf32>
    %cst_170 = arith.constant dense<0.000000e+00> : vector<16x64xf32>
    %476 = tpu.matmul %473, %475, %cst_170 {dimension_numbers = #tpu.dot_dimension_numbers<[1], [0], [0], [1], [0, 0, 1, 1], [], []>} : vector<16x32xf32>, vector<32x64xf32>, vector<16x64xf32> -> vector<16x64xf32>
    %c1_171 = arith.constant 1 : index
    %c0_172 = arith.constant 0 : index
    %c0_173 = arith.constant 0 : index
    %477 = vector.load %arg11[%c1_171, %c0_172, %c0_173] : memref<2x1x64xf32, #tpu.memory_space<vmem>>, vector<1x1x64xf32>
    %478 = vector.shape_cast %477 : vector<1x1x64xf32> to vector<1x64xf32>
    %479 = vector.broadcast %478 : vector<1x64xf32> to vector<16x64xf32>
    %480 = arith.addf %476, %479 : vector<16x64xf32>
    %cst_174 = arith.constant 5.000000e-01 : f32
    %481 = vector.broadcast %cst_174 : f32 to vector<16x64xf32>
    %482 = arith.mulf %481, %480 : vector<16x64xf32>
    %cst_175 = arith.constant 4.471500e-02 : f32
    %483 = vector.broadcast %cst_175 : f32 to vector<16x64xf32>
    %484 = arith.mulf %483, %480 : vector<16x64xf32>
    %485 = arith.mulf %484, %480 : vector<16x64xf32>
    %486 = arith.mulf %485, %480 : vector<16x64xf32>
    %487 = arith.addf %480, %486 : vector<16x64xf32>
    %cst_176 = arith.constant 0.797884583 : f32
    %488 = vector.broadcast %cst_176 : f32 to vector<16x64xf32>
    %489 = arith.mulf %488, %487 : vector<16x64xf32>
    %490 = math.tanh %489 : vector<16x64xf32>
    %cst_177 = arith.constant 1.000000e+00 : f32
    %491 = vector.broadcast %cst_177 : f32 to vector<16x64xf32>
    %492 = arith.addf %491, %490 : vector<16x64xf32>
    %493 = arith.mulf %482, %492 : vector<16x64xf32>
    %c1_178 = arith.constant 1 : index
    %c0_179 = arith.constant 0 : index
    %c0_180 = arith.constant 0 : index
    %494 = vector.load %arg12[%c1_178, %c0_179, %c0_180] : memref<2x64x32xf32, #tpu.memory_space<vmem>>, vector<1x64x32xf32>
    %495 = vector.shape_cast %494 : vector<1x64x32xf32> to vector<64x32xf32>
    %cst_181 = arith.constant dense<0.000000e+00> : vector<16x32xf32>
    %496 = tpu.matmul %493, %495, %cst_181 {dimension_numbers = #tpu.dot_dimension_numbers<[1], [0], [0], [1], [0, 0, 1, 1], [], []>} : vector<16x64xf32>, vector<64x32xf32>, vector<16x32xf32> -> vector<16x32xf32>
    %c1_182 = arith.constant 1 : index
    %c0_183 = arith.constant 0 : index
    %c0_184 = arith.constant 0 : index
    %497 = vector.load %arg13[%c1_182, %c0_183, %c0_184] : memref<2x1x32xf32, #tpu.memory_space<vmem>>, vector<1x1x32xf32>
    %498 = vector.shape_cast %497 : vector<1x1x32xf32> to vector<1x32xf32>
    %499 = vector.broadcast %498 : vector<1x32xf32> to vector<16x32xf32>
    %500 = arith.addf %496, %499 : vector<16x32xf32>
    %501 = arith.addf %500, %473 : vector<16x32xf32>
    %c1_185 = arith.constant 1 : index
    %c0_186 = arith.constant 0 : index
    %c0_187 = arith.constant 0 : index
    %502 = vector.load %arg14[%c1_185, %c0_186, %c0_187] : memref<2x1x32xf32, #tpu.memory_space<vmem>>, vector<1x1x32xf32>
    %503 = vector.shape_cast %502 : vector<1x1x32xf32> to vector<1x32xf32>
    %c1_188 = arith.constant 1 : index
    %c0_189 = arith.constant 0 : index
    %c0_190 = arith.constant 0 : index
    %504 = vector.load %arg15[%c1_188, %c0_189, %c0_190] : memref<2x1x32xf32, #tpu.memory_space<vmem>>, vector<1x1x32xf32>
    %505 = vector.shape_cast %504 : vector<1x1x32xf32> to vector<1x32xf32>
    %cst_191 = arith.constant dense<0.000000e+00> : vector<16xf32>
    %506 = vector.multi_reduction <add>, %501, %cst_191 [1] : vector<16x32xf32> to vector<16xf32>
    %507 = vector.shape_cast %506 : vector<16xf32> to vector<16x1xf32>
    %cst_192 = arith.constant 3.200000e+01 : f32
    %508 = vector.broadcast %cst_192 : f32 to vector<16x1xf32>
    %509 = arith.divf %507, %508 : vector<16x1xf32>
    %510 = vector.broadcast %509 : vector<16x1xf32> to vector<16x32xf32>
    %511 = arith.subf %501, %510 : vector<16x32xf32>
    %512 = arith.mulf %511, %511 : vector<16x32xf32>
    %cst_193 = arith.constant dense<0.000000e+00> : vector<16xf32>
    %513 = vector.multi_reduction <add>, %512, %cst_193 [1] : vector<16x32xf32> to vector<16xf32>
    %514 = vector.shape_cast %513 : vector<16xf32> to vector<16x1xf32>
    %cst_194 = arith.constant 3.200000e+01 : f32
    %515 = vector.broadcast %cst_194 : f32 to vector<16x1xf32>
    %516 = arith.divf %514, %515 : vector<16x1xf32>
    %cst_195 = arith.constant 9.99999996E-13 : f32
    %517 = vector.broadcast %cst_195 : f32 to vector<16x1xf32>
    %518 = arith.addf %516, %517 : vector<16x1xf32>
    %519 = math.rsqrt %518 : vector<16x1xf32>
    %520 = vector.broadcast %519 : vector<16x1xf32> to vector<16x32xf32>
    %521 = arith.mulf %511, %520 : vector<16x32xf32>
    %522 = vector.broadcast %503 : vector<1x32xf32> to vector<16x32xf32>
    %523 = arith.mulf %521, %522 : vector<16x32xf32>
    %524 = vector.broadcast %505 : vector<1x32xf32> to vector<16x32xf32>
    %525 = arith.addf %523, %524 : vector<16x32xf32>
    %c0_196 = arith.constant 0 : index
    %c0_197 = arith.constant 0 : index
    %526 = vector.load %arg18[%c0_196, %c0_197] : memref<16x32xf32, #tpu.memory_space<vmem>>, vector<16x32xf32>
    tpu.vector_store %arg18[%c0_196, %c0_197], %525 {strides = array<i32>} : memref<16x32xf32, #tpu.memory_space<vmem>>, vector<16x32xf32>,
    %527 = vector.extract_strided_slice %525 {offsets = [0, 0], sizes = [1, 32], strides = [1, 1]} : vector<16x32xf32> to vector<1x32xf32>
    %528 = vector.extract_strided_slice %525 {offsets = [8, 0], sizes = [1, 32], strides = [1, 1]} : vector<16x32xf32> to vector<1x32xf32>
    %529 = tpu.concatenate %527, %528 in 0 : vector<1x32xf32>, vector<1x32xf32> -> vector<2x32xf32>
    %c0_198 = arith.constant 0 : index
    %c0_199 = arith.constant 0 : index
    %530 = vector.load %arg16[%c0_198, %c0_199] : memref<32x32xf32, #tpu.memory_space<vmem>>, vector<32x32xf32>
    %cst_200 = arith.constant dense<0.000000e+00> : vector<2x32xf32>
    %531 = tpu.matmul %529, %530, %cst_200 {dimension_numbers = #tpu.dot_dimension_numbers<[1], [0], [0], [1], [0, 0, 1, 1], [], []>} : vector<2x32xf32>, vector<32x32xf32>, vector<2x32xf32> -> vector<2x32xf32>
    %c0_201 = arith.constant 0 : index
    %c0_202 = arith.constant 0 : index
    %532 = vector.load %arg17[%c0_201, %c0_202] : memref<1x32xf32, #tpu.memory_space<vmem>>, vector<1x32xf32>
    %533 = vector.broadcast %532 : vector<1x32xf32> to vector<2x32xf32>
    %534 = arith.addf %531, %533 : vector<2x32xf32>
    %535 = math.tanh %534 : vector<2x32xf32>
    %c0_203 = arith.constant 0 : index
    %c0_204 = arith.constant 0 : index
    %536 = vector.load %arg19[%c0_203, %c0_204] : memref<2x32xf32, #tpu.memory_space<vmem>>, vector<2x32xf32>
    tpu.vector_store %arg19[%c0_203, %c0_204], %535 {strides = array<i32>} : memref<2x32xf32, #tpu.memory_space<vmem>>, vector<2x32xf32>,
    return
  }
}

</mosaic_0001>

<llo_original>
// kernel: bert_forward.1
$region0: #{bert_forward.1}
  #allocation0 [shape = 'u32[]', space=smem, size = 0x4, offset = 0x4, fixed_abs, tag = 'smem constant byte address 0x4 - core index']
  #allocation1 [shape = 'u32[72,128]{1,0:T(1,128)}', space=vmem, size = 0x9000, scoped, tag = 'internal scratch']
  %s0 = inlined_call_operand.vmem [shape: f32[16,32], index: 0, kind: input, shape index: {}]
  %s1 = inlined_call_operand.vmem [shape: f32[2,8], index: 1, kind: input, shape index: {}]
  %s2 = inlined_call_operand.vmem [shape: f32[1,32], index: 2, kind: input, shape index: {}]
  %s3 = inlined_call_operand.vmem [shape: f32[1,32], index: 3, kind: input, shape index: {}]
  %s4 = inlined_call_operand.vmem [shape: f32[2,32,96], index: 4, kind: input, shape index: {}]
  %s5 = inlined_call_operand.vmem [shape: f32[2,1,96], index: 5, kind: input, shape index: {}]
  %s6 = inlined_call_operand.vmem [shape: f32[2,32,32], index: 6, kind: input, shape index: {}]
  %s7 = inlined_call_operand.vmem [shape: f32[2,1,32], index: 7, kind: input, shape index: {}]
  %s8 = inlined_call_operand.vmem [shape: f32[2,1,32], index: 8, kind: input, shape index: {}]
  %s9 = inlined_call_operand.vmem [shape: f32[2,1,32], index: 9, kind: input, shape index: {}]
  %s10 = inlined_call_operand.vmem [shape: f32[2,32,64], index: 10, kind: input, shape index: {}]
  %s11 = inlined_call_operand.vmem [shape: f32[2,1,64], index: 11, kind: input, shape index: {}]
  %s12 = inlined_call_operand.vmem [shape: f32[2,64,32], index: 12, kind: input, shape index: {}]
  %s13 = inlined_call_operand.vmem [shape: f32[2,1,32], index: 13, kind: input, shape index: {}]
  %s14 = inlined_call_operand.vmem [shape: f32[2,1,32], index: 14, kind: input, shape index: {}]
  %s15 = inlined_call_operand.vmem [shape: f32[2,1,32], index: 15, kind: input, shape index: {}]
  %s16 = inlined_call_operand.vmem [shape: f32[32,32], index: 16, kind: input, shape index: {}]
  %s17 = inlined_call_operand.vmem [shape: f32[1,32], index: 17, kind: input, shape index: {}]
  %s18 = inlined_call_operand.hbm [shape: f32[16,32], index: 18, kind: output, shape index: {0}]
  %s19 = inlined_call_operand.hbm [shape: f32[2,32], index: 19, kind: output, shape index: {1}]
  %20 = xla_tuple %s18, %s19
  %s21 = sld [smem:[#allocation0]]
  $region90: #{bert_forward.1} parent=0
    _
  %s23 = ssub.s32 1, %s21
  %s24 = scalar_select 0, %s23, %s21
  $region1: #{bert_forward.1} parent=0
    #allocation2 [shape = 'u8[8192]{0}', space=vmem, size = 0x2000, scoped, tag = 'output window, operand 0, single buffered']
    #allocation3 [shape = 's32[1]{0}', space=sflag, size = 0x4, scoped, tag = 'scoped memory for bert_forward.1']
    #allocation4 [shape = 'u8[1024]{0}', space=vmem, size = 0x400, scoped, tag = 'output window, operand 1, single buffered']
    #allocation5 [shape = 's32[1]{0}', space=sflag, size = 0x4, scoped, tag = 'scoped memory for bert_forward.1']
    %25 = vsyncpa [#allocation3], 0
    %26 = vsyncpa [#allocation5], 0
    // Predicated region
    $region2: #{bert_forward.1} parent=1 // pred_check
      _
    $region3: #{bert_forward.1} parent=1 // pred_check_branch
      %28 = sbr.rel (0) target = $region5
    $region4: #{bert_forward.1} parent=1 // pred_region
      _
    $region5: #{bert_forward.1} parent=1 // pred_fallthru
      _
    // Predicated region
    $region6: #{bert_forward.1} parent=1 // pred_check
      _
    $region7: #{bert_forward.1} parent=1 // pred_check_branch
      %30 = sbr.rel (0) target = $region9
    $region8: #{bert_forward.1} parent=1 // pred_region
      _
    $region9: #{bert_forward.1} parent=1 // pred_fallthru
      _
    // Predicated region
    $region10: #{bert_forward.1} parent=1 // pred_check
      _
    $region11: #{bert_forward.1} parent=1 // pred_check_branch
      %32 = sbr.rel (0) target = $region13
    $region12: #{bert_forward.1} parent=1 // pred_region
      _
    $region13: #{bert_forward.1} parent=1 // pred_fallthru
      _
    // Predicated region
    $region14: #{bert_forward.1} parent=1 // pred_check
      _
    $region15: #{bert_forward.1} parent=1 // pred_check_branch
      %34 = sbr.rel (0) target = $region17
    $region16: #{bert_forward.1} parent=1 // pred_region
      _
    $region17: #{bert_forward.1} parent=1 // pred_fallthru
      _
    // Predicated region
    $region18: #{bert_forward.1} parent=1 // pred_check
      _
    $region19: #{bert_forward.1} parent=1 // pred_check_branch
      %36 = sbr.rel (0) target = $region21
    $region20: #{bert_forward.1} parent=1 // pred_region
      _
    $region21: #{bert_forward.1} parent=1 // pred_fallthru
      _
    // Predicated region
    $region22: #{bert_forward.1} parent=1 // pred_check
      _
    $region23: #{bert_forward.1} parent=1 // pred_check_branch
      %38 = sbr.rel (0) target = $region25
    $region24: #{bert_forward.1} parent=1 // pred_region
      _
    $region25: #{bert_forward.1} parent=1 // pred_fallthru
      _
    // Predicated region
    $region26: #{bert_forward.1} parent=1 // pred_check
      _
    $region27: #{bert_forward.1} parent=1 // pred_check_branch
      %40 = sbr.rel (0) target = $region29
    $region28: #{bert_forward.1} parent=1 // pred_region
      _
    $region29: #{bert_forward.1} parent=1 // pred_fallthru
      _
    // Predicated region
    $region30: #{bert_forward.1} parent=1 // pred_check
      _
    $region31: #{bert_forward.1} parent=1 // pred_check_branch
      %42 = sbr.rel (0) target = $region33
    $region32: #{bert_forward.1} parent=1 // pred_region
      _
    $region33: #{bert_forward.1} parent=1 // pred_fallthru
      _
    // Predicated region
    $region34: #{bert_forward.1} parent=1 // pred_check
      _
    $region35: #{bert_forward.1} parent=1 // pred_check_branch
      %44 = sbr.rel (0) target = $region37
    $region36: #{bert_forward.1} parent=1 // pred_region
      _
    $region37: #{bert_forward.1} parent=1 // pred_fallthru
      _
    // Predicated region
    $region38: #{bert_forward.1} parent=1 // pred_check
      _
    $region39: #{bert_forward.1} parent=1 // pred_check_branch
      %46 = sbr.rel (0) target = $region41
    $region40: #{bert_forward.1} parent=1 // pred_region
      _
    $region41: #{bert_forward.1} parent=1 // pred_fallthru
      _
    // Predicated region
    $region42: #{bert_forward.1} parent=1 // pred_check
      _
    $region43: #{bert_forward.1} parent=1 // pred_check_branch
      %48 = sbr.rel (0) target = $region45
    $region44: #{bert_forward.1} parent=1 // pred_region
      _
    $region45: #{bert_forward.1} parent=1 // pred_fallthru
      _
    // Predicated region
    $region46: #{bert_forward.1} parent=1 // pred_check
      _
    $region47: #{bert_forward.1} parent=1 // pred_check_branch
      %50 = sbr.rel (0) target = $region49
    $region48: #{bert_forward.1} parent=1 // pred_region
      _
    $region49: #{bert_forward.1} parent=1 // pred_fallthru
      _
    // Predicated region
    $region50: #{bert_forward.1} parent=1 // pred_check
      _
    $region51: #{bert_forward.1} parent=1 // pred_check_branch
      %52 = sbr.rel (0) target = $region53
    $region52: #{bert_forward.1} parent=1 // pred_region
      _
    $region53: #{bert_forward.1} parent=1 // pred_fallthru
      _
    // Predicated region
    $region54: #{bert_forward.1} parent=1 // pred_check
      _
    $region55: #{bert_forward.1} parent=1 // pred_check_branch
      %54 = sbr.rel (0) target = $region57
    $region56: #{bert_forward.1} parent=1 // pred_region
      _
    $region57: #{bert_forward.1} parent=1 // pred_fallthru
      _
    // Predicated region
    $region58: #{bert_forward.1} parent=1 // pred_check
      _
    $region59: #{bert_forward.1} parent=1 // pred_check_branch
      %56 = sbr.rel (0) target = $region61
    $region60: #{bert_forward.1} parent=1 // pred_region
      _
    $region61: #{bert_forward.1} parent=1 // pred_fallthru
      _
    // Predicated region
    $region62: #{bert_forward.1} parent=1 // pred_check
      _
    $region63: #{bert_forward.1} parent=1 // pred_check_branch
      %58 = sbr.rel (0) target = $region65
    $region64: #{bert_forward.1} parent=1 // pred_region
      _
    $region65: #{bert_forward.1} parent=1 // pred_fallthru
      _
    // Predicated region
    $region66: #{bert_forward.1} parent=1 // pred_check
      _
    $region67: #{bert_forward.1} parent=1 // pred_check_branch
      %60 = sbr.rel (0) target = $region69
    $region68: #{bert_forward.1} parent=1 // pred_region
      _
    $region69: #{bert_forward.1} parent=1 // pred_fallthru
      _
    // Predicated region
    $region70: #{bert_forward.1} parent=1 // pred_check
      _
    $region71: #{bert_forward.1} parent=1 // pred_check_branch
      %62 = sbr.rel (0) target = $region73
    $region72: #{bert_forward.1} parent=1 // pred_region
      _
    $region73: #{bert_forward.1} parent=1 // pred_fallthru
      _
    %v63 = vld [vmem:[%s0] sm:$0xff]
    %v64 = vld [vmem:[%s0 + $0x8] sm:$0xff]
    %v65 = vld [vmem:[%s2] sm:$0x1]
    %v66 = vld [vmem:[%s3] sm:$0x1]
    %vm67 = vcmask 261120
    %v68 = vsel %vm67, %v63, 0.0
    %69 = vadd.xlane.f32.xlu0 %v68
    %v70 = vpop.xlane.xlu0 %69
    %v71 = vsel %vm67, %v64, 0.0
    %72 = vadd.xlane.f32.xlu0 %v71
    %v73 = vpop.xlane.xlu0 %72
    %v74 = vrcp.pop 32.0
    %v75 = vmul.f32 32.0, %v74
    %v76 = vsub.f32 1.0, %v75
    %v77 = vmul.f32 %v74, %v76
    %v78 = vadd.f32 %v74, %v77
    %vm79 = vweird.f32 %v74
    %v80 = vsel %vm79, %v74, %v78
    %v81 = vmul.f32 %v70, %v80
    %v82 = vmul.f32 %v73, %v80
    %v83 = vsub.f32 %v63, %v81
    %v84 = vsub.f32 %v64, %v82
    %v85 = vmul.f32 %v83, %v83
    %v86 = vmul.f32 %v84, %v84
    %v87 = vsel %vm67, %v85, 0.0
    %88 = vadd.xlane.f32.xlu0 %v87
    %v89 = vpop.xlane.xlu0 %88
    %v90 = vsel %vm67, %v86, 0.0
    %91 = vadd.xlane.f32.xlu0 %v90
    %v92 = vpop.xlane.xlu0 %91
    %v93 = vmul.f32 %v89, %v80
    %v94 = vmul.f32 %v92, %v80
    %v95 = vadd.f32 %v93, 1e-12
    %v96 = vadd.f32 %v94, 1e-12
    %v97 = vrsqrt.pop %v95
    %v98 = vmul.f32 %v97, %v95
    %v99 = vmul.f32 %v98, %v97
    %v100 = vmul.f32 0.5, %v99
    %v101 = vsub.f32 1.5, %v100
    %v102 = vmul.f32 %v97, %v101
    %vm103 = vweird.f32 %v95
    %vm104 = vweird.f32 %v97
    %vm105 = vmor %vm103, %vm104
    %v106 = vsel %vm105, %v97, %v102
    %v107 = vrsqrt.pop %v96
    %v108 = vmul.f32 %v107, %v96
    %v109 = vmul.f32 %v108, %v107
    %v110 = vmul.f32 0.5, %v109
    %v111 = vsub.f32 1.5, %v110
    %v112 = vmul.f32 %v107, %v111
    %vm113 = vweird.f32 %v96
    %vm114 = vweird.f32 %v107
    %vm115 = vmor %vm113, %vm114
    %v116 = vsel %vm115, %v107, %v112
    %v117 = vmul.f32 %v83, %v106
    %v118 = vmul.f32 %v84, %v116
    %v120 = vperm.slane %v65, 0
    %v122 = vmul.f32 %v117, %v120
    %v123 = vmul.f32 %v118, %v120
    %v125 = vperm.slane %v66, 0
    %v127 = vadd.f32 %v122, %v125
    %v128 = vadd.f32 %v123, %v125
    %v129 = vld [vmem:[%s1] sm:$0x3]
    %v130 = vld [vmem:[%s4] sm:$0xff]
    %v131 = vld [vmem:[%s4 + $0x8] sm:$0xff]
    %v132 = vld [vmem:[%s4 + $0x10] sm:$0xff]
    %v133 = vld [vmem:[%s4 + $0x18] sm:$0xff]
    %v134 = vld [vmem:[%s5] sm:$0x1]
    %v136 = vperm.slane %v134, 0
    %v139 = vsel %vm67, %v127, 0
    %v142 = vsel %vm67, %v128, 0
    %144 = vmatpush.msra.mxu0 0.0
    %145 = vmatpush.msra.mxu0 0.0
    %146 = vmatpush.msra.mxu0 0.0
    %147 = vmatpush.msra.mxu0 0.0
    %148 = vmatpush.msra.mxu0 0.0
    %149 = vmatpush.msra.mxu0 0.0
    %150 = vmatpush.msra.mxu0 0.0
    %151 = vmatpush.msra.mxu0 0.0
    %152 = vmatpush.msra.mxu0 0.0
    %153 = vmatpush.msra.mxu0 0.0
    %154 = vmatpush.msra.mxu0 0.0
    %155 = vmatpush.msra.mxu0 0.0
    %156 = vmatpush.msra.mxu0 %v133
    %157 = vmatpush.msra.mxu0 %v132
    %158 = vmatpush.msra.mxu0 %v131
    %159 = vmatpush.msra.mxu0 %v130
    %160 = vmatmul.f32.gmra.mxu0 %v139
    %v161 = vpop.f32.mrf.mxu0
    %v162 = vadd.f32 %v136, %v161
    %163 = vmatmul.f32.gmra.mxu0 %v142
    %v164 = vpop.f32.mrf.mxu0
    %v165 = vadd.f32 %v136, %v164
    %166 = vdwg.mxu0
    %v167 = vld [vmem:[%s6] sm:$0xff]
    %v168 = vld [vmem:[%s6 + $0x8] sm:$0xff]
    %v169 = vld [vmem:[%s6 + $0x10] sm:$0xff]
    %v170 = vld [vmem:[%s6 + $0x18] sm:$0xff]
    %v171 = vperm.slane %v129, 0
    %173 = vrot.lane.b32.xlu0 %v162, 96
    %v174 = vpop.permute.xlu0 %173
    %vm175 = vcmask 64512
    %v176 = vsel %vm175, %v162, 0
    %v178 = vsel %vm175, %v174, 0
    %180 = vmatpush.xpose.msra.mxu0 0.0
    %181 = vmatpush.xpose.msra.mxu0 0.0
    %182 = vmatpush.xpose.msra.mxu0 0.0
    %183 = vmatpush.xpose.msra.mxu0 0.0
    %184 = vmatpush.xpose.msra.mxu0 0.0
    %185 = vmatpush.xpose.msra.mxu0 0.0
    %186 = vmatpush.xpose.msra.mxu0 0.0
    %187 = vmatpush.xpose.msra.mxu0 0.0
    %188 = vmatpush.xpose.msra.mxu0 0.0
    %189 = vmatpush.xpose.msra.mxu0 0.0
    %190 = vmatpush.xpose.msra.mxu0 0.0
    %191 = vmatpush.xpose.msra.mxu0 0.0
    %192 = vmatpush.xpose.msra.mxu0 0.0
    %193 = vmatpush.xpose.msra.mxu0 0.0
    %194 = vmatpush.xpose.msra.mxu0 0.0
    %195 = vmatpush.xpose.msra.mxu0 %v178
    %196 = vmatmul.f32.gmra.mxu0 %v176
    %v197 = vpop.f32.mrf.mxu0
    %v198 = vadd.f32 %v171, %v197
    %199 = vdwg.mxu0
    %v200 = vsel %vm175, %v198, -inf
    %201 = vmax.xlane.f32.xlu0 %v200
    %v202 = vpop.xlane.xlu0 %201
    %v203 = vsub.f32 %v198, %v202
    %v204 = vmul.f32 %v203, 1.442695
    %v205 = vpow.pop %v204
    %v206 = vsel %vm175, %v205, 0.0
    %207 = vadd.xlane.f32.xlu0 %v206
    %v208 = vpop.xlane.xlu0 %207
    %v209 = vrcp.pop %v208
    %v210 = vmul.f32 %v205, %v209
    %211 = vrot.lane.b32.xlu0 %v162, 64
    %v212 = vpop.permute.xlu0 %211
    %v215 = vsel %vm175, %v210, 0
    %217 = vmatpush.msra.mxu0 0.0
    %218 = vmatpush.msra.mxu0 0.0
    %219 = vmatpush.msra.mxu0 0.0
    %220 = vmatpush.msra.mxu0 0.0
    %221 = vmatpush.msra.mxu0 0.0
    %222 = vmatpush.msra.mxu0 0.0
    %223 = vmatpush.msra.mxu0 0.0
    %224 = vmatpush.msra.mxu0 0.0
    %225 = vmatpush.msra.mxu0 0.0
    %226 = vmatpush.msra.mxu0 0.0
    %227 = vmatpush.msra.mxu0 0.0
    %228 = vmatpush.msra.mxu0 0.0
    %229 = vmatpush.msra.mxu0 0.0
    %230 = vmatpush.msra.mxu0 0.0
    %231 = vmatpush.msra.mxu0 0.0
    %232 = vmatpush.msra.mxu0 %v212
    %233 = vmatmul.f32.gmra.mxu0 %v215
    %v234 = vpop.f32.mrf.mxu0
    %v235 = vadd.f32 0.0, %v234
    %236 = vdwg.mxu0
    %237 = vrot.lane.b32.xlu0 %v162, 120
    %v238 = vpop.permute.xlu0 %237
    %239 = vrot.lane.b32.xlu0 %v162, 88
    %v240 = vpop.permute.xlu0 %239
    %v241 = vsel %vm175, %v238, 0
    %v243 = vsel %vm175, %v240, 0
    %245 = vmatpush.xpose.msra.mxu0 0.0
    %246 = vmatpush.xpose.msra.mxu0 0.0
    %247 = vmatpush.xpose.msra.mxu0 0.0
    %248 = vmatpush.xpose.msra.mxu0 0.0
    %249 = vmatpush.xpose.msra.mxu0 0.0
    %250 = vmatpush.xpose.msra.mxu0 0.0
    %251 = vmatpush.xpose.msra.mxu0 0.0
    %252 = vmatpush.xpose.msra.mxu0 0.0
    %253 = vmatpush.xpose.msra.mxu0 0.0
    %254 = vmatpush.xpose.msra.mxu0 0.0
    %255 = vmatpush.xpose.msra.mxu0 0.0
    %256 = vmatpush.xpose.msra.mxu0 0.0
    %257 = vmatpush.xpose.msra.mxu0 0.0
    %258 = vmatpush.xpose.msra.mxu0 0.0
    %259 = vmatpush.xpose.msra.mxu0 0.0
    %260 = vmatpush.xpose.msra.mxu0 %v243
    %261 = vmatmul.f32.gmra.mxu0 %v241
    %v262 = vpop.f32.mrf.mxu0
    %v263 = vadd.f32 %v171, %v262
    %264 = vdwg.mxu0
    %v265 = vsel %vm175, %v263, -inf
    %266 = vmax.xlane.f32.xlu0 %v265
    %v267 = vpop.xlane.xlu0 %266
    %v268 = vsub.f32 %v263, %v267
    %v269 = vmul.f32 %v268, 1.442695
    %v270 = vpow.pop %v269
    %v271 = vsel %vm175, %v270, 0.0
    %272 = vadd.xlane.f32.xlu0 %v271
    %v273 = vpop.xlane.xlu0 %272
    %v274 = vrcp.pop %v273
    %v275 = vmul.f32 %v270, %v274
    %276 = vrot.lane.b32.xlu0 %v162, 56
    %v277 = vpop.permute.xlu0 %276
    %v280 = vsel %vm175, %v275, 0
    %282 = vmatpush.msra.mxu0 0.0
    %283 = vmatpush.msra.mxu0 0.0
    %284 = vmatpush.msra.mxu0 0.0
    %285 = vmatpush.msra.mxu0 0.0
    %286 = vmatpush.msra.mxu0 0.0
    %287 = vmatpush.msra.mxu0 0.0
    %288 = vmatpush.msra.mxu0 0.0
    %289 = vmatpush.msra.mxu0 0.0
    %290 = vmatpush.msra.mxu0 0.0
    %291 = vmatpush.msra.mxu0 0.0
    %292 = vmatpush.msra.mxu0 0.0
    %293 = vmatpush.msra.mxu0 0.0
    %294 = vmatpush.msra.mxu0 0.0
    %295 = vmatpush.msra.mxu0 0.0
    %296 = vmatpush.msra.mxu0 0.0
    %297 = vmatpush.msra.mxu0 %v277
    %298 = vmatmul.f32.gmra.mxu0 %v280
    %v299 = vpop.f32.mrf.mxu0
    %v300 = vadd.f32 0.0, %v299
    %301 = vdwg.mxu0
    %v303 = vsel %vm175, %v300, 0
    %305 = vmatpush.msra.mxu0 0.0
    %306 = vmatpush.msra.mxu0 0.0
    %307 = vmatpush.msra.mxu0 0.0
    %308 = vmatpush.msra.mxu0 0.0
    %309 = vmatpush.msra.mxu0 0.0
    %310 = vmatpush.msra.mxu0 0.0
    %311 = vmatpush.msra.mxu0 0.0
    %312 = vmatpush.msra.mxu0 0.0
    %313 = vmatpush.msra.mxu0 0.0
    %314 = vmatpush.msra.mxu0 0.0
    %315 = vmatpush.msra.mxu0 0.0
    %316 = vmatpush.msra.mxu0 0.0
    %317 = vmatpush.msra.mxu0 0.0
    %318 = vmatpush.msra.mxu0 0.0
    %319 = vmatpush.msra.mxu0 0.0
    %320 = vmatpush.msra.mxu0 %v168
    %321 = vmatmul.f32.gmra.mxu0 %v303
    %v322 = vpop.f32.mrf.mxu0
    %v323 = vadd.f32 0.0, %v322
    %324 = vdwg.mxu0
    %v326 = vsel %vm175, %v235, 0
    %328 = vmatpush.msra.mxu0 0.0
    %329 = vmatpush.msra.mxu0 0.0
    %330 = vmatpush.msra.mxu0 0.0
    %331 = vmatpush.msra.mxu0 0.0
    %332 = vmatpush.msra.mxu0 0.0
    %333 = vmatpush.msra.mxu0 0.0
    %334 = vmatpush.msra.mxu0 0.0
    %335 = vmatpush.msra.mxu0 0.0
    %336 = vmatpush.msra.mxu0 0.0
    %337 = vmatpush.msra.mxu0 0.0
    %338 = vmatpush.msra.mxu0 0.0
    %339 = vmatpush.msra.mxu0 0.0
    %340 = vmatpush.msra.mxu0 0.0
    %341 = vmatpush.msra.mxu0 0.0
    %342 = vmatpush.msra.mxu0 0.0
    %343 = vmatpush.msra.mxu0 %v167
    %344 = vmatmul.f32.gmra.mxu0 %v326
    %v345 = vpop.f32.mrf.mxu0
    %v346 = vadd.f32 %v323, %v345
    %347 = vdwg.mxu0
    %348 = vrot.lane.b32.xlu0 %v162, 112
    %v349 = vpop.permute.xlu0 %348
    %350 = vrot.lane.b32.xlu0 %v162, 80
    %v351 = vpop.permute.xlu0 %350
    %v352 = vsel %vm175, %v349, 0
    %v354 = vsel %vm175, %v351, 0
    %356 = vmatpush.xpose.msra.mxu0 0.0
    %357 = vmatpush.xpose.msra.mxu0 0.0
    %358 = vmatpush.xpose.msra.mxu0 0.0
    %359 = vmatpush.xpose.msra.mxu0 0.0
    %360 = vmatpush.xpose.msra.mxu0 0.0
    %361 = vmatpush.xpose.msra.mxu0 0.0
    %362 = vmatpush.xpose.msra.mxu0 0.0
    %363 = vmatpush.xpose.msra.mxu0 0.0
    %364 = vmatpush.xpose.msra.mxu0 0.0
    %365 = vmatpush.xpose.msra.mxu0 0.0
    %366 = vmatpush.xpose.msra.mxu0 0.0
    %367 = vmatpush.xpose.msra.mxu0 0.0
    %368 = vmatpush.xpose.msra.mxu0 0.0
    %369 = vmatpush.xpose.msra.mxu0 0.0
    %370 = vmatpush.xpose.msra.mxu0 0.0
    %371 = vmatpush.xpose.msra.mxu0 %v354
    %372 = vmatmul.f32.gmra.mxu0 %v352
    %v373 = vpop.f32.mrf.mxu0
    %v374 = vadd.f32 %v171, %v373
    %375 = vdwg.mxu0
    %v376 = vsel %vm175, %v374, -inf
    %377 = vmax.xlane.f32.xlu0 %v376
    %v378 = vpop.xlane.xlu0 %377
    %v379 = vsub.f32 %v374, %v378
    %v380 = vmul.f32 %v379, 1.442695
    %v381 = vpow.pop %v380
    %v382 = vsel %vm175, %v381, 0.0
    %383 = vadd.xlane.f32.xlu0 %v382
    %v384 = vpop.xlane.xlu0 %383
    %v385 = vrcp.pop %v384
    %v386 = vmul.f32 %v381, %v385
    %387 = vrot.lane.b32.xlu0 %v162, 48
    %v388 = vpop.permute.xlu0 %387
    %v391 = vsel %vm175, %v386, 0
    %393 = vmatpush.msra.mxu0 0.0
    %394 = vmatpush.msra.mxu0 0.0
    %395 = vmatpush.msra.mxu0 0.0
    %396 = vmatpush.msra.mxu0 0.0
    %397 = vmatpush.msra.mxu0 0.0
    %398 = vmatpush.msra.mxu0 0.0
    %399 = vmatpush.msra.mxu0 0.0
    %400 = vmatpush.msra.mxu0 0.0
    %401 = vmatpush.msra.mxu0 0.0
    %402 = vmatpush.msra.mxu0 0.0
    %403 = vmatpush.msra.mxu0 0.0
    %404 = vmatpush.msra.mxu0 0.0
    %405 = vmatpush.msra.mxu0 0.0
    %406 = vmatpush.msra.mxu0 0.0
    %407 = vmatpush.msra.mxu0 0.0
    %408 = vmatpush.msra.mxu0 %v388
    %409 = vmatmul.f32.gmra.mxu0 %v391
    %v410 = vpop.f32.mrf.mxu0
    %v411 = vadd.f32 0.0, %v410
    %412 = vdwg.mxu0
    %v414 = vsel %vm175, %v411, 0
    %416 = vmatpush.msra.mxu0 0.0
    %417 = vmatpush.msra.mxu0 0.0
    %418 = vmatpush.msra.mxu0 0.0
    %419 = vmatpush.msra.mxu0 0.0
    %420 = vmatpush.msra.mxu0 0.0
    %421 = vmatpush.msra.mxu0 0.0
    %422 = vmatpush.msra.mxu0 0.0
    %423 = vmatpush.msra.mxu0 0.0
    %424 = vmatpush.msra.mxu0 0.0
    %425 = vmatpush.msra.mxu0 0.0
    %426 = vmatpush.msra.mxu0 0.0
    %427 = vmatpush.msra.mxu0 0.0
    %428 = vmatpush.msra.mxu0 0.0
    %429 = vmatpush.msra.mxu0 0.0
    %430 = vmatpush.msra.mxu0 0.0
    %431 = vmatpush.msra.mxu0 %v169
    %432 = vmatmul.f32.gmra.mxu0 %v414
    %v433 = vpop.f32.mrf.mxu0
    %v434 = vadd.f32 0.0, %v433
    %435 = vdwg.mxu0
    %v436 = vadd.f32 %v346, %v434
    %437 = vrot.lane.b32.xlu0 %v162, 104
    %v438 = vpop.permute.xlu0 %437
    %439 = vrot.lane.b32.xlu0 %v162, 72
    %v440 = vpop.permute.xlu0 %439
    %v441 = vsel %vm175, %v438, 0
    %v443 = vsel %vm175, %v440, 0
    %445 = vmatpush.xpose.msra.mxu0 0.0
    %446 = vmatpush.xpose.msra.mxu0 0.0
    %447 = vmatpush.xpose.msra.mxu0 0.0
    %448 = vmatpush.xpose.msra.mxu0 0.0
    %449 = vmatpush.xpose.msra.mxu0 0.0
    %450 = vmatpush.xpose.msra.mxu0 0.0
    %451 = vmatpush.xpose.msra.mxu0 0.0
    %452 = vmatpush.xpose.msra.mxu0 0.0
    %453 = vmatpush.xpose.msra.mxu0 0.0
    %454 = vmatpush.xpose.msra.mxu0 0.0
    %455 = vmatpush.xpose.msra.mxu0 0.0
    %456 = vmatpush.xpose.msra.mxu0 0.0
    %457 = vmatpush.xpose.msra.mxu0 0.0
    %458 = vmatpush.xpose.msra.mxu0 0.0
    %459 = vmatpush.xpose.msra.mxu0 0.0
    %460 = vmatpush.xpose.msra.mxu0 %v443
    %461 = vmatmul.f32.gmra.mxu0 %v441
    %v462 = vpop.f32.mrf.mxu0
    %v463 = vadd.f32 %v171, %v462
    %464 = vdwg.mxu0
    %v465 = vsel %vm175, %v463, -inf
    %466 = vmax.xlane.f32.xlu0 %v465
    %v467 = vpop.xlane.xlu0 %466
    %v468 = vsub.f32 %v463, %v467
    %v469 = vmul.f32 %v468, 1.442695
    %v470 = vpow.pop %v469
    %v471 = vsel %vm175, %v470, 0.0
    %472 = vadd.xlane.f32.xlu0 %v471
    %v473 = vpop.xlane.xlu0 %472
    %v474 = vrcp.pop %v473
    %v475 = vmul.f32 %v470, %v474
    %476 = vrot.lane.b32.xlu0 %v162, 40
    %v477 = vpop.permute.xlu0 %476
    %v480 = vsel %vm175, %v475, 0
    %482 = vmatpush.msra.mxu0 0.0
    %483 = vmatpush.msra.mxu0 0.0
    %484 = vmatpush.msra.mxu0 0.0
    %485 = vmatpush.msra.mxu0 0.0
    %486 = vmatpush.msra.mxu0 0.0
    %487 = vmatpush.msra.mxu0 0.0
    %488 = vmatpush.msra.mxu0 0.0
    %489 = vmatpush.msra.mxu0 0.0
    %490 = vmatpush.msra.mxu0 0.0
    %491 = vmatpush.msra.mxu0 0.0
    %492 = vmatpush.msra.mxu0 0.0
    %493 = vmatpush.msra.mxu0 0.0
    %494 = vmatpush.msra.mxu0 0.0
    %495 = vmatpush.msra.mxu0 0.0
    %496 = vmatpush.msra.mxu0 0.0
    %497 = vmatpush.msra.mxu0 %v477
    %498 = vmatmul.f32.gmra.mxu0 %v480
    %v499 = vpop.f32.mrf.mxu0
    %v500 = vadd.f32 0.0, %v499
    %501 = vdwg.mxu0
    %v503 = vsel %vm175, %v500, 0
    %505 = vmatpush.msra.mxu0 0.0
    %506 = vmatpush.msra.mxu0 0.0
    %507 = vmatpush.msra.mxu0 0.0
    %508 = vmatpush.msra.mxu0 0.0
    %509 = vmatpush.msra.mxu0 0.0
    %510 = vmatpush.msra.mxu0 0.0
    %511 = vmatpush.msra.mxu0 0.0
    %512 = vmatpush.msra.mxu0 0.0
    %513 = vmatpush.msra.mxu0 0.0
    %514 = vmatpush.msra.mxu0 0.0
    %515 = vmatpush.msra.mxu0 0.0
    %516 = vmatpush.msra.mxu0 0.0
    %517 = vmatpush.msra.mxu0 0.0
    %518 = vmatpush.msra.mxu0 0.0
    %519 = vmatpush.msra.mxu0 0.0
    %520 = vmatpush.msra.mxu0 %v170
    %521 = vmatmul.f32.gmra.mxu0 %v503
    %v522 = vpop.f32.mrf.mxu0
    %v523 = vadd.f32 0.0, %v522
    %524 = vdwg.mxu0
    %v525 = vadd.f32 %v436, %v523
    %v526 = vperm.slane %v129, 1
    %528 = vrot.lane.b32.xlu0 %v165, 96
    %v529 = vpop.permute.xlu0 %528
    %v530 = vsel %vm175, %v165, 0
    %v532 = vsel %vm175, %v529, 0
    %534 = vmatpush.xpose.msra.mxu0 0.0
    %535 = vmatpush.xpose.msra.mxu0 0.0
    %536 = vmatpush.xpose.msra.mxu0 0.0
    %537 = vmatpush.xpose.msra.mxu0 0.0
    %538 = vmatpush.xpose.msra.mxu0 0.0
    %539 = vmatpush.xpose.msra.mxu0 0.0
    %540 = vmatpush.xpose.msra.mxu0 0.0
    %541 = vmatpush.xpose.msra.mxu0 0.0
    %542 = vmatpush.xpose.msra.mxu0 0.0
    %543 = vmatpush.xpose.msra.mxu0 0.0
    %544 = vmatpush.xpose.msra.mxu0 0.0
    %545 = vmatpush.xpose.msra.mxu0 0.0
    %546 = vmatpush.xpose.msra.mxu0 0.0
    %547 = vmatpush.xpose.msra.mxu0 0.0
    %548 = vmatpush.xpose.msra.mxu0 0.0
    %549 = vmatpush.xpose.msra.mxu0 %v532
    %550 = vmatmul.f32.gmra.mxu0 %v530
    %v551 = vpop.f32.mrf.mxu0
    %v552 = vadd.f32 %v526, %v551
    %553 = vdwg.mxu0
    %v554 = vsel %vm175, %v552, -inf
    %555 = vmax.xlane.f32.xlu0 %v554
    %v556 = vpop.xlane.xlu0 %555
    %v557 = vsub.f32 %v552, %v556
    %v558 = vmul.f32 %v557, 1.442695
    %v559 = vpow.pop %v558
    %v560 = vsel %vm175, %v559, 0.0
    %561 = vadd.xlane.f32.xlu0 %v560
    %v562 = vpop.xlane.xlu0 %561
    %v563 = vrcp.pop %v562
    %v564 = vmul.f32 %v559, %v563
    %565 = vrot.lane.b32.xlu0 %v165, 64
    %v566 = vpop.permute.xlu0 %565
    %v569 = vsel %vm175, %v564, 0
    %571 = vmatpush.msra.mxu0 0.0
    %572 = vmatpush.msra.mxu0 0.0
    %573 = vmatpush.msra.mxu0 0.0
    %574 = vmatpush.msra.mxu0 0.0
    %575 = vmatpush.msra.mxu0 0.0
    %576 = vmatpush.msra.mxu0 0.0
    %577 = vmatpush.msra.mxu0 0.0
    %578 = vmatpush.msra.mxu0 0.0
    %579 = vmatpush.msra.mxu0 0.0
    %580 = vmatpush.msra.mxu0 0.0
    %581 = vmatpush.msra.mxu0 0.0
    %582 = vmatpush.msra.mxu0 0.0
    %583 = vmatpush.msra.mxu0 0.0
    %584 = vmatpush.msra.mxu0 0.0
    %585 = vmatpush.msra.mxu0 0.0
    %586 = vmatpush.msra.mxu0 %v566
    %587 = vmatmul.f32.gmra.mxu0 %v569
    %v588 = vpop.f32.mrf.mxu0
    %v589 = vadd.f32 0.0, %v588
    %590 = vdwg.mxu0
    %591 = vrot.lane.b32.xlu0 %v165, 120
    %v592 = vpop.permute.xlu0 %591
    %593 = vrot.lane.b32.xlu0 %v165, 88
    %v594 = vpop.permute.xlu0 %593
    %v595 = vsel %vm175, %v592, 0
    %v597 = vsel %vm175, %v594, 0
    %599 = vmatpush.xpose.msra.mxu0 0.0
    %600 = vmatpush.xpose.msra.mxu0 0.0
    %601 = vmatpush.xpose.msra.mxu0 0.0
    %602 = vmatpush.xpose.msra.mxu0 0.0
    %603 = vmatpush.xpose.msra.mxu0 0.0
    %604 = vmatpush.xpose.msra.mxu0 0.0
    %605 = vmatpush.xpose.msra.mxu0 0.0
    %606 = vmatpush.xpose.msra.mxu0 0.0
    %607 = vmatpush.xpose.msra.mxu0 0.0
    %608 = vmatpush.xpose.msra.mxu0 0.0
    %609 = vmatpush.xpose.msra.mxu0 0.0
    %610 = vmatpush.xpose.msra.mxu0 0.0
    %611 = vmatpush.xpose.msra.mxu0 0.0
    %612 = vmatpush.xpose.msra.mxu0 0.0
    %613 = vmatpush.xpose.msra.mxu0 0.0
    %614 = vmatpush.xpose.msra.mxu0 %v597
    %615 = vmatmul.f32.gmra.mxu0 %v595
    %v616 = vpop.f32.mrf.mxu0
    %v617 = vadd.f32 %v526, %v616
    %618 = vdwg.mxu0
    %v619 = vsel %vm175, %v617, -inf
    %620 = vmax.xlane.f32.xlu0 %v619
    %v621 = vpop.xlane.xlu0 %620
    %v622 = vsub.f32 %v617, %v621
    %v623 = vmul.f32 %v622, 1.442695
    %v624 = vpow.pop %v623
    %v625 = vsel %vm175, %v624, 0.0
    %626 = vadd.xlane.f32.xlu0 %v625
    %v627 = vpop.xlane.xlu0 %626
    %v628 = vrcp.pop %v627
    %v629 = vmul.f32 %v624, %v628
    %630 = vrot.lane.b32.xlu0 %v165, 56
    %v631 = vpop.permute.xlu0 %630
    %v634 = vsel %vm175, %v629, 0
    %636 = vmatpush.msra.mxu0 0.0
    %637 = vmatpush.msra.mxu0 0.0
    %638 = vmatpush.msra.mxu0 0.0
    %639 = vmatpush.msra.mxu0 0.0
    %640 = vmatpush.msra.mxu0 0.0
    %641 = vmatpush.msra.mxu0 0.0
    %642 = vmatpush.msra.mxu0 0.0
    %643 = vmatpush.msra.mxu0 0.0
    %644 = vmatpush.msra.mxu0 0.0
    %645 = vmatpush.msra.mxu0 0.0
    %646 = vmatpush.msra.mxu0 0.0
    %647 = vmatpush.msra.mxu0 0.0
    %648 = vmatpush.msra.mxu0 0.0
    %649 = vmatpush.msra.mxu0 0.0
    %650 = vmatpush.msra.mxu0 0.0
    %651 = vmatpush.msra.mxu0 %v631
    %652 = vmatmul.f32.gmra.mxu0 %v634
    %v653 = vpop.f32.mrf.mxu0
    %v654 = vadd.f32 0.0, %v653
    %655 = vdwg.mxu0
    %v657 = vsel %vm175, %v654, 0
    %659 = vmatpush.msra.mxu0 0.0
    %660 = vmatpush.msra.mxu0 0.0
    %661 = vmatpush.msra.mxu0 0.0
    %662 = vmatpush.msra.mxu0 0.0
    %663 = vmatpush.msra.mxu0 0.0
    %664 = vmatpush.msra.mxu0 0.0
    %665 = vmatpush.msra.mxu0 0.0
    %666 = vmatpush.msra.mxu0 0.0
    %667 = vmatpush.msra.mxu0 0.0
    %668 = vmatpush.msra.mxu0 0.0
    %669 = vmatpush.msra.mxu0 0.0
    %670 = vmatpush.msra.mxu0 0.0
    %671 = vmatpush.msra.mxu0 0.0
    %672 = vmatpush.msra.mxu0 0.0
    %673 = vmatpush.msra.mxu0 0.0
    %674 = vmatpush.msra.mxu0 %v168
    %675 = vmatmul.f32.gmra.mxu0 %v657
    %v676 = vpop.f32.mrf.mxu0
    %v677 = vadd.f32 0.0, %v676
    %678 = vdwg.mxu0
    %v680 = vsel %vm175, %v589, 0
    %682 = vmatpush.msra.mxu0 0.0
    %683 = vmatpush.msra.mxu0 0.0
    %684 = vmatpush.msra.mxu0 0.0
    %685 = vmatpush.msra.mxu0 0.0
    %686 = vmatpush.msra.mxu0 0.0
    %687 = vmatpush.msra.mxu0 0.0
    %688 = vmatpush.msra.mxu0 0.0
    %689 = vmatpush.msra.mxu0 0.0
    %690 = vmatpush.msra.mxu0 0.0
    %691 = vmatpush.msra.mxu0 0.0
    %692 = vmatpush.msra.mxu0 0.0
    %693 = vmatpush.msra.mxu0 0.0
    %694 = vmatpush.msra.mxu0 0.0
    %695 = vmatpush.msra.mxu0 0.0
    %696 = vmatpush.msra.mxu0 0.0
    %697 = vmatpush.msra.mxu0 %v167
    %698 = vmatmul.f32.gmra.mxu0 %v680
    %v699 = vpop.f32.mrf.mxu0
    %v700 = vadd.f32 %v677, %v699
    %701 = vdwg.mxu0
    %702 = vrot.lane.b32.xlu0 %v165, 112
    %v703 = vpop.permute.xlu0 %702
    %704 = vrot.lane.b32.xlu0 %v165, 80
    %v705 = vpop.permute.xlu0 %704
    %v706 = vsel %vm175, %v703, 0
    %v708 = vsel %vm175, %v705, 0
    %710 = vmatpush.xpose.msra.mxu0 0.0
    %711 = vmatpush.xpose.msra.mxu0 0.0
    %712 = vmatpush.xpose.msra.mxu0 0.0
    %713 = vmatpush.xpose.msra.mxu0 0.0
    %714 = vmatpush.xpose.msra.mxu0 0.0
    %715 = vmatpush.xpose.msra.mxu0 0.0
    %716 = vmatpush.xpose.msra.mxu0 0.0
    %717 = vmatpush.xpose.msra.mxu0 0.0
    %718 = vmatpush.xpose.msra.mxu0 0.0
    %719 = vmatpush.xpose.msra.mxu0 0.0
    %720 = vmatpush.xpose.msra.mxu0 0.0
    %721 = vmatpush.xpose.msra.mxu0 0.0
    %722 = vmatpush.xpose.msra.mxu0 0.0
    %723 = vmatpush.xpose.msra.mxu0 0.0
    %724 = vmatpush.xpose.msra.mxu0 0.0
    %725 = vmatpush.xpose.msra.mxu0 %v708
    %726 = vmatmul.f32.gmra.mxu0 %v706
    %v727 = vpop.f32.mrf.mxu0
    %v728 = vadd.f32 %v526, %v727
    %729 = vdwg.mxu0
    %v730 = vsel %vm175, %v728, -inf
    %731 = vmax.xlane.f32.xlu0 %v730
    %v732 = vpop.xlane.xlu0 %731
    %v733 = vsub.f32 %v728, %v732
    %v734 = vmul.f32 %v733, 1.442695
    %v735 = vpow.pop %v734
    %v736 = vsel %vm175, %v735, 0.0
    %737 = vadd.xlane.f32.xlu0 %v736
    %v738 = vpop.xlane.xlu0 %737
    %v739 = vrcp.pop %v738
    %v740 = vmul.f32 %v735, %v739
    %741 = vrot.lane.b32.xlu0 %v165, 48
    %v742 = vpop.permute.xlu0 %741
    %v745 = vsel %vm175, %v740, 0
    %747 = vmatpush.msra.mxu0 0.0
    %748 = vmatpush.msra.mxu0 0.0
    %749 = vmatpush.msra.mxu0 0.0
    %750 = vmatpush.msra.mxu0 0.0
    %751 = vmatpush.msra.mxu0 0.0
    %752 = vmatpush.msra.mxu0 0.0
    %753 = vmatpush.msra.mxu0 0.0
    %754 = vmatpush.msra.mxu0 0.0
    %755 = vmatpush.msra.mxu0 0.0
    %756 = vmatpush.msra.mxu0 0.0
    %757 = vmatpush.msra.mxu0 0.0
    %758 = vmatpush.msra.mxu0 0.0
    %759 = vmatpush.msra.mxu0 0.0
    %760 = vmatpush.msra.mxu0 0.0
    %761 = vmatpush.msra.mxu0 0.0
    %762 = vmatpush.msra.mxu0 %v742
    %763 = vmatmul.f32.gmra.mxu0 %v745
    %v764 = vpop.f32.mrf.mxu0
    %v765 = vadd.f32 0.0, %v764
    %766 = vdwg.mxu0
    %v768 = vsel %vm175, %v765, 0
    %770 = vmatpush.msra.mxu0 0.0
    %771 = vmatpush.msra.mxu0 0.0
    %772 = vmatpush.msra.mxu0 0.0
    %773 = vmatpush.msra.mxu0 0.0
    %774 = vmatpush.msra.mxu0 0.0
    %775 = vmatpush.msra.mxu0 0.0
    %776 = vmatpush.msra.mxu0 0.0
    %777 = vmatpush.msra.mxu0 0.0
    %778 = vmatpush.msra.mxu0 0.0
    %779 = vmatpush.msra.mxu0 0.0
    %780 = vmatpush.msra.mxu0 0.0
    %781 = vmatpush.msra.mxu0 0.0
    %782 = vmatpush.msra.mxu0 0.0
    %783 = vmatpush.msra.mxu0 0.0
    %784 = vmatpush.msra.mxu0 0.0
    %785 = vmatpush.msra.mxu0 %v169
    %786 = vmatmul.f32.gmra.mxu0 %v768
    %v787 = vpop.f32.mrf.mxu0
    %v788 = vadd.f32 0.0, %v787
    %789 = vdwg.mxu0
    %v790 = vadd.f32 %v700, %v788
    %791 = vrot.lane.b32.xlu0 %v165, 104
    %v792 = vpop.permute.xlu0 %791
    %793 = vrot.lane.b32.xlu0 %v165, 72
    %v794 = vpop.permute.xlu0 %793
    %v795 = vsel %vm175, %v792, 0
    %v797 = vsel %vm175, %v794, 0
    %799 = vmatpush.xpose.msra.mxu0 0.0
    %800 = vmatpush.xpose.msra.mxu0 0.0
    %801 = vmatpush.xpose.msra.mxu0 0.0
    %802 = vmatpush.xpose.msra.mxu0 0.0
    %803 = vmatpush.xpose.msra.mxu0 0.0
    %804 = vmatpush.xpose.msra.mxu0 0.0
    %805 = vmatpush.xpose.msra.mxu0 0.0
    %806 = vmatpush.xpose.msra.mxu0 0.0
    %807 = vmatpush.xpose.msra.mxu0 0.0
    %808 = vmatpush.xpose.msra.mxu0 0.0
    %809 = vmatpush.xpose.msra.mxu0 0.0
    %810 = vmatpush.xpose.msra.mxu0 0.0
    %811 = vmatpush.xpose.msra.mxu0 0.0
    %812 = vmatpush.xpose.msra.mxu0 0.0
    %813 = vmatpush.xpose.msra.mxu0 0.0
    %814 = vmatpush.xpose.msra.mxu0 %v797
    %815 = vmatmul.f32.gmra.mxu0 %v795
    %v816 = vpop.f32.mrf.mxu0
    %v817 = vadd.f32 %v526, %v816
    %818 = vdwg.mxu0
    %v819 = vsel %vm175, %v817, -inf
    %820 = vmax.xlane.f32.xlu0 %v819
    %v821 = vpop.xlane.xlu0 %820
    %v822 = vsub.f32 %v817, %v821
    %v823 = vmul.f32 %v822, 1.442695
    %v824 = vpow.pop %v823
    %v825 = vsel %vm175, %v824, 0.0
    %826 = vadd.xlane.f32.xlu0 %v825
    %v827 = vpop.xlane.xlu0 %826
    %v828 = vrcp.pop %v827
    %v829 = vmul.f32 %v824, %v828
    %830 = vrot.lane.b32.xlu0 %v165, 40
    %v831 = vpop.permute.xlu0 %830
    %v834 = vsel %vm175, %v829, 0
    %836 = vmatpush.msra.mxu0 0.0
    %837 = vmatpush.msra.mxu0 0.0
    %838 = vmatpush.msra.mxu0 0.0
    %839 = vmatpush.msra.mxu0 0.0
    %840 = vmatpush.msra.mxu0 0.0
    %841 = vmatpush.msra.mxu0 0.0
    %842 = vmatpush.msra.mxu0 0.0
    %843 = vmatpush.msra.mxu0 0.0
    %844 = vmatpush.msra.mxu0 0.0
    %845 = vmatpush.msra.mxu0 0.0
    %846 = vmatpush.msra.mxu0 0.0
    %847 = vmatpush.msra.mxu0 0.0
    %848 = vmatpush.msra.mxu0 0.0
    %849 = vmatpush.msra.mxu0 0.0
    %850 = vmatpush.msra.mxu0 0.0
    %851 = vmatpush.msra.mxu0 %v831
    %852 = vmatmul.f32.gmra.mxu0 %v834
    %v853 = vpop.f32.mrf.mxu0
    %v854 = vadd.f32 0.0, %v853
    %855 = vdwg.mxu0
    %v857 = vsel %vm175, %v854, 0
    %859 = vmatpush.msra.mxu0 0.0
    %860 = vmatpush.msra.mxu0 0.0
    %861 = vmatpush.msra.mxu0 0.0
    %862 = vmatpush.msra.mxu0 0.0
    %863 = vmatpush.msra.mxu0 0.0
    %864 = vmatpush.msra.mxu0 0.0
    %865 = vmatpush.msra.mxu0 0.0
    %866 = vmatpush.msra.mxu0 0.0
    %867 = vmatpush.msra.mxu0 0.0
    %868 = vmatpush.msra.mxu0 0.0
    %869 = vmatpush.msra.mxu0 0.0
    %870 = vmatpush.msra.mxu0 0.0
    %871 = vmatpush.msra.mxu0 0.0
    %872 = vmatpush.msra.mxu0 0.0
    %873 = vmatpush.msra.mxu0 0.0
    %874 = vmatpush.msra.mxu0 %v170
    %875 = vmatmul.f32.gmra.mxu0 %v857
    %v876 = vpop.f32.mrf.mxu0
    %v877 = vadd.f32 0.0, %v876
    %878 = vdwg.mxu0
    %v879 = vadd.f32 %v790, %v877
    %v880 = vld [vmem:[%s7] sm:$0x1]
    %v882 = vperm.slane %v880, 0
    %v884 = vadd.f32 %v525, %v882
    %v885 = vadd.f32 %v879, %v882
    %v886 = vadd.f32 %v884, %v127
    %v887 = vadd.f32 %v885, %v128
    %v888 = vld [vmem:[%s8] sm:$0x1]
    %v889 = vld [vmem:[%s9] sm:$0x1]
    %v890 = vsel %vm67, %v886, 0.0
    %891 = vadd.xlane.f32.xlu0 %v890
    %v892 = vpop.xlane.xlu0 %891
    %v893 = vsel %vm67, %v887, 0.0
    %894 = vadd.xlane.f32.xlu0 %v893
    %v895 = vpop.xlane.xlu0 %894
    %v896 = vmul.f32 %v892, %v80
    %v897 = vmul.f32 %v895, %v80
    %v898 = vsub.f32 %v886, %v896
    %v899 = vsub.f32 %v887, %v897
    %v900 = vmul.f32 %v898, %v898
    %v901 = vmul.f32 %v899, %v899
    %v902 = vsel %vm67, %v900, 0.0
    %903 = vadd.xlane.f32.xlu0 %v902
    %v904 = vpop.xlane.xlu0 %903
    %v905 = vsel %vm67, %v901, 0.0
    %906 = vadd.xlane.f32.xlu0 %v905
    %v907 = vpop.xlane.xlu0 %906
    %v908 = vmul.f32 %v904, %v80
    %v909 = vmul.f32 %v907, %v80
    %v910 = vadd.f32 %v908, 1e-12
    %v911 = vadd.f32 %v909, 1e-12
    %v912 = vrsqrt.pop %v910
    %v913 = vmul.f32 %v912, %v910
    %v914 = vmul.f32 %v913, %v912
    %v915 = vmul.f32 0.5, %v914
    %v916 = vsub.f32 1.5, %v915
    %v917 = vmul.f32 %v912, %v916
    %vm918 = vweird.f32 %v910
    %vm919 = vweird.f32 %v912
    %vm920 = vmor %vm918, %vm919
    %v921 = vsel %vm920, %v912, %v917
    %v922 = vrsqrt.pop %v911
    %v923 = vmul.f32 %v922, %v911
    %v924 = vmul.f32 %v923, %v922
    %v925 = vmul.f32 0.5, %v924
    %v926 = vsub.f32 1.5, %v925
    %v927 = vmul.f32 %v922, %v926
    %vm928 = vweird.f32 %v911
    %vm929 = vweird.f32 %v922
    %vm930 = vmor %vm928, %vm929
    %v931 = vsel %vm930, %v922, %v927
    %v932 = vmul.f32 %v898, %v921
    %v933 = vmul.f32 %v899, %v931
    %v935 = vperm.slane %v888, 0
    %v937 = vmul.f32 %v932, %v935
    %v938 = vmul.f32 %v933, %v935
    %v940 = vperm.slane %v889, 0
    %v942 = vadd.f32 %v937, %v940
    %v943 = vadd.f32 %v938, %v940
    %v944 = vld [vmem:[%s10] sm:$0xff]
    %v945 = vld [vmem:[%s10 + $0x8] sm:$0xff]
    %v946 = vld [vmem:[%s10 + $0x10] sm:$0xff]
    %v947 = vld [vmem:[%s10 + $0x18] sm:$0xff]
    %v948 = vld [vmem:[%s11] sm:$0x1]
    %v950 = vperm.slane %v948, 0
    %v953 = vsel %vm67, %v942, 0
    %v956 = vsel %vm67, %v943, 0
    %958 = vmatpush.msra.mxu0 0.0
    %959 = vmatpush.msra.mxu0 0.0
    %960 = vmatpush.msra.mxu0 0.0
    %961 = vmatpush.msra.mxu0 0.0
    %962 = vmatpush.msra.mxu0 0.0
    %963 = vmatpush.msra.mxu0 0.0
    %964 = vmatpush.msra.mxu0 0.0
    %965 = vmatpush.msra.mxu0 0.0
    %966 = vmatpush.msra.mxu0 0.0
    %967 = vmatpush.msra.mxu0 0.0
    %968 = vmatpush.msra.mxu0 0.0
    %969 = vmatpush.msra.mxu0 0.0
    %970 = vmatpush.msra.mxu0 %v947
    %971 = vmatpush.msra.mxu0 %v946
    %972 = vmatpush.msra.mxu0 %v945
    %973 = vmatpush.msra.mxu0 %v944
    %974 = vmatmul.f32.gmra.mxu0 %v953
    %v975 = vpop.f32.mrf.mxu0
    %v976 = vadd.f32 %v950, %v975
    %977 = vmatmul.f32.gmra.mxu0 %v956
    %v978 = vpop.f32.mrf.mxu0
    %v979 = vadd.f32 %v950, %v978
    %980 = vdwg.mxu0
    %v981 = vmul.f32 %v976, 0.5
    %v982 = vmul.f32 %v979, 0.5
    %v983 = vmul.f32 %v976, 0.044715
    %v984 = vmul.f32 %v979, 0.044715
    %v985 = vmul.f32 %v983, %v976
    %v986 = vmul.f32 %v984, %v979
    %v987 = vmul.f32 %v985, %v976
    %v988 = vmul.f32 %v986, %v979
    %v989 = vadd.f32 %v976, %v987
    %v990 = vadd.f32 %v979, %v988
    %v991 = vmul.f32 %v989, 0.7978846
    %v992 = vmul.f32 %v990, 0.7978846
    %v993 = vtanh.pop %v991
    %v994 = vtanh.pop %v992
    %v995 = vadd.f32 %v993, 1.0
    %v996 = vadd.f32 %v994, 1.0
    %v997 = vmul.f32 %v981, %v995
    %v998 = vmul.f32 %v982, %v996
    %v999 = vld [vmem:[%s12] sm:$0xff]
    %v1000 = vld [vmem:[%s12 + $0x8] sm:$0xff]
    %v1001 = vld [vmem:[%s12 + $0x10] sm:$0xff]
    %v1002 = vld [vmem:[%s12 + $0x18] sm:$0xff]
    %v1003 = vld [vmem:[%s12 + $0x20] sm:$0xff]
    %v1004 = vld [vmem:[%s12 + $0x28] sm:$0xff]
    %v1005 = vld [vmem:[%s12 + $0x30] sm:$0xff]
    %v1006 = vld [vmem:[%s12 + $0x38] sm:$0xff]
    %v1007 = vld [vmem:[%s13] sm:$0x1]
    %v1009 = vperm.slane %v1007, 0
    %vm1011 = vcmask 523264
    %v1013 = vsel %vm1011, %v997, 0
    %v1016 = vsel %vm1011, %v998, 0
    %1018 = vmatpush.msra.mxu0 0.0
    %1019 = vmatpush.msra.mxu0 0.0
    %1020 = vmatpush.msra.mxu0 0.0
    %1021 = vmatpush.msra.mxu0 0.0
    %1022 = vmatpush.msra.mxu0 0.0
    %1023 = vmatpush.msra.mxu0 0.0
    %1024 = vmatpush.msra.mxu0 0.0
    %1025 = vmatpush.msra.mxu0 0.0
    %1026 = vmatpush.msra.mxu0 %v1006
    %1027 = vmatpush.msra.mxu0 %v1005
    %1028 = vmatpush.msra.mxu0 %v1004
    %1029 = vmatpush.msra.mxu0 %v1003
    %1030 = vmatpush.msra.mxu0 %v1002
    %1031 = vmatpush.msra.mxu0 %v1001
    %1032 = vmatpush.msra.mxu0 %v1000
    %1033 = vmatpush.msra.mxu0 %v999
    %1034 = vmatmul.f32.gmra.mxu0 %v1013
    %v1035 = vpop.f32.mrf.mxu0
    %v1036 = vadd.f32 %v1009, %v1035
    %1037 = vmatmul.f32.gmra.mxu0 %v1016
    %v1038 = vpop.f32.mrf.mxu0
    %v1039 = vadd.f32 %v1009, %v1038
    %1040 = vdwg.mxu0
    %v1041 = vadd.f32 %v1036, %v942
    %v1042 = vadd.f32 %v1039, %v943
    %v1043 = vld [vmem:[%s14] sm:$0x1]
    %v1044 = vld [vmem:[%s15] sm:$0x1]
    %v1045 = vsel %vm67, %v1041, 0.0
    %1046 = vadd.xlane.f32.xlu0 %v1045
    %v1047 = vpop.xlane.xlu0 %1046
    %v1048 = vsel %vm67, %v1042, 0.0
    %1049 = vadd.xlane.f32.xlu0 %v1048
    %v1050 = vpop.xlane.xlu0 %1049
    %v1051 = vmul.f32 %v1047, %v80
    %v1052 = vmul.f32 %v1050, %v80
    %v1053 = vsub.f32 %v1041, %v1051
    %v1054 = vsub.f32 %v1042, %v1052
    %v1055 = vmul.f32 %v1053, %v1053
    %v1056 = vmul.f32 %v1054, %v1054
    %v1057 = vsel %vm67, %v1055, 0.0
    %1058 = vadd.xlane.f32.xlu0 %v1057
    %v1059 = vpop.xlane.xlu0 %1058
    %v1060 = vsel %vm67, %v1056, 0.0
    %1061 = vadd.xlane.f32.xlu0 %v1060
    %v1062 = vpop.xlane.xlu0 %1061
    %v1063 = vmul.f32 %v1059, %v80
    %v1064 = vmul.f32 %v1062, %v80
    %v1065 = vadd.f32 %v1063, 1e-12
    %v1066 = vadd.f32 %v1064, 1e-12
    %v1067 = vrsqrt.pop %v1065
    %v1068 = vmul.f32 %v1067, %v1065
    %v1069 = vmul.f32 %v1068, %v1067
    %v1070 = vmul.f32 0.5, %v1069
    %v1071 = vsub.f32 1.5, %v1070
    %v1072 = vmul.f32 %v1067, %v1071
    %vm1073 = vweird.f32 %v1065
    %vm1074 = vweird.f32 %v1067
    %vm1075 = vmor %vm1073, %vm1074
    %v1076 = vsel %vm1075, %v1067, %v1072
    %v1077 = vrsqrt.pop %v1066
    %v1078 = vmul.f32 %v1077, %v1066
    %v1079 = vmul.f32 %v1078, %v1077
    %v1080 = vmul.f32 0.5, %v1079
    %v1081 = vsub.f32 1.5, %v1080
    %v1082 = vmul.f32 %v1077, %v1081
    %vm1083 = vweird.f32 %v1066
    %vm1084 = vweird.f32 %v1077
    %vm1085 = vmor %vm1083, %vm1084
    %v1086 = vsel %vm1085, %v1077, %v1082
    %v1087 = vmul.f32 %v1053, %v1076
    %v1088 = vmul.f32 %v1054, %v1086
    %v1090 = vperm.slane %v1043, 0
    %v1092 = vmul.f32 %v1087, %v1090
    %v1093 = vmul.f32 %v1088, %v1090
    %v1095 = vperm.slane %v1044, 0
    %v1097 = vadd.f32 %v1092, %v1095
    %v1098 = vadd.f32 %v1093, %v1095
    %s1099 = scalar_lea.vmem %s4, 32
    %v1100 = vld [vmem:[%s1099] sm:$0xff]
    %v1101 = vld [vmem:[%s1099 + $0x8] sm:$0xff]
    %v1102 = vld [vmem:[%s1099 + $0x10] sm:$0xff]
    %v1103 = vld [vmem:[%s1099 + $0x18] sm:$0xff]
    %s1104 = scalar_lea.vmem %s5, 1
    %v1105 = vld [vmem:[%s1104] sm:$0x1]
    %v1107 = vperm.slane %v1105, 0
    %v1110 = vsel %vm67, %v1097, 0
    %v1113 = vsel %vm67, %v1098, 0
    %1115 = vmatpush.msra.mxu0 0.0
    %1116 = vmatpush.msra.mxu0 0.0
    %1117 = vmatpush.msra.mxu0 0.0
    %1118 = vmatpush.msra.mxu0 0.0
    %1119 = vmatpush.msra.mxu0 0.0
    %1120 = vmatpush.msra.mxu0 0.0
    %1121 = vmatpush.msra.mxu0 0.0
    %1122 = vmatpush.msra.mxu0 0.0
    %1123 = vmatpush.msra.mxu0 0.0
    %1124 = vmatpush.msra.mxu0 0.0
    %1125 = vmatpush.msra.mxu0 0.0
    %1126 = vmatpush.msra.mxu0 0.0
    %1127 = vmatpush.msra.mxu0 %v1103
    %1128 = vmatpush.msra.mxu0 %v1102
    %1129 = vmatpush.msra.mxu0 %v1101
    %1130 = vmatpush.msra.mxu0 %v1100
    %1131 = vmatmul.f32.gmra.mxu0 %v1110
    %v1132 = vpop.f32.mrf.mxu0
    %v1133 = vadd.f32 %v1107, %v1132
    %1134 = vmatmul.f32.gmra.mxu0 %v1113
    %v1135 = vpop.f32.mrf.mxu0
    %v1136 = vadd.f32 %v1107, %v1135
    %1137 = vdwg.mxu0
    %s1138 = scalar_lea.vmem %s6, 32
    %v1139 = vld [vmem:[%s1138] sm:$0xff]
    %v1140 = vld [vmem:[%s1138 + $0x8] sm:$0xff]
    %v1141 = vld [vmem:[%s1138 + $0x10] sm:$0xff]
    %v1142 = vld [vmem:[%s1138 + $0x18] sm:$0xff]
    %1144 = vrot.lane.b32.xlu0 %v1133, 96
    %v1145 = vpop.permute.xlu0 %1144
    %v1146 = vsel %vm175, %v1133, 0
    %v1148 = vsel %vm175, %v1145, 0
    %1150 = vmatpush.xpose.msra.mxu0 0.0
    %1151 = vmatpush.xpose.msra.mxu0 0.0
    %1152 = vmatpush.xpose.msra.mxu0 0.0
    %1153 = vmatpush.xpose.msra.mxu0 0.0
    %1154 = vmatpush.xpose.msra.mxu0 0.0
    %1155 = vmatpush.xpose.msra.mxu0 0.0
    %1156 = vmatpush.xpose.msra.mxu0 0.0
    %1157 = vmatpush.xpose.msra.mxu0 0.0
    %1158 = vmatpush.xpose.msra.mxu0 0.0
    %1159 = vmatpush.xpose.msra.mxu0 0.0
    %1160 = vmatpush.xpose.msra.mxu0 0.0
    %1161 = vmatpush.xpose.msra.mxu0 0.0
    %1162 = vmatpush.xpose.msra.mxu0 0.0
    %1163 = vmatpush.xpose.msra.mxu0 0.0
    %1164 = vmatpush.xpose.msra.mxu0 0.0
    %1165 = vmatpush.xpose.msra.mxu0 %v1148
    %1166 = vmatmul.f32.gmra.mxu0 %v1146
    %v1167 = vpop.f32.mrf.mxu0
    %v1168 = vadd.f32 %v171, %v1167
    %1169 = vdwg.mxu0
    %v1170 = vsel %vm175, %v1168, -inf
    %1171 = vmax.xlane.f32.xlu0 %v1170
    %v1172 = vpop.xlane.xlu0 %1171
    %v1173 = vsub.f32 %v1168, %v1172
    %v1174 = vmul.f32 %v1173, 1.442695
    %v1175 = vpow.pop %v1174
    %v1176 = vsel %vm175, %v1175, 0.0
    %1177 = vadd.xlane.f32.xlu0 %v1176
    %v1178 = vpop.xlane.xlu0 %1177
    %v1179 = vrcp.pop %v1178
    %v1180 = vmul.f32 %v1175, %v1179
    %1181 = vrot.lane.b32.xlu0 %v1133, 64
    %v1182 = vpop.permute.xlu0 %1181
    %v1185 = vsel %vm175, %v1180, 0
    %1187 = vmatpush.msra.mxu0 0.0
    %1188 = vmatpush.msra.mxu0 0.0
    %1189 = vmatpush.msra.mxu0 0.0
    %1190 = vmatpush.msra.mxu0 0.0
    %1191 = vmatpush.msra.mxu0 0.0
    %1192 = vmatpush.msra.mxu0 0.0
    %1193 = vmatpush.msra.mxu0 0.0
    %1194 = vmatpush.msra.mxu0 0.0
    %1195 = vmatpush.msra.mxu0 0.0
    %1196 = vmatpush.msra.mxu0 0.0
    %1197 = vmatpush.msra.mxu0 0.0
    %1198 = vmatpush.msra.mxu0 0.0
    %1199 = vmatpush.msra.mxu0 0.0
    %1200 = vmatpush.msra.mxu0 0.0
    %1201 = vmatpush.msra.mxu0 0.0
    %1202 = vmatpush.msra.mxu0 %v1182
    %1203 = vmatmul.f32.gmra.mxu0 %v1185
    %v1204 = vpop.f32.mrf.mxu0
    %v1205 = vadd.f32 0.0, %v1204
    %1206 = vdwg.mxu0
    %1207 = vrot.lane.b32.xlu0 %v1133, 120
    %v1208 = vpop.permute.xlu0 %1207
    %1209 = vrot.lane.b32.xlu0 %v1133, 88
    %v1210 = vpop.permute.xlu0 %1209
    %v1211 = vsel %vm175, %v1208, 0
    %v1213 = vsel %vm175, %v1210, 0
    %1215 = vmatpush.xpose.msra.mxu0 0.0
    %1216 = vmatpush.xpose.msra.mxu0 0.0
    %1217 = vmatpush.xpose.msra.mxu0 0.0
    %1218 = vmatpush.xpose.msra.mxu0 0.0
    %1219 = vmatpush.xpose.msra.mxu0 0.0
    %1220 = vmatpush.xpose.msra.mxu0 0.0
    %1221 = vmatpush.xpose.msra.mxu0 0.0
    %1222 = vmatpush.xpose.msra.mxu0 0.0
    %1223 = vmatpush.xpose.msra.mxu0 0.0
    %1224 = vmatpush.xpose.msra.mxu0 0.0
    %1225 = vmatpush.xpose.msra.mxu0 0.0
    %1226 = vmatpush.xpose.msra.mxu0 0.0
    %1227 = vmatpush.xpose.msra.mxu0 0.0
    %1228 = vmatpush.xpose.msra.mxu0 0.0
    %1229 = vmatpush.xpose.msra.mxu0 0.0
    %1230 = vmatpush.xpose.msra.mxu0 %v1213
    %1231 = vmatmul.f32.gmra.mxu0 %v1211
    %v1232 = vpop.f32.mrf.mxu0
    %v1233 = vadd.f32 %v171, %v1232
    %1234 = vdwg.mxu0
    %v1235 = vsel %vm175, %v1233, -inf
    %1236 = vmax.xlane.f32.xlu0 %v1235
    %v1237 = vpop.xlane.xlu0 %1236
    %v1238 = vsub.f32 %v1233, %v1237
    %v1239 = vmul.f32 %v1238, 1.442695
    %v1240 = vpow.pop %v1239
    %v1241 = vsel %vm175, %v1240, 0.0
    %1242 = vadd.xlane.f32.xlu0 %v1241
    %v1243 = vpop.xlane.xlu0 %1242
    %v1244 = vrcp.pop %v1243
    %v1245 = vmul.f32 %v1240, %v1244
    %1246 = vrot.lane.b32.xlu0 %v1133, 56
    %v1247 = vpop.permute.xlu0 %1246
    %v1250 = vsel %vm175, %v1245, 0
    %1252 = vmatpush.msra.mxu0 0.0
    %1253 = vmatpush.msra.mxu0 0.0
    %1254 = vmatpush.msra.mxu0 0.0
    %1255 = vmatpush.msra.mxu0 0.0
    %1256 = vmatpush.msra.mxu0 0.0
    %1257 = vmatpush.msra.mxu0 0.0
    %1258 = vmatpush.msra.mxu0 0.0
    %1259 = vmatpush.msra.mxu0 0.0
    %1260 = vmatpush.msra.mxu0 0.0
    %1261 = vmatpush.msra.mxu0 0.0
    %1262 = vmatpush.msra.mxu0 0.0
    %1263 = vmatpush.msra.mxu0 0.0
    %1264 = vmatpush.msra.mxu0 0.0
    %1265 = vmatpush.msra.mxu0 0.0
    %1266 = vmatpush.msra.mxu0 0.0
    %1267 = vmatpush.msra.mxu0 %v1247
    %1268 = vmatmul.f32.gmra.mxu0 %v1250
    %v1269 = vpop.f32.mrf.mxu0
    %v1270 = vadd.f32 0.0, %v1269
    %1271 = vdwg.mxu0
    %v1273 = vsel %vm175, %v1270, 0
    %1275 = vmatpush.msra.mxu0 0.0
    %1276 = vmatpush.msra.mxu0 0.0
    %1277 = vmatpush.msra.mxu0 0.0
    %1278 = vmatpush.msra.mxu0 0.0
    %1279 = vmatpush.msra.mxu0 0.0
    %1280 = vmatpush.msra.mxu0 0.0
    %1281 = vmatpush.msra.mxu0 0.0
    %1282 = vmatpush.msra.mxu0 0.0
    %1283 = vmatpush.msra.mxu0 0.0
    %1284 = vmatpush.msra.mxu0 0.0
    %1285 = vmatpush.msra.mxu0 0.0
    %1286 = vmatpush.msra.mxu0 0.0
    %1287 = vmatpush.msra.mxu0 0.0
    %1288 = vmatpush.msra.mxu0 0.0
    %1289 = vmatpush.msra.mxu0 0.0
    %1290 = vmatpush.msra.mxu0 %v1140
    %1291 = vmatmul.f32.gmra.mxu0 %v1273
    %v1292 = vpop.f32.mrf.mxu0
    %v1293 = vadd.f32 0.0, %v1292
    %1294 = vdwg.mxu0
    %v1296 = vsel %vm175, %v1205, 0
    %1298 = vmatpush.msra.mxu0 0.0
    %1299 = vmatpush.msra.mxu0 0.0
    %1300 = vmatpush.msra.mxu0 0.0
    %1301 = vmatpush.msra.mxu0 0.0
    %1302 = vmatpush.msra.mxu0 0.0
    %1303 = vmatpush.msra.mxu0 0.0
    %1304 = vmatpush.msra.mxu0 0.0
    %1305 = vmatpush.msra.mxu0 0.0
    %1306 = vmatpush.msra.mxu0 0.0
    %1307 = vmatpush.msra.mxu0 0.0
    %1308 = vmatpush.msra.mxu0 0.0
    %1309 = vmatpush.msra.mxu0 0.0
    %1310 = vmatpush.msra.mxu0 0.0
    %1311 = vmatpush.msra.mxu0 0.0
    %1312 = vmatpush.msra.mxu0 0.0
    %1313 = vmatpush.msra.mxu0 %v1139
    %1314 = vmatmul.f32.gmra.mxu0 %v1296
    %v1315 = vpop.f32.mrf.mxu0
    %v1316 = vadd.f32 %v1293, %v1315
    %1317 = vdwg.mxu0
    %1318 = vrot.lane.b32.xlu0 %v1133, 112
    %v1319 = vpop.permute.xlu0 %1318
    %1320 = vrot.lane.b32.xlu0 %v1133, 80
    %v1321 = vpop.permute.xlu0 %1320
    %v1322 = vsel %vm175, %v1319, 0
    %v1324 = vsel %vm175, %v1321, 0
    %1326 = vmatpush.xpose.msra.mxu0 0.0
    %1327 = vmatpush.xpose.msra.mxu0 0.0
    %1328 = vmatpush.xpose.msra.mxu0 0.0
    %1329 = vmatpush.xpose.msra.mxu0 0.0
    %1330 = vmatpush.xpose.msra.mxu0 0.0
    %1331 = vmatpush.xpose.msra.mxu0 0.0
    %1332 = vmatpush.xpose.msra.mxu0 0.0
    %1333 = vmatpush.xpose.msra.mxu0 0.0
    %1334 = vmatpush.xpose.msra.mxu0 0.0
    %1335 = vmatpush.xpose.msra.mxu0 0.0
    %1336 = vmatpush.xpose.msra.mxu0 0.0
    %1337 = vmatpush.xpose.msra.mxu0 0.0
    %1338 = vmatpush.xpose.msra.mxu0 0.0
    %1339 = vmatpush.xpose.msra.mxu0 0.0
    %1340 = vmatpush.xpose.msra.mxu0 0.0
    %1341 = vmatpush.xpose.msra.mxu0 %v1324
    %1342 = vmatmul.f32.gmra.mxu0 %v1322
    %v1343 = vpop.f32.mrf.mxu0
    %v1344 = vadd.f32 %v171, %v1343
    %1345 = vdwg.mxu0
    %v1346 = vsel %vm175, %v1344, -inf
    %1347 = vmax.xlane.f32.xlu0 %v1346
    %v1348 = vpop.xlane.xlu0 %1347
    %v1349 = vsub.f32 %v1344, %v1348
    %v1350 = vmul.f32 %v1349, 1.442695
    %v1351 = vpow.pop %v1350
    %v1352 = vsel %vm175, %v1351, 0.0
    %1353 = vadd.xlane.f32.xlu0 %v1352
    %v1354 = vpop.xlane.xlu0 %1353
    %v1355 = vrcp.pop %v1354
    %v1356 = vmul.f32 %v1351, %v1355
    %1357 = vrot.lane.b32.xlu0 %v1133, 48
    %v1358 = vpop.permute.xlu0 %1357
    %v1361 = vsel %vm175, %v1356, 0
    %1363 = vmatpush.msra.mxu0 0.0
    %1364 = vmatpush.msra.mxu0 0.0
    %1365 = vmatpush.msra.mxu0 0.0
    %1366 = vmatpush.msra.mxu0 0.0
    %1367 = vmatpush.msra.mxu0 0.0
    %1368 = vmatpush.msra.mxu0 0.0
    %1369 = vmatpush.msra.mxu0 0.0
    %1370 = vmatpush.msra.mxu0 0.0
    %1371 = vmatpush.msra.mxu0 0.0
    %1372 = vmatpush.msra.mxu0 0.0
    %1373 = vmatpush.msra.mxu0 0.0
    %1374 = vmatpush.msra.mxu0 0.0
    %1375 = vmatpush.msra.mxu0 0.0
    %1376 = vmatpush.msra.mxu0 0.0
    %1377 = vmatpush.msra.mxu0 0.0
    %1378 = vmatpush.msra.mxu0 %v1358
    %1379 = vmatmul.f32.gmra.mxu0 %v1361
    %v1380 = vpop.f32.mrf.mxu0
    %v1381 = vadd.f32 0.0, %v1380
    %1382 = vdwg.mxu0
    %v1384 = vsel %vm175, %v1381, 0
    %1386 = vmatpush.msra.mxu0 0.0
    %1387 = vmatpush.msra.mxu0 0.0
    %1388 = vmatpush.msra.mxu0 0.0
    %1389 = vmatpush.msra.mxu0 0.0
    %1390 = vmatpush.msra.mxu0 0.0
    %1391 = vmatpush.msra.mxu0 0.0
    %1392 = vmatpush.msra.mxu0 0.0
    %1393 = vmatpush.msra.mxu0 0.0
    %1394 = vmatpush.msra.mxu0 0.0
    %1395 = vmatpush.msra.mxu0 0.0
    %1396 = vmatpush.msra.mxu0 0.0
    %1397 = vmatpush.msra.mxu0 0.0
    %1398 = vmatpush.msra.mxu0 0.0
    %1399 = vmatpush.msra.mxu0 0.0
    %1400 = vmatpush.msra.mxu0 0.0
    %1401 = vmatpush.msra.mxu0 %v1141
    %1402 = vmatmul.f32.gmra.mxu0 %v1384
    %v1403 = vpop.f32.mrf.mxu0
    %v1404 = vadd.f32 0.0, %v1403
    %1405 = vdwg.mxu0
    %v1406 = vadd.f32 %v1316, %v1404
    %1407 = vrot.lane.b32.xlu0 %v1133, 104
    %v1408 = vpop.permute.xlu0 %1407
    %1409 = vrot.lane.b32.xlu0 %v1133, 72
    %v1410 = vpop.permute.xlu0 %1409
    %v1411 = vsel %vm175, %v1408, 0
    %v1413 = vsel %vm175, %v1410, 0
    %1415 = vmatpush.xpose.msra.mxu0 0.0
    %1416 = vmatpush.xpose.msra.mxu0 0.0
    %1417 = vmatpush.xpose.msra.mxu0 0.0
    %1418 = vmatpush.xpose.msra.mxu0 0.0
    %1419 = vmatpush.xpose.msra.mxu0 0.0
    %1420 = vmatpush.xpose.msra.mxu0 0.0
    %1421 = vmatpush.xpose.msra.mxu0 0.0
    %1422 = vmatpush.xpose.msra.mxu0 0.0
    %1423 = vmatpush.xpose.msra.mxu0 0.0
    %1424 = vmatpush.xpose.msra.mxu0 0.0
    %1425 = vmatpush.xpose.msra.mxu0 0.0
    %1426 = vmatpush.xpose.msra.mxu0 0.0
    %1427 = vmatpush.xpose.msra.mxu0 0.0
    %1428 = vmatpush.xpose.msra.mxu0 0.0
    %1429 = vmatpush.xpose.msra.mxu0 0.0
    %1430 = vmatpush.xpose.msra.mxu0 %v1413
    %1431 = vmatmul.f32.gmra.mxu0 %v1411
    %v1432 = vpop.f32.mrf.mxu0
    %v1433 = vadd.f32 %v171, %v1432
    %1434 = vdwg.mxu0
    %v1435 = vsel %vm175, %v1433, -inf
    %1436 = vmax.xlane.f32.xlu0 %v1435
    %v1437 = vpop.xlane.xlu0 %1436
    %v1438 = vsub.f32 %v1433, %v1437
    %v1439 = vmul.f32 %v1438, 1.442695
    %v1440 = vpow.pop %v1439
    %v1441 = vsel %vm175, %v1440, 0.0
    %1442 = vadd.xlane.f32.xlu0 %v1441
    %v1443 = vpop.xlane.xlu0 %1442
    %v1444 = vrcp.pop %v1443
    %v1445 = vmul.f32 %v1440, %v1444
    %1446 = vrot.lane.b32.xlu0 %v1133, 40
    %v1447 = vpop.permute.xlu0 %1446
    %v1450 = vsel %vm175, %v1445, 0
    %1452 = vmatpush.msra.mxu0 0.0
    %1453 = vmatpush.msra.mxu0 0.0
    %1454 = vmatpush.msra.mxu0 0.0
    %1455 = vmatpush.msra.mxu0 0.0
    %1456 = vmatpush.msra.mxu0 0.0
    %1457 = vmatpush.msra.mxu0 0.0
    %1458 = vmatpush.msra.mxu0 0.0
    %1459 = vmatpush.msra.mxu0 0.0
    %1460 = vmatpush.msra.mxu0 0.0
    %1461 = vmatpush.msra.mxu0 0.0
    %1462 = vmatpush.msra.mxu0 0.0
    %1463 = vmatpush.msra.mxu0 0.0
    %1464 = vmatpush.msra.mxu0 0.0
    %1465 = vmatpush.msra.mxu0 0.0
    %1466 = vmatpush.msra.mxu0 0.0
    %1467 = vmatpush.msra.mxu0 %v1447
    %1468 = vmatmul.f32.gmra.mxu0 %v1450
    %v1469 = vpop.f32.mrf.mxu0
    %v1470 = vadd.f32 0.0, %v1469
    %1471 = vdwg.mxu0
    %v1473 = vsel %vm175, %v1470, 0
    %1475 = vmatpush.msra.mxu0 0.0
    %1476 = vmatpush.msra.mxu0 0.0
    %1477 = vmatpush.msra.mxu0 0.0
    %1478 = vmatpush.msra.mxu0 0.0
    %1479 = vmatpush.msra.mxu0 0.0
    %1480 = vmatpush.msra.mxu0 0.0
    %1481 = vmatpush.msra.mxu0 0.0
    %1482 = vmatpush.msra.mxu0 0.0
    %1483 = vmatpush.msra.mxu0 0.0
    %1484 = vmatpush.msra.mxu0 0.0
    %1485 = vmatpush.msra.mxu0 0.0
    %1486 = vmatpush.msra.mxu0 0.0
    %1487 = vmatpush.msra.mxu0 0.0
    %1488 = vmatpush.msra.mxu0 0.0
    %1489 = vmatpush.msra.mxu0 0.0
    %1490 = vmatpush.msra.mxu0 %v1142
    %1491 = vmatmul.f32.gmra.mxu0 %v1473
    %v1492 = vpop.f32.mrf.mxu0
    %v1493 = vadd.f32 0.0, %v1492
    %1494 = vdwg.mxu0
    %v1495 = vadd.f32 %v1406, %v1493
    %1497 = vrot.lane.b32.xlu0 %v1136, 96
    %v1498 = vpop.permute.xlu0 %1497
    %v1499 = vsel %vm175, %v1136, 0
    %v1501 = vsel %vm175, %v1498, 0
    %1503 = vmatpush.xpose.msra.mxu0 0.0
    %1504 = vmatpush.xpose.msra.mxu0 0.0
    %1505 = vmatpush.xpose.msra.mxu0 0.0
    %1506 = vmatpush.xpose.msra.mxu0 0.0
    %1507 = vmatpush.xpose.msra.mxu0 0.0
    %1508 = vmatpush.xpose.msra.mxu0 0.0
    %1509 = vmatpush.xpose.msra.mxu0 0.0
    %1510 = vmatpush.xpose.msra.mxu0 0.0
    %1511 = vmatpush.xpose.msra.mxu0 0.0
    %1512 = vmatpush.xpose.msra.mxu0 0.0
    %1513 = vmatpush.xpose.msra.mxu0 0.0
    %1514 = vmatpush.xpose.msra.mxu0 0.0
    %1515 = vmatpush.xpose.msra.mxu0 0.0
    %1516 = vmatpush.xpose.msra.mxu0 0.0
    %1517 = vmatpush.xpose.msra.mxu0 0.0
    %1518 = vmatpush.xpose.msra.mxu0 %v1501
    %1519 = vmatmul.f32.gmra.mxu0 %v1499
    %v1520 = vpop.f32.mrf.mxu0
    %v1521 = vadd.f32 %v526, %v1520
    %1522 = vdwg.mxu0
    %v1523 = vsel %vm175, %v1521, -inf
    %1524 = vmax.xlane.f32.xlu0 %v1523
    %v1525 = vpop.xlane.xlu0 %1524
    %v1526 = vsub.f32 %v1521, %v1525
    %v1527 = vmul.f32 %v1526, 1.442695
    %v1528 = vpow.pop %v1527
    %v1529 = vsel %vm175, %v1528, 0.0
    %1530 = vadd.xlane.f32.xlu0 %v1529
    %v1531 = vpop.xlane.xlu0 %1530
    %v1532 = vrcp.pop %v1531
    %v1533 = vmul.f32 %v1528, %v1532
    %1534 = vrot.lane.b32.xlu0 %v1136, 64
    %v1535 = vpop.permute.xlu0 %1534
    %v1538 = vsel %vm175, %v1533, 0
    %1540 = vmatpush.msra.mxu0 0.0
    %1541 = vmatpush.msra.mxu0 0.0
    %1542 = vmatpush.msra.mxu0 0.0
    %1543 = vmatpush.msra.mxu0 0.0
    %1544 = vmatpush.msra.mxu0 0.0
    %1545 = vmatpush.msra.mxu0 0.0
    %1546 = vmatpush.msra.mxu0 0.0
    %1547 = vmatpush.msra.mxu0 0.0
    %1548 = vmatpush.msra.mxu0 0.0
    %1549 = vmatpush.msra.mxu0 0.0
    %1550 = vmatpush.msra.mxu0 0.0
    %1551 = vmatpush.msra.mxu0 0.0
    %1552 = vmatpush.msra.mxu0 0.0
    %1553 = vmatpush.msra.mxu0 0.0
    %1554 = vmatpush.msra.mxu0 0.0
    %1555 = vmatpush.msra.mxu0 %v1535
    %1556 = vmatmul.f32.gmra.mxu0 %v1538
    %v1557 = vpop.f32.mrf.mxu0
    %v1558 = vadd.f32 0.0, %v1557
    %1559 = vdwg.mxu0
    %1560 = vrot.lane.b32.xlu0 %v1136, 120
    %v1561 = vpop.permute.xlu0 %1560
    %1562 = vrot.lane.b32.xlu0 %v1136, 88
    %v1563 = vpop.permute.xlu0 %1562
    %v1564 = vsel %vm175, %v1561, 0
    %v1566 = vsel %vm175, %v1563, 0
    %1568 = vmatpush.xpose.msra.mxu0 0.0
    %1569 = vmatpush.xpose.msra.mxu0 0.0
    %1570 = vmatpush.xpose.msra.mxu0 0.0
    %1571 = vmatpush.xpose.msra.mxu0 0.0
    %1572 = vmatpush.xpose.msra.mxu0 0.0
    %1573 = vmatpush.xpose.msra.mxu0 0.0
    %1574 = vmatpush.xpose.msra.mxu0 0.0
    %1575 = vmatpush.xpose.msra.mxu0 0.0
    %1576 = vmatpush.xpose.msra.mxu0 0.0
    %1577 = vmatpush.xpose.msra.mxu0 0.0
    %1578 = vmatpush.xpose.msra.mxu0 0.0
    %1579 = vmatpush.xpose.msra.mxu0 0.0
    %1580 = vmatpush.xpose.msra.mxu0 0.0
    %1581 = vmatpush.xpose.msra.mxu0 0.0
    %1582 = vmatpush.xpose.msra.mxu0 0.0
    %1583 = vmatpush.xpose.msra.mxu0 %v1566
    %1584 = vmatmul.f32.gmra.mxu0 %v1564
    %v1585 = vpop.f32.mrf.mxu0
    %v1586 = vadd.f32 %v526, %v1585
    %1587 = vdwg.mxu0
    %v1588 = vsel %vm175, %v1586, -inf
    %1589 = vmax.xlane.f32.xlu0 %v1588
    %v1590 = vpop.xlane.xlu0 %1589
    %v1591 = vsub.f32 %v1586, %v1590
    %v1592 = vmul.f32 %v1591, 1.442695
    %v1593 = vpow.pop %v1592
    %v1594 = vsel %vm175, %v1593, 0.0
    %1595 = vadd.xlane.f32.xlu0 %v1594
    %v1596 = vpop.xlane.xlu0 %1595
    %v1597 = vrcp.pop %v1596
    %v1598 = vmul.f32 %v1593, %v1597
    %1599 = vrot.lane.b32.xlu0 %v1136, 56
    %v1600 = vpop.permute.xlu0 %1599
    %v1603 = vsel %vm175, %v1598, 0
    %1605 = vmatpush.msra.mxu0 0.0
    %1606 = vmatpush.msra.mxu0 0.0
    %1607 = vmatpush.msra.mxu0 0.0
    %1608 = vmatpush.msra.mxu0 0.0
    %1609 = vmatpush.msra.mxu0 0.0
    %1610 = vmatpush.msra.mxu0 0.0
    %1611 = vmatpush.msra.mxu0 0.0
    %1612 = vmatpush.msra.mxu0 0.0
    %1613 = vmatpush.msra.mxu0 0.0
    %1614 = vmatpush.msra.mxu0 0.0
    %1615 = vmatpush.msra.mxu0 0.0
    %1616 = vmatpush.msra.mxu0 0.0
    %1617 = vmatpush.msra.mxu0 0.0
    %1618 = vmatpush.msra.mxu0 0.0
    %1619 = vmatpush.msra.mxu0 0.0
    %1620 = vmatpush.msra.mxu0 %v1600
    %1621 = vmatmul.f32.gmra.mxu0 %v1603
    %v1622 = vpop.f32.mrf.mxu0
    %v1623 = vadd.f32 0.0, %v1622
    %1624 = vdwg.mxu0
    %v1626 = vsel %vm175, %v1623, 0
    %1628 = vmatpush.msra.mxu0 0.0
    %1629 = vmatpush.msra.mxu0 0.0
    %1630 = vmatpush.msra.mxu0 0.0
    %1631 = vmatpush.msra.mxu0 0.0
    %1632 = vmatpush.msra.mxu0 0.0
    %1633 = vmatpush.msra.mxu0 0.0
    %1634 = vmatpush.msra.mxu0 0.0
    %1635 = vmatpush.msra.mxu0 0.0
    %1636 = vmatpush.msra.mxu0 0.0
    %1637 = vmatpush.msra.mxu0 0.0
    %1638 = vmatpush.msra.mxu0 0.0
    %1639 = vmatpush.msra.mxu0 0.0
    %1640 = vmatpush.msra.mxu0 0.0
    %1641 = vmatpush.msra.mxu0 0.0
    %1642 = vmatpush.msra.mxu0 0.0
    %1643 = vmatpush.msra.mxu0 %v1140
    %1644 = vmatmul.f32.gmra.mxu0 %v1626
    %v1645 = vpop.f32.mrf.mxu0
    %v1646 = vadd.f32 0.0, %v1645
    %1647 = vdwg.mxu0
    %v1649 = vsel %vm175, %v1558, 0
    %1651 = vmatpush.msra.mxu0 0.0
    %1652 = vmatpush.msra.mxu0 0.0
    %1653 = vmatpush.msra.mxu0 0.0
    %1654 = vmatpush.msra.mxu0 0.0
    %1655 = vmatpush.msra.mxu0 0.0
    %1656 = vmatpush.msra.mxu0 0.0
    %1657 = vmatpush.msra.mxu0 0.0
    %1658 = vmatpush.msra.mxu0 0.0
    %1659 = vmatpush.msra.mxu0 0.0
    %1660 = vmatpush.msra.mxu0 0.0
    %1661 = vmatpush.msra.mxu0 0.0
    %1662 = vmatpush.msra.mxu0 0.0
    %1663 = vmatpush.msra.mxu0 0.0
    %1664 = vmatpush.msra.mxu0 0.0
    %1665 = vmatpush.msra.mxu0 0.0
    %1666 = vmatpush.msra.mxu0 %v1139
    %1667 = vmatmul.f32.gmra.mxu0 %v1649
    %v1668 = vpop.f32.mrf.mxu0
    %v1669 = vadd.f32 %v1646, %v1668
    %1670 = vdwg.mxu0
    %1671 = vrot.lane.b32.xlu0 %v1136, 112
    %v1672 = vpop.permute.xlu0 %1671
    %1673 = vrot.lane.b32.xlu0 %v1136, 80
    %v1674 = vpop.permute.xlu0 %1673
    %v1675 = vsel %vm175, %v1672, 0
    %v1677 = vsel %vm175, %v1674, 0
    %1679 = vmatpush.xpose.msra.mxu0 0.0
    %1680 = vmatpush.xpose.msra.mxu0 0.0
    %1681 = vmatpush.xpose.msra.mxu0 0.0
    %1682 = vmatpush.xpose.msra.mxu0 0.0
    %1683 = vmatpush.xpose.msra.mxu0 0.0
    %1684 = vmatpush.xpose.msra.mxu0 0.0
    %1685 = vmatpush.xpose.msra.mxu0 0.0
    %1686 = vmatpush.xpose.msra.mxu0 0.0
    %1687 = vmatpush.xpose.msra.mxu0 0.0
    %1688 = vmatpush.xpose.msra.mxu0 0.0
    %1689 = vmatpush.xpose.msra.mxu0 0.0
    %1690 = vmatpush.xpose.msra.mxu0 0.0
    %1691 = vmatpush.xpose.msra.mxu0 0.0
    %1692 = vmatpush.xpose.msra.mxu0 0.0
    %1693 = vmatpush.xpose.msra.mxu0 0.0
    %1694 = vmatpush.xpose.msra.mxu0 %v1677
    %1695 = vmatmul.f32.gmra.mxu0 %v1675
    %v1696 = vpop.f32.mrf.mxu0
    %v1697 = vadd.f32 %v526, %v1696
    %1698 = vdwg.mxu0
    %v1699 = vsel %vm175, %v1697, -inf
    %1700 = vmax.xlane.f32.xlu0 %v1699
    %v1701 = vpop.xlane.xlu0 %1700
    %v1702 = vsub.f32 %v1697, %v1701
    %v1703 = vmul.f32 %v1702, 1.442695
    %v1704 = vpow.pop %v1703
    %v1705 = vsel %vm175, %v1704, 0.0
    %1706 = vadd.xlane.f32.xlu0 %v1705
    %v1707 = vpop.xlane.xlu0 %1706
    %v1708 = vrcp.pop %v1707
    %v1709 = vmul.f32 %v1704, %v1708
    %1710 = vrot.lane.b32.xlu0 %v1136, 48
    %v1711 = vpop.permute.xlu0 %1710
    %v1714 = vsel %vm175, %v1709, 0
    %1716 = vmatpush.msra.mxu0 0.0
    %1717 = vmatpush.msra.mxu0 0.0
    %1718 = vmatpush.msra.mxu0 0.0
    %1719 = vmatpush.msra.mxu0 0.0
    %1720 = vmatpush.msra.mxu0 0.0
    %1721 = vmatpush.msra.mxu0 0.0
    %1722 = vmatpush.msra.mxu0 0.0
    %1723 = vmatpush.msra.mxu0 0.0
    %1724 = vmatpush.msra.mxu0 0.0
    %1725 = vmatpush.msra.mxu0 0.0
    %1726 = vmatpush.msra.mxu0 0.0
    %1727 = vmatpush.msra.mxu0 0.0
    %1728 = vmatpush.msra.mxu0 0.0
    %1729 = vmatpush.msra.mxu0 0.0
    %1730 = vmatpush.msra.mxu0 0.0
    %1731 = vmatpush.msra.mxu0 %v1711
    %1732 = vmatmul.f32.gmra.mxu0 %v1714
    %v1733 = vpop.f32.mrf.mxu0
    %v1734 = vadd.f32 0.0, %v1733
    %1735 = vdwg.mxu0
    %v1737 = vsel %vm175, %v1734, 0
    %1739 = vmatpush.msra.mxu0 0.0
    %1740 = vmatpush.msra.mxu0 0.0
    %1741 = vmatpush.msra.mxu0 0.0
    %1742 = vmatpush.msra.mxu0 0.0
    %1743 = vmatpush.msra.mxu0 0.0
    %1744 = vmatpush.msra.mxu0 0.0
    %1745 = vmatpush.msra.mxu0 0.0
    %1746 = vmatpush.msra.mxu0 0.0
    %1747 = vmatpush.msra.mxu0 0.0
    %1748 = vmatpush.msra.mxu0 0.0
    %1749 = vmatpush.msra.mxu0 0.0
    %1750 = vmatpush.msra.mxu0 0.0
    %1751 = vmatpush.msra.mxu0 0.0
    %1752 = vmatpush.msra.mxu0 0.0
    %1753 = vmatpush.msra.mxu0 0.0
    %1754 = vmatpush.msra.mxu0 %v1141
    %1755 = vmatmul.f32.gmra.mxu0 %v1737
    %v1756 = vpop.f32.mrf.mxu0
    %v1757 = vadd.f32 0.0, %v1756
    %1758 = vdwg.mxu0
    %v1759 = vadd.f32 %v1669, %v1757
    %1760 = vrot.lane.b32.xlu0 %v1136, 104
    %v1761 = vpop.permute.xlu0 %1760
    %1762 = vrot.lane.b32.xlu0 %v1136, 72
    %v1763 = vpop.permute.xlu0 %1762
    %v1764 = vsel %vm175, %v1761, 0
    %v1766 = vsel %vm175, %v1763, 0
    %1768 = vmatpush.xpose.msra.mxu0 0.0
    %1769 = vmatpush.xpose.msra.mxu0 0.0
    %1770 = vmatpush.xpose.msra.mxu0 0.0
    %1771 = vmatpush.xpose.msra.mxu0 0.0
    %1772 = vmatpush.xpose.msra.mxu0 0.0
    %1773 = vmatpush.xpose.msra.mxu0 0.0
    %1774 = vmatpush.xpose.msra.mxu0 0.0
    %1775 = vmatpush.xpose.msra.mxu0 0.0
    %1776 = vmatpush.xpose.msra.mxu0 0.0
    %1777 = vmatpush.xpose.msra.mxu0 0.0
    %1778 = vmatpush.xpose.msra.mxu0 0.0
    %1779 = vmatpush.xpose.msra.mxu0 0.0
    %1780 = vmatpush.xpose.msra.mxu0 0.0
    %1781 = vmatpush.xpose.msra.mxu0 0.0
    %1782 = vmatpush.xpose.msra.mxu0 0.0
    %1783 = vmatpush.xpose.msra.mxu0 %v1766
    %1784 = vmatmul.f32.gmra.mxu0 %v1764
    %v1785 = vpop.f32.mrf.mxu0
    %v1786 = vadd.f32 %v526, %v1785
    %1787 = vdwg.mxu0
    %v1788 = vsel %vm175, %v1786, -inf
    %1789 = vmax.xlane.f32.xlu0 %v1788
    %v1790 = vpop.xlane.xlu0 %1789
    %v1791 = vsub.f32 %v1786, %v1790
    %v1792 = vmul.f32 %v1791, 1.442695
    %v1793 = vpow.pop %v1792
    %v1794 = vsel %vm175, %v1793, 0.0
    %1795 = vadd.xlane.f32.xlu0 %v1794
    %v1796 = vpop.xlane.xlu0 %1795
    %v1797 = vrcp.pop %v1796
    %v1798 = vmul.f32 %v1793, %v1797
    %1799 = vrot.lane.b32.xlu0 %v1136, 40
    %v1800 = vpop.permute.xlu0 %1799
    %v1803 = vsel %vm175, %v1798, 0
    %1805 = vmatpush.msra.mxu0 0.0
    %1806 = vmatpush.msra.mxu0 0.0
    %1807 = vmatpush.msra.mxu0 0.0
    %1808 = vmatpush.msra.mxu0 0.0
    %1809 = vmatpush.msra.mxu0 0.0
    %1810 = vmatpush.msra.mxu0 0.0
    %1811 = vmatpush.msra.mxu0 0.0
    %1812 = vmatpush.msra.mxu0 0.0
    %1813 = vmatpush.msra.mxu0 0.0
    %1814 = vmatpush.msra.mxu0 0.0
    %1815 = vmatpush.msra.mxu0 0.0
    %1816 = vmatpush.msra.mxu0 0.0
    %1817 = vmatpush.msra.mxu0 0.0
    %1818 = vmatpush.msra.mxu0 0.0
    %1819 = vmatpush.msra.mxu0 0.0
    %1820 = vmatpush.msra.mxu0 %v1800
    %1821 = vmatmul.f32.gmra.mxu0 %v1803
    %v1822 = vpop.f32.mrf.mxu0
    %v1823 = vadd.f32 0.0, %v1822
    %1824 = vdwg.mxu0
    %v1826 = vsel %vm175, %v1823, 0
    %1828 = vmatpush.msra.mxu0 0.0
    %1829 = vmatpush.msra.mxu0 0.0
    %1830 = vmatpush.msra.mxu0 0.0
    %1831 = vmatpush.msra.mxu0 0.0
    %1832 = vmatpush.msra.mxu0 0.0
    %1833 = vmatpush.msra.mxu0 0.0
    %1834 = vmatpush.msra.mxu0 0.0
    %1835 = vmatpush.msra.mxu0 0.0
    %1836 = vmatpush.msra.mxu0 0.0
    %1837 = vmatpush.msra.mxu0 0.0
    %1838 = vmatpush.msra.mxu0 0.0
    %1839 = vmatpush.msra.mxu0 0.0
    %1840 = vmatpush.msra.mxu0 0.0
    %1841 = vmatpush.msra.mxu0 0.0
    %1842 = vmatpush.msra.mxu0 0.0
    %1843 = vmatpush.msra.mxu0 %v1142
    %1844 = vmatmul.f32.gmra.mxu0 %v1826
    %v1845 = vpop.f32.mrf.mxu0
    %v1846 = vadd.f32 0.0, %v1845
    %1847 = vdwg.mxu0
    %v1848 = vadd.f32 %v1759, %v1846
    %s1849 = scalar_lea.vmem %s7, 1
    %v1850 = vld [vmem:[%s1849] sm:$0x1]
    %v1852 = vperm.slane %v1850, 0
    %v1854 = vadd.f32 %v1495, %v1852
    %v1855 = vadd.f32 %v1848, %v1852
    %v1856 = vadd.f32 %v1854, %v1097
    %v1857 = vadd.f32 %v1855, %v1098
    %s1858 = scalar_lea.vmem %s8, 1
    %v1859 = vld [vmem:[%s1858] sm:$0x1]
    %s1860 = scalar_lea.vmem %s9, 1
    %v1861 = vld [vmem:[%s1860] sm:$0x1]
    %v1862 = vsel %vm67, %v1856, 0.0
    %1863 = vadd.xlane.f32.xlu0 %v1862
    %v1864 = vpop.xlane.xlu0 %1863
    %v1865 = vsel %vm67, %v1857, 0.0
    %1866 = vadd.xlane.f32.xlu0 %v1865
    %v1867 = vpop.xlane.xlu0 %1866
    %v1868 = vmul.f32 %v1864, %v80
    %v1869 = vmul.f32 %v1867, %v80
    %v1870 = vsub.f32 %v1856, %v1868
    %v1871 = vsub.f32 %v1857, %v1869
    %v1872 = vmul.f32 %v1870, %v1870
    %v1873 = vmul.f32 %v1871, %v1871
    %v1874 = vsel %vm67, %v1872, 0.0
    %1875 = vadd.xlane.f32.xlu0 %v1874
    %v1876 = vpop.xlane.xlu0 %1875
    %v1877 = vsel %vm67, %v1873, 0.0
    %1878 = vadd.xlane.f32.xlu0 %v1877
    %v1879 = vpop.xlane.xlu0 %1878
    %v1880 = vmul.f32 %v1876, %v80
    %v1881 = vmul.f32 %v1879, %v80
    %v1882 = vadd.f32 %v1880, 1e-12
    %v1883 = vadd.f32 %v1881, 1e-12
    %v1884 = vrsqrt.pop %v1882
    %v1885 = vmul.f32 %v1884, %v1882
    %v1886 = vmul.f32 %v1885, %v1884
    %v1887 = vmul.f32 0.5, %v1886
    %v1888 = vsub.f32 1.5, %v1887
    %v1889 = vmul.f32 %v1884, %v1888
    %vm1890 = vweird.f32 %v1882
    %vm1891 = vweird.f32 %v1884
    %vm1892 = vmor %vm1890, %vm1891
    %v1893 = vsel %vm1892, %v1884, %v1889
    %v1894 = vrsqrt.pop %v1883
    %v1895 = vmul.f32 %v1894, %v1883
    %v1896 = vmul.f32 %v1895, %v1894
    %v1897 = vmul.f32 0.5, %v1896
    %v1898 = vsub.f32 1.5, %v1897
    %v1899 = vmul.f32 %v1894, %v1898
    %vm1900 = vweird.f32 %v1883
    %vm1901 = vweird.f32 %v1894
    %vm1902 = vmor %vm1900, %vm1901
    %v1903 = vsel %vm1902, %v1894, %v1899
    %v1904 = vmul.f32 %v1870, %v1893
    %v1905 = vmul.f32 %v1871, %v1903
    %v1907 = vperm.slane %v1859, 0
    %v1909 = vmul.f32 %v1904, %v1907
    %v1910 = vmul.f32 %v1905, %v1907
    %v1912 = vperm.slane %v1861, 0
    %v1914 = vadd.f32 %v1909, %v1912
    %v1915 = vadd.f32 %v1910, %v1912
    %s1916 = scalar_lea.vmem %s10, 32
    %v1917 = vld [vmem:[%s1916] sm:$0xff]
    %v1918 = vld [vmem:[%s1916 + $0x8] sm:$0xff]
    %v1919 = vld [vmem:[%s1916 + $0x10] sm:$0xff]
    %v1920 = vld [vmem:[%s1916 + $0x18] sm:$0xff]
    %s1921 = scalar_lea.vmem %s11, 1
    %v1922 = vld [vmem:[%s1921] sm:$0x1]
    %v1924 = vperm.slane %v1922, 0
    %v1927 = vsel %vm67, %v1914, 0
    %v1930 = vsel %vm67, %v1915, 0
    %1932 = vmatpush.msra.mxu0 0.0
    %1933 = vmatpush.msra.mxu0 0.0
    %1934 = vmatpush.msra.mxu0 0.0
    %1935 = vmatpush.msra.mxu0 0.0
    %1936 = vmatpush.msra.mxu0 0.0
    %1937 = vmatpush.msra.mxu0 0.0
    %1938 = vmatpush.msra.mxu0 0.0
    %1939 = vmatpush.msra.mxu0 0.0
    %1940 = vmatpush.msra.mxu0 0.0
    %1941 = vmatpush.msra.mxu0 0.0
    %1942 = vmatpush.msra.mxu0 0.0
    %1943 = vmatpush.msra.mxu0 0.0
    %1944 = vmatpush.msra.mxu0 %v1920
    %1945 = vmatpush.msra.mxu0 %v1919
    %1946 = vmatpush.msra.mxu0 %v1918
    %1947 = vmatpush.msra.mxu0 %v1917
    %1948 = vmatmul.f32.gmra.mxu0 %v1927
    %v1949 = vpop.f32.mrf.mxu0
    %v1950 = vadd.f32 %v1924, %v1949
    %1951 = vmatmul.f32.gmra.mxu0 %v1930
    %v1952 = vpop.f32.mrf.mxu0
    %v1953 = vadd.f32 %v1924, %v1952
    %1954 = vdwg.mxu0
    %v1955 = vmul.f32 %v1950, 0.5
    %v1956 = vmul.f32 %v1953, 0.5
    %v1957 = vmul.f32 %v1950, 0.044715
    %v1958 = vmul.f32 %v1953, 0.044715
    %v1959 = vmul.f32 %v1957, %v1950
    %v1960 = vmul.f32 %v1958, %v1953
    %v1961 = vmul.f32 %v1959, %v1950
    %v1962 = vmul.f32 %v1960, %v1953
    %v1963 = vadd.f32 %v1950, %v1961
    %v1964 = vadd.f32 %v1953, %v1962
    %v1965 = vmul.f32 %v1963, 0.7978846
    %v1966 = vmul.f32 %v1964, 0.7978846
    %v1967 = vtanh.pop %v1965
    %v1968 = vtanh.pop %v1966
    %v1969 = vadd.f32 %v1967, 1.0
    %v1970 = vadd.f32 %v1968, 1.0
    %v1971 = vmul.f32 %v1955, %v1969
    %v1972 = vmul.f32 %v1956, %v1970
    %s1973 = scalar_lea.vmem %s12, 64
    %v1974 = vld [vmem:[%s1973] sm:$0xff]
    %v1975 = vld [vmem:[%s1973 + $0x8] sm:$0xff]
    %v1976 = vld [vmem:[%s1973 + $0x10] sm:$0xff]
    %v1977 = vld [vmem:[%s1973 + $0x18] sm:$0xff]
    %v1978 = vld [vmem:[%s1973 + $0x20] sm:$0xff]
    %v1979 = vld [vmem:[%s1973 + $0x28] sm:$0xff]
    %v1980 = vld [vmem:[%s1973 + $0x30] sm:$0xff]
    %v1981 = vld [vmem:[%s1973 + $0x38] sm:$0xff]
    %s1982 = scalar_lea.vmem %s13, 1
    %v1983 = vld [vmem:[%s1982] sm:$0x1]
    %v1985 = vperm.slane %v1983, 0
    %v1988 = vsel %vm1011, %v1971, 0
    %v1991 = vsel %vm1011, %v1972, 0
    %1993 = vmatpush.msra.mxu0 0.0
    %1994 = vmatpush.msra.mxu0 0.0
    %1995 = vmatpush.msra.mxu0 0.0
    %1996 = vmatpush.msra.mxu0 0.0
    %1997 = vmatpush.msra.mxu0 0.0
    %1998 = vmatpush.msra.mxu0 0.0
    %1999 = vmatpush.msra.mxu0 0.0
    %2000 = vmatpush.msra.mxu0 0.0
    %2001 = vmatpush.msra.mxu0 %v1981
    %2002 = vmatpush.msra.mxu0 %v1980
    %2003 = vmatpush.msra.mxu0 %v1979
    %2004 = vmatpush.msra.mxu0 %v1978
    %2005 = vmatpush.msra.mxu0 %v1977
    %2006 = vmatpush.msra.mxu0 %v1976
    %2007 = vmatpush.msra.mxu0 %v1975
    %2008 = vmatpush.msra.mxu0 %v1974
    %2009 = vmatmul.f32.gmra.mxu0 %v1988
    %v2010 = vpop.f32.mrf.mxu0
    %v2011 = vadd.f32 %v1985, %v2010
    %2012 = vmatmul.f32.gmra.mxu0 %v1991
    %v2013 = vpop.f32.mrf.mxu0
    %v2014 = vadd.f32 %v1985, %v2013
    %2015 = vdwg.mxu0
    %v2016 = vadd.f32 %v2011, %v1914
    %v2017 = vadd.f32 %v2014, %v1915
    %s2018 = scalar_lea.vmem %s14, 1
    %v2019 = vld [vmem:[%s2018] sm:$0x1]
    %s2020 = scalar_lea.vmem %s15, 1
    %v2021 = vld [vmem:[%s2020] sm:$0x1]
    %v2022 = vsel %vm67, %v2016, 0.0
    %2023 = vadd.xlane.f32.xlu0 %v2022
    %v2024 = vpop.xlane.xlu0 %2023
    %v2025 = vsel %vm67, %v2017, 0.0
    %2026 = vadd.xlane.f32.xlu0 %v2025
    %v2027 = vpop.xlane.xlu0 %2026
    %v2028 = vmul.f32 %v2024, %v80
    %v2029 = vmul.f32 %v2027, %v80
    %v2030 = vsub.f32 %v2016, %v2028
    %v2031 = vsub.f32 %v2017, %v2029
    %v2032 = vmul.f32 %v2030, %v2030
    %v2033 = vmul.f32 %v2031, %v2031
    %v2034 = vsel %vm67, %v2032, 0.0
    %2035 = vadd.xlane.f32.xlu0 %v2034
    %v2036 = vpop.xlane.xlu0 %2035
    %v2037 = vsel %vm67, %v2033, 0.0
    %2038 = vadd.xlane.f32.xlu0 %v2037
    %v2039 = vpop.xlane.xlu0 %2038
    %v2040 = vmul.f32 %v2036, %v80
    %v2041 = vmul.f32 %v2039, %v80
    %v2042 = vadd.f32 %v2040, 1e-12
    %v2043 = vadd.f32 %v2041, 1e-12
    %v2044 = vrsqrt.pop %v2042
    %v2045 = vmul.f32 %v2044, %v2042
    %v2046 = vmul.f32 %v2045, %v2044
    %v2047 = vmul.f32 0.5, %v2046
    %v2048 = vsub.f32 1.5, %v2047
    %v2049 = vmul.f32 %v2044, %v2048
    %vm2050 = vweird.f32 %v2042
    %vm2051 = vweird.f32 %v2044
    %vm2052 = vmor %vm2050, %vm2051
    %v2053 = vsel %vm2052, %v2044, %v2049
    %v2054 = vrsqrt.pop %v2043
    %v2055 = vmul.f32 %v2054, %v2043
    %v2056 = vmul.f32 %v2055, %v2054
    %v2057 = vmul.f32 0.5, %v2056
    %v2058 = vsub.f32 1.5, %v2057
    %v2059 = vmul.f32 %v2054, %v2058
    %vm2060 = vweird.f32 %v2043
    %vm2061 = vweird.f32 %v2054
    %vm2062 = vmor %vm2060, %vm2061
    %v2063 = vsel %vm2062, %v2054, %v2059
    %v2064 = vmul.f32 %v2030, %v2053
    %v2065 = vmul.f32 %v2031, %v2063
    %v2067 = vperm.slane %v2019, 0
    %v2069 = vmul.f32 %v2064, %v2067
    %v2070 = vmul.f32 %v2065, %v2067
    %v2072 = vperm.slane %v2021, 0
    %v2074 = vadd.f32 %v2069, %v2072
    %v2075 = vadd.f32 %v2070, %v2072
    %2076 = vst.msk [vmem:[#allocation2] sm:$0xff] %vm67, %v2074
    %2077 = vst.msk [vmem:[#allocation2 + $0x8] sm:$0xff] %vm67, %v2075
    %v2079 = vrot.slane %v2075, 7
    %vm2081 = vcmask 1040384
    %v2082 = vsel %vm2081, %v2074, %v2079
    %v2083 = vld [vmem:[%s16] sm:$0xff]
    %v2084 = vld [vmem:[%s16 + $0x8] sm:$0xff]
    %v2085 = vld [vmem:[%s16 + $0x10] sm:$0xff]
    %v2086 = vld [vmem:[%s16 + $0x18] sm:$0xff]
    %v2087 = vld [vmem:[%s17] sm:$0x1]
    %v2089 = vperm.slane %v2087, 0
    %v2092 = vsel %vm67, %v2082, 0
    %2094 = vmatpush.msra.mxu0 0.0
    %2095 = vmatpush.msra.mxu0 0.0
    %2096 = vmatpush.msra.mxu0 0.0
    %2097 = vmatpush.msra.mxu0 0.0
    %2098 = vmatpush.msra.mxu0 0.0
    %2099 = vmatpush.msra.mxu0 0.0
    %2100 = vmatpush.msra.mxu0 0.0
    %2101 = vmatpush.msra.mxu0 0.0
    %2102 = vmatpush.msra.mxu0 0.0
    %2103 = vmatpush.msra.mxu0 0.0
    %2104 = vmatpush.msra.mxu0 0.0
    %2105 = vmatpush.msra.mxu0 0.0
    %2106 = vmatpush.msra.mxu0 %v2086
    %2107 = vmatpush.msra.mxu0 %v2085
    %2108 = vmatpush.msra.mxu0 %v2084
    %2109 = vmatpush.msra.mxu0 %v2083
    %2110 = vmatmul.f32.gmra.mxu0 %v2092
    %v2111 = vpop.f32.mrf.mxu0
    %v2112 = vadd.f32 %v2089, %v2111
    %2113 = vdwg.mxu0
    %v2114 = vtanh.pop %v2112
    %vm2115 = vcmask 254976
    %2116 = vst.msk [vmem:[#allocation4] sm:$0x3] %vm2115, %v2114
    // Predicated region
    $region74: #{bert_forward.1} parent=1 // pred_check
      _
    $region75: #{bert_forward.1} parent=1 // pred_check_branch
      %2118 = sbr.rel (0) target = $region77
    $region76: #{bert_forward.1} parent=1 // pred_region
      %2120 = vsyncadd [#allocation3], 0
      %s2121 = sshll.u32 [#allocation2], 4
      %s2122 = int_to_ptr.vmem [resolvable:$true] %s2121
      %s2123 = sshll.u32 %s18, 4
      %s2124 = int_to_ptr.hbm [resolvable:$true] %s2123
      %2129 = dma.vmem_to_hbm [thread:$0]  %s2122, 256, %s2124, [#allocation3], 128, 128, 8
    $region77: #{bert_forward.1} parent=1 // pred_fallthru
      _
    // Predicated region
    $region78: #{bert_forward.1} parent=1 // pred_check
      _
    $region79: #{bert_forward.1} parent=1 // pred_check_branch
      %2131 = sbr.rel (0) target = $region81
    $region80: #{bert_forward.1} parent=1 // pred_region
      %2133 = vsyncadd [#allocation5], 0
      %s2135 = sshll.u32 [#allocation4], 4
      %s2136 = int_to_ptr.vmem [resolvable:$true] %s2135
      %s2137 = sshll.u32 %s19, 4
      %s2138 = int_to_ptr.hbm [resolvable:$true] %s2137
      %2140 = dma.vmem_to_hbm [thread:$0]  %s2136, 32, %s2138, [#allocation5]
    $region81: #{bert_forward.1} parent=1 // pred_fallthru
      _
    // Predicated region
    $region82: #{bert_forward.1} parent=1 // pred_check
      _
    $region83: #{bert_forward.1} parent=1 // pred_check_branch
      %2142 = sbr.rel (0) target = $region85
    $region84: #{bert_forward.1} parent=1 // pred_region
      %2144 = dma.done [#allocation3], 256
    $region85: #{bert_forward.1} parent=1 // pred_fallthru
      _
    // Predicated region
    $region86: #{bert_forward.1} parent=1 // pred_check
      _
    $region87: #{bert_forward.1} parent=1 // pred_check_branch
      %2146 = sbr.rel (0) target = $region89
    $region88: #{bert_forward.1} parent=1 // pred_region
      %2148 = dma.done [#allocation5], 32
    $region89: #{bert_forward.1} parent=1 // pred_fallthru
      _
    %2149 = vsyncpa [#allocation3], 1
    %2150 = vsyncpa [#allocation5], 1

</llo_original>
